<compile_context>
chip_gen: v7x
topology: tpu7x:2x2x1
jax: 0.10.0
libtpu: 0.0.40
codegen_flags: <defaults>
</compile_context>

<pallas_src>
import functools

import jax
import jax.numpy as jnp
import numpy as np
from jax.experimental import pallas as pl
from jax.experimental.pallas import tpu as pltpu


def _swap_leading(x, impl):
    # (A, B, D) -> (B, A, D); the lane (last) dim is untouched.
    if impl == "einshape":
        return pltpu.einshape("abd->bad", x)
    return jnp.swapaxes(x, 0, 1)


def _edge_mlp_kernel(e_ref,     # VMEM (1, T, T, D)  edge[b, i_blk, j_blk]
                     er_ref,    # VMEM (1, T, T, D)  edge[b, j_blk, i_blk]
                     radd_ref,  # VMEM (1, T, D)     s + er        (indexed by i)
                     cadd_ref,  # VMEM (1, T, D)     t + ec + b_e  (indexed by j)
                     we1_ref,   # VMEM (D, D)
                     we2_ref,   # VMEM (D, D)
                     w1_ref,    # VMEM (D, D)
                     b1_ref,    # VMEM (1, D)
                     out_ref,   # VMEM (1, T, T, D)
                     *, swap_impl):
    _, ti, tj, d = e_ref.shape
    f32 = jnp.float32

    # Forward term: E[b, i_blk, j_blk] @ We1  (MXU, f32 accumulation).
    h = jnp.dot(e_ref[0].reshape(ti * tj, d), we1_ref[...],
                preferred_element_type=f32).reshape(ti, tj, d)

    # Reverse term: E[b, j_blk, i_blk] @ We2, then swap the two leading dims of
    # the f32 result in VMEM so it lines up with the forward term.
    h2 = jnp.dot(er_ref[0].reshape(tj * ti, d), we2_ref[...],
                 preferred_element_type=f32).reshape(tj, ti, d)
    h = h + _swap_leading(h2, swap_impl)

    # Five broadcast adds folded into two resident vectors.
    h = h + radd_ref[0][:, None, :] + cadd_ref[0][None, :, :]

    # act_fn -> tanh-GELU;  dropout -> eval-mode identity.
    h = jax.nn.gelu(h, approximate=True)

    out = jnp.dot(h.reshape(ti * tj, d), w1_ref[...],
                  preferred_element_type=f32) + b1_ref[...]
    out_ref[0] = out.reshape(ti, tj, d).astype(out_ref.dtype)


def _vmem_capacity_bytes():
    try:
        return int(pltpu.get_tpu_info().vmem_capacity_bytes)
    except Exception:
        return 64 * 2**20        # conservative default: v7x per-core VMEM


def _per_step_vmem_bytes(t, d, edge_itemsize):
    blk = t * t * d
    return (blk * (2 * 2 * edge_itemsize    # fwd + rev edge slabs, double-buffered
                   + 2 * edge_itemsize      # output slab, double-buffered
                   + 4 * 4)                 # f32 transients (h, h2, swap, gelu/out)
            + 2 * 2 * t * d * 4             # row_add / col_add tiles
            + 2 * (3 * d * d + d) * 4)      # resident weights (with buffer slack)


def _pick_tile(n, d, edge_itemsize, vmem_cap):
    budget = int(0.70 * vmem_cap)
    for t in (256, 128, 64, 32, 16, 8):
        if t <= n and n % t == 0 and _per_step_vmem_bytes(t, d, edge_itemsize) <= budget:
            return t
    return 8


@functools.partial(jax.jit, static_argnames=("tile", "swap_impl"))
def edge_mlp(node, edge, params, *, tile=None, swap_impl="einshape"):
    B, N, D = node.shape
    assert edge.shape == (B, N, N, D)
    assert N % 8 == 0, "N must be a multiple of 8 (sublane alignment)"
    assert D % 128 == 0, "d_hid must be a multiple of 128 (lane alignment)"

    edge_dtype = edge.dtype
    es = jnp.dtype(edge_dtype).itemsize
    vmem_cap = _vmem_capacity_bytes()
    ts = tile or _pick_tile(N, D, es, vmem_cap)
    assert N % ts == 0 and ts % 8 == 0
    nt = N // ts

    f32 = jnp.float32
    node = node.astype(f32)

    # O(N*D) projections hoisted out of the O(N^2*D) stream.  The two edge
    # means accumulate in f32 regardless of edge's storage dtype; XLA fuses
    # them into a single read pass over `edge` (no wrapper astype of edge).
    s = node @ params["Ws"].astype(f32) + params["bs"].astype(f32)        # by i
    t = node @ params["Wt"].astype(f32) + params["bt"].astype(f32)        # by j
    ec = jnp.mean(edge, axis=1, dtype=f32) @ params["Wec"].astype(f32)    # by j
    er = jnp.mean(edge, axis=2, dtype=f32) @ params["Wer"].astype(f32)    # by i
    row_add = s + er                                                      # (B,N,D)
    col_add = t + ec + params["be"].astype(f32)                           # (B,N,D)

    # Edge-side weights follow edge's dtype (bf16 edge -> bf16 MXU operands);
    # accumulation stays f32 via preferred_element_type.
    we1 = params["We1"].astype(edge_dtype)
    we2 = params["We2"].astype(edge_dtype)
    w1 = params["W1"].astype(f32)
    b1 = params["b1"].astype(f32).reshape(1, D)

    vmem_need = _per_step_vmem_bytes(ts, D, es)
    vmem_limit = int(min(int(0.92 * vmem_cap),
                         max(vmem_need * 5 // 4, 16 * 2**20)))

    kernel = pl.pallas_call(
        functools.partial(_edge_mlp_kernel, swap_impl=swap_impl),
        out_shape=jax.ShapeDtypeStruct((B, N, N, D), edge_dtype),
        grid_spec=pltpu.PrefetchScalarGridSpec(
            num_scalar_prefetch=0,
            grid=(B, nt, nt),
            in_specs=[
                pl.BlockSpec((1, ts, ts, D), lambda b, i, j: (b, i, j, 0)),  # E[b,i,j]
                pl.BlockSpec((1, ts, ts, D), lambda b, i, j: (b, j, i, 0)),  # E[b,j,i]
                pl.BlockSpec((1, ts, D), lambda b, i, j: (b, i, 0)),         # row_add
                pl.BlockSpec((1, ts, D), lambda b, i, j: (b, j, 0)),         # col_add
                pl.BlockSpec((D, D), lambda b, i, j: (0, 0)),                # We1
                pl.BlockSpec((D, D), lambda b, i, j: (0, 0)),                # We2
                pl.BlockSpec((D, D), lambda b, i, j: (0, 0)),                # W1
                pl.BlockSpec((1, D), lambda b, i, j: (0, 0)),                # b1
            ],
            out_specs=pl.BlockSpec((1, ts, ts, D), lambda b, i, j: (b, i, j, 0)),
        ),
        compiler_params=pltpu.CompilerParams(
            dimension_semantics=("parallel", "parallel", "parallel"),
            vmem_limit_bytes=vmem_limit,
        ),
    )
    return kernel(edge, edge, row_add, col_add, we1, we2, w1, b1)


def edge_mlp_reference(node, edge, p):
    """Pure-JAX reference mirroring the PyTorch forward pass (eval mode)."""
    s = node @ p["Ws"] + p["bs"]
    t = node @ p["Wt"] + p["bt"]
    ec = jnp.mean(edge, axis=1) @ p["Wec"]    # mean over dim -3 -> indexed by j
    er = jnp.mean(edge, axis=2) @ p["Wer"]    # mean over dim -2 -> indexed by i
    rev = jnp.swapaxes(edge, 1, 2)
    h = edge @ p["We1"] + rev @ p["We2"] + p["be"]
    h = h + s[:, :, None, :] + t[:, None, :, :] + ec[:, None, :, :] + er[:, :, None, :]
    h = jax.nn.gelu(h, approximate=True)
    return h @ p["W1"] + p["b1"]


def init_params(key, d_hid):
    # PyTorch nn.Linear stores W as (out, in); keep pre-transposed (in, out)
    # matrices so that y = x @ W + b.
    keys = jax.random.split(key, 10)
    scale = 1.0 / np.sqrt(d_hid)

    def mat(k):
        return jax.random.normal(k, (d_hid, d_hid), jnp.float32) * scale

    def vec(k):
        return jax.random.normal(k, (1, d_hid), jnp.float32) * scale

    return {
        "Ws": mat(keys[0]), "bs": vec(keys[1]),
        "Wt": mat(keys[2]), "bt": vec(keys[3]),
        "Wec": mat(keys[4]),
        "Wer": mat(keys[5]),
        "We1": mat(keys[6]), "We2": mat(keys[7]), "be": vec(keys[8]),
        "W1": mat(keys[9]), "b1": vec(jax.random.fold_in(key, 123)),
    }


if __name__ == "__main__":
    B, N, D = 2, 32, 128   # batch, num nodes, d_hid

    key = jax.random.PRNGKey(0)
    k_node, k_edge, k_par = jax.random.split(key, 3)
    node = jax.random.normal(k_node, (B, N, D), jnp.float32)
    edge = jax.random.normal(k_edge, (B, N, N, D), jnp.float32)
    params = init_params(k_par, D)

    ref = edge_mlp_reference(node, edge, params)

    # f32 path; tile=16 forces a multi-block (2x2) grid so the reverse-block
    # BlockSpec indexing and the in-VMEM leading-dims swap are both exercised.
    impl = "einshape"
    try:
        out = jax.block_until_ready(
            edge_mlp(node, edge, params, tile=16, swap_impl=impl))
        np.testing.assert_allclose(np.asarray(out), np.asarray(ref),
                                   rtol=1e-4, atol=1e-4)
    except Exception:
        # Portability fallback for Mosaic builds without einshape support.
        impl = "swapaxes"
        out = jax.block_until_ready(
            edge_mlp(node, edge, params, tile=16, swap_impl=impl))
        np.testing.assert_allclose(np.asarray(out), np.asarray(ref),
                                   rtol=1e-4, atol=1e-4)
    assert out.shape == (B, N, N, D)

    # bf16 streaming path: edge stays bf16 in HBM (half the kernel's read and
    # write traffic); accumulation stays f32 in-kernel.
    edge_bf16 = edge.astype(jnp.bfloat16)
    out_bf = jax.block_until_ready(
        edge_mlp(node, edge_bf16, params, tile=16, swap_impl=impl))
    ref_bf = edge_mlp_reference(node, edge_bf16.astype(jnp.float32), params)
    np.testing.assert_allclose(np.asarray(out_bf.astype(jnp.float32)),
                               np.asarray(ref_bf), rtol=1e-1, atol=1e-1)

    print("KERNEL_OK")
</pallas_src>

<mosaic_0001>
module attributes {stable_mosaic.version = 11 : i64} {
  func.func @_edge_mlp_kernel(%arg0: i32, %arg1: i32, %arg2: i32, %arg3: memref<1x16x16x128xf32, #tpu.memory_space<vmem>>, %arg4: memref<1x16x16x128xf32, #tpu.memory_space<vmem>>, %arg5: memref<1x16x128xf32, #tpu.memory_space<vmem>>, %arg6: memref<1x16x128xf32, #tpu.memory_space<vmem>>, %arg7: memref<128x128xf32, #tpu.memory_space<vmem>>, %arg8: memref<128x128xf32, #tpu.memory_space<vmem>>, %arg9: memref<128x128xf32, #tpu.memory_space<vmem>>, %arg10: memref<1x128xf32, #tpu.memory_space<vmem>>, %arg11: memref<1x16x16x128xf32, #tpu.memory_space<vmem>>) attributes {dimension_semantics = [#tpu.dimension_semantics<parallel>, #tpu.dimension_semantics<parallel>, #tpu.dimension_semantics<parallel>], iteration_bounds = array<i64: 2, 2, 2>, scalar_prefetch = 0 : i64, scratch_operands = 0 : i64, tpu.core_type = #tpu.core_type<tc>, window_params = [{transform_indices = @transform_0, window_bounds = array<i64: 1, 16, 16, 128>}, {transform_indices = @transform_1, window_bounds = array<i64: 1, 16, 16, 128>}, {transform_indices = @transform_2, window_bounds = array<i64: 1, 16, 128>}, {transform_indices = @transform_3, window_bounds = array<i64: 1, 16, 128>}, {pipeline_mode = #tpu.pipeline_mode<synchronous>, transform_indices = @transform_4, window_bounds = array<i64: 128, 128>}, {pipeline_mode = #tpu.pipeline_mode<synchronous>, transform_indices = @transform_5, window_bounds = array<i64: 128, 128>}, {pipeline_mode = #tpu.pipeline_mode<synchronous>, transform_indices = @transform_6, window_bounds = array<i64: 128, 128>}, {pipeline_mode = #tpu.pipeline_mode<synchronous>, transform_indices = @transform_7, window_bounds = array<i64: 1, 128>}, {transform_indices = @transform_8, window_bounds = array<i64: 1, 16, 16, 128>}]} {
    %c0 = arith.constant 0 : index
    %c0_0 = arith.constant 0 : index
    %c0_1 = arith.constant 0 : index
    %c0_2 = arith.constant 0 : index
    %0 = vector.load %arg3[%c0, %c0_0, %c0_1, %c0_2] : memref<1x16x16x128xf32, #tpu.memory_space<vmem>>, vector<1x16x16x128xf32>
    %1 = vector.shape_cast %0 : vector<1x16x16x128xf32> to vector<16x16x128xf32>
    %2 = vector.shape_cast %1 : vector<16x16x128xf32> to vector<256x128xf32>
    %c0_3 = arith.constant 0 : index
    %c0_4 = arith.constant 0 : index
    %3 = vector.load %arg7[%c0_3, %c0_4] : memref<128x128xf32, #tpu.memory_space<vmem>>, vector<128x128xf32>
    %cst = arith.constant dense<0.000000e+00> : vector<256x128xf32>
    %4 = tpu.matmul %2, %3, %cst {dimension_numbers = #tpu.dot_dimension_numbers<[1], [0], [0], [1], [0, 0, 1, 1], [], []>} : vector<256x128xf32>, vector<128x128xf32>, vector<256x128xf32> -> vector<256x128xf32>
    %5 = vector.shape_cast %4 : vector<256x128xf32> to vector<16x16x128xf32>
    %c0_5 = arith.constant 0 : index
    %c0_6 = arith.constant 0 : index
    %c0_7 = arith.constant 0 : index
    %c0_8 = arith.constant 0 : index
    %6 = vector.load %arg4[%c0_5, %c0_6, %c0_7, %c0_8] : memref<1x16x16x128xf32, #tpu.memory_space<vmem>>, vector<1x16x16x128xf32>
    %7 = vector.shape_cast %6 : vector<1x16x16x128xf32> to vector<16x16x128xf32>
    %8 = vector.shape_cast %7 : vector<16x16x128xf32> to vector<256x128xf32>
    %c0_9 = arith.constant 0 : index
    %c0_10 = arith.constant 0 : index
    %9 = vector.load %arg8[%c0_9, %c0_10] : memref<128x128xf32, #tpu.memory_space<vmem>>, vector<128x128xf32>
    %cst_11 = arith.constant dense<0.000000e+00> : vector<256x128xf32>
    %10 = tpu.matmul %8, %9, %cst_11 {dimension_numbers = #tpu.dot_dimension_numbers<[1], [0], [0], [1], [0, 0, 1, 1], [], []>} : vector<256x128xf32>, vector<128x128xf32>, vector<256x128xf32> -> vector<256x128xf32>
    %11 = vector.shape_cast %10 : vector<256x128xf32> to vector<16x16x128xf32>
    %12 = tpu.transpose %11, [1, 0, 2] : vector<16x16x128xf32> -> vector<16x16x128xf32>
    %13 = arith.addf %5, %12 : vector<16x16x128xf32>
    %c0_12 = arith.constant 0 : index
    %c0_13 = arith.constant 0 : index
    %c0_14 = arith.constant 0 : index
    %14 = vector.load %arg5[%c0_12, %c0_13, %c0_14] : memref<1x16x128xf32, #tpu.memory_space<vmem>>, vector<1x16x128xf32>
    %15 = vector.shape_cast %14 : vector<1x16x128xf32> to vector<16x128xf32>
    %16 = vector.shape_cast %15 : vector<16x128xf32> to vector<16x1x128xf32>
    %17 = vector.broadcast %16 : vector<16x1x128xf32> to vector<16x16x128xf32>
    %18 = arith.addf %13, %17 : vector<16x16x128xf32>
    %c0_15 = arith.constant 0 : index
    %c0_16 = arith.constant 0 : index
    %c0_17 = arith.constant 0 : index
    %19 = vector.load %arg6[%c0_15, %c0_16, %c0_17] : memref<1x16x128xf32, #tpu.memory_space<vmem>>, vector<1x16x128xf32>
    %20 = vector.shape_cast %19 : vector<1x16x128xf32> to vector<16x128xf32>
    %21 = vector.shape_cast %20 : vector<16x128xf32> to vector<1x16x128xf32>
    %22 = vector.broadcast %21 : vector<1x16x128xf32> to vector<16x16x128xf32>
    %23 = arith.addf %18, %22 : vector<16x16x128xf32>
    %24 = arith.mulf %23, %23 : vector<16x16x128xf32>
    %25 = arith.mulf %23, %24 : vector<16x16x128xf32>
    %cst_18 = arith.constant 4.471500e-02 : f32
    %26 = vector.broadcast %cst_18 : f32 to vector<16x16x128xf32>
    %27 = arith.mulf %26, %25 : vector<16x16x128xf32>
    %28 = arith.addf %23, %27 : vector<16x16x128xf32>
    %cst_19 = arith.constant 0.797884583 : f32
    %29 = vector.broadcast %cst_19 : f32 to vector<16x16x128xf32>
    %30 = arith.mulf %29, %28 : vector<16x16x128xf32>
    %31 = math.tanh %30 : vector<16x16x128xf32>
    %cst_20 = arith.constant 1.000000e+00 : f32
    %32 = vector.broadcast %cst_20 : f32 to vector<16x16x128xf32>
    %33 = arith.addf %32, %31 : vector<16x16x128xf32>
    %cst_21 = arith.constant 5.000000e-01 : f32
    %34 = vector.broadcast %cst_21 : f32 to vector<16x16x128xf32>
    %35 = arith.mulf %34, %33 : vector<16x16x128xf32>
    %36 = arith.mulf %23, %35 : vector<16x16x128xf32>
    %37 = vector.shape_cast %36 : vector<16x16x128xf32> to vector<256x128xf32>
    %c0_22 = arith.constant 0 : index
    %c0_23 = arith.constant 0 : index
    %38 = vector.load %arg9[%c0_22, %c0_23] : memref<128x128xf32, #tpu.memory_space<vmem>>, vector<128x128xf32>
    %cst_24 = arith.constant dense<0.000000e+00> : vector<256x128xf32>
    %39 = tpu.matmul %37, %38, %cst_24 {dimension_numbers = #tpu.dot_dimension_numbers<[1], [0], [0], [1], [0, 0, 1, 1], [], []>} : vector<256x128xf32>, vector<128x128xf32>, vector<256x128xf32> -> vector<256x128xf32>
    %c0_25 = arith.constant 0 : index
    %c0_26 = arith.constant 0 : index
    %40 = vector.load %arg10[%c0_25, %c0_26] : memref<1x128xf32, #tpu.memory_space<vmem>>, vector<1x128xf32>
    %41 = vector.broadcast %40 : vector<1x128xf32> to vector<256x128xf32>
    %42 = arith.addf %39, %41 : vector<256x128xf32>
    %43 = vector.shape_cast %42 : vector<256x128xf32> to vector<16x16x128xf32>
    %c0_27 = arith.constant 0 : index
    %c0_28 = arith.constant 0 : index
    %c0_29 = arith.constant 0 : index
    %c0_30 = arith.constant 0 : index
    %44 = vector.load %arg11[%c0_27, %c0_28, %c0_29, %c0_30] : memref<1x16x16x128xf32, #tpu.memory_space<vmem>>, vector<1x16x16x128xf32>
    %45 = vector.shape_cast %44 : vector<1x16x16x128xf32> to vector<16x16x128xf32>
    %46 = vector.shape_cast %43 : vector<16x16x128xf32> to vector<1x16x16x128xf32>
    tpu.vector_store %arg11[%c0_27, %c0_28, %c0_29, %c0_30], %46 {strides = array<i32>} : memref<1x16x16x128xf32, #tpu.memory_space<vmem>>, vector<1x16x16x128xf32>,
    return
  }
  func.func @transform_0(%arg0: i32, %arg1: i32, %arg2: i32) -> (i32, i32, i32, i32) {
    %c0_i32 = arith.constant 0 : i32
    %c0_i32_0 = arith.constant 0 : i32
    return %arg0, %arg1, %arg2, %c0_i32 : i32, i32, i32, i32
  }
  func.func @transform_1(%arg0: i32, %arg1: i32, %arg2: i32) -> (i32, i32, i32, i32) {
    %c0_i32 = arith.constant 0 : i32
    %c0_i32_0 = arith.constant 0 : i32
    return %arg0, %arg2, %arg1, %c0_i32 : i32, i32, i32, i32
  }
  func.func @transform_2(%arg0: i32, %arg1: i32, %arg2: i32) -> (i32, i32, i32) {
    %c0_i32 = arith.constant 0 : i32
    %c0_i32_0 = arith.constant 0 : i32
    return %arg0, %arg1, %c0_i32 : i32, i32, i32
  }
  func.func @transform_3(%arg0: i32, %arg1: i32, %arg2: i32) -> (i32, i32, i32) {
    %c0_i32 = arith.constant 0 : i32
    %c0_i32_0 = arith.constant 0 : i32
    return %arg0, %arg2, %c0_i32 : i32, i32, i32
  }
  func.func @transform_4(%arg0: i32, %arg1: i32, %arg2: i32) -> (i32, i32) {
    %c0_i32 = arith.constant 0 : i32
    %c0_i32_0 = arith.constant 0 : i32
    %c0_i32_1 = arith.constant 0 : i32
    return %c0_i32, %c0_i32_0 : i32, i32
  }
  func.func @transform_5(%arg0: i32, %arg1: i32, %arg2: i32) -> (i32, i32) {
    %c0_i32 = arith.constant 0 : i32
    %c0_i32_0 = arith.constant 0 : i32
    %c0_i32_1 = arith.constant 0 : i32
    return %c0_i32, %c0_i32_0 : i32, i32
  }
  func.func @transform_6(%arg0: i32, %arg1: i32, %arg2: i32) -> (i32, i32) {
    %c0_i32 = arith.constant 0 : i32
    %c0_i32_0 = arith.constant 0 : i32
    %c0_i32_1 = arith.constant 0 : i32
    return %c0_i32, %c0_i32_0 : i32, i32
  }
  func.func @transform_7(%arg0: i32, %arg1: i32, %arg2: i32) -> (i32, i32) {
    %c0_i32 = arith.constant 0 : i32
    %c0_i32_0 = arith.constant 0 : i32
    %c0_i32_1 = arith.constant 0 : i32
    return %c0_i32, %c0_i32_0 : i32, i32
  }
  func.func @transform_8(%arg0: i32, %arg1: i32, %arg2: i32) -> (i32, i32, i32, i32) {
    %c0_i32 = arith.constant 0 : i32
    %c0_i32_0 = arith.constant 0 : i32
    return %arg0, %arg1, %arg2, %c0_i32 : i32, i32, i32, i32
  }
}

module attributes {stable_mosaic.version = 11 : i64} {
  func.func @_edge_mlp_kernel(%arg0: i32, %arg1: i32, %arg2: i32, %arg3: memref<1x16x16x128xf32, #tpu.memory_space<vmem>>, %arg4: memref<1x16x16x128xf32, #tpu.memory_space<vmem>>, %arg5: memref<1x16x128xf32, #tpu.memory_space<vmem>>, %arg6: memref<1x16x128xf32, #tpu.memory_space<vmem>>, %arg7: memref<128x128xf32, #tpu.memory_space<vmem>>, %arg8: memref<128x128xf32, #tpu.memory_space<vmem>>, %arg9: memref<128x128xf32, #tpu.memory_space<vmem>>, %arg10: memref<1x128xf32, #tpu.memory_space<vmem>>, %arg11: memref<1x16x16x128xf32, #tpu.memory_space<vmem>>) attributes {dimension_semantics = [#tpu.dimension_semantics<parallel>, #tpu.dimension_semantics<parallel>, #tpu.dimension_semantics<parallel>], iteration_bounds = array<i64: 2, 2, 2>, scalar_prefetch = 0 : i64, scratch_operands = 0 : i64, tpu.core_type = #tpu.core_type<tc>, window_params = [{transform_indices = @transform_0, window_bounds = array<i64: 1, 16, 16, 128>}, {transform_indices = @transform_1, window_bounds = array<i64: 1, 16, 16, 128>}, {transform_indices = @transform_2, window_bounds = array<i64: 1, 16, 128>}, {transform_indices = @transform_3, window_bounds = array<i64: 1, 16, 128>}, {pipeline_mode = #tpu.pipeline_mode<synchronous>, transform_indices = @transform_4, window_bounds = array<i64: 128, 128>}, {pipeline_mode = #tpu.pipeline_mode<synchronous>, transform_indices = @transform_5, window_bounds = array<i64: 128, 128>}, {pipeline_mode = #tpu.pipeline_mode<synchronous>, transform_indices = @transform_6, window_bounds = array<i64: 128, 128>}, {pipeline_mode = #tpu.pipeline_mode<synchronous>, transform_indices = @transform_7, window_bounds = array<i64: 1, 128>}, {transform_indices = @transform_8, window_bounds = array<i64: 1, 16, 16, 128>}]} {
    %c0 = arith.constant 0 : index
    %c0_0 = arith.constant 0 : index
    %c0_1 = arith.constant 0 : index
    %c0_2 = arith.constant 0 : index
    %0 = vector.load %arg3[%c0, %c0_0, %c0_1, %c0_2] : memref<1x16x16x128xf32, #tpu.memory_space<vmem>>, vector<1x16x16x128xf32>
    %1 = vector.shape_cast %0 : vector<1x16x16x128xf32> to vector<16x16x128xf32>
    %2 = vector.shape_cast %1 : vector<16x16x128xf32> to vector<256x128xf32>
    %c0_3 = arith.constant 0 : index
    %c0_4 = arith.constant 0 : index
    %3 = vector.load %arg7[%c0_3, %c0_4] : memref<128x128xf32, #tpu.memory_space<vmem>>, vector<128x128xf32>
    %cst = arith.constant dense<0.000000e+00> : vector<256x128xf32>
    %4 = tpu.matmul %2, %3, %cst {dimension_numbers = #tpu.dot_dimension_numbers<[1], [0], [0], [1], [0, 0, 1, 1], [], []>} : vector<256x128xf32>, vector<128x128xf32>, vector<256x128xf32> -> vector<256x128xf32>
    %5 = vector.shape_cast %4 : vector<256x128xf32> to vector<16x16x128xf32>
    %c0_5 = arith.constant 0 : index
    %c0_6 = arith.constant 0 : index
    %c0_7 = arith.constant 0 : index
    %c0_8 = arith.constant 0 : index
    %6 = vector.load %arg4[%c0_5, %c0_6, %c0_7, %c0_8] : memref<1x16x16x128xf32, #tpu.memory_space<vmem>>, vector<1x16x16x128xf32>
    %7 = vector.shape_cast %6 : vector<1x16x16x128xf32> to vector<16x16x128xf32>
    %8 = vector.shape_cast %7 : vector<16x16x128xf32> to vector<256x128xf32>
    %c0_9 = arith.constant 0 : index
    %c0_10 = arith.constant 0 : index
    %9 = vector.load %arg8[%c0_9, %c0_10] : memref<128x128xf32, #tpu.memory_space<vmem>>, vector<128x128xf32>
    %cst_11 = arith.constant dense<0.000000e+00> : vector<256x128xf32>
    %10 = tpu.matmul %8, %9, %cst_11 {dimension_numbers = #tpu.dot_dimension_numbers<[1], [0], [0], [1], [0, 0, 1, 1], [], []>} : vector<256x128xf32>, vector<128x128xf32>, vector<256x128xf32> -> vector<256x128xf32>
    %11 = vector.shape_cast %10 : vector<256x128xf32> to vector<16x16x128xf32>
    %12 = tpu.transpose %11, [1, 0, 2] : vector<16x16x128xf32> -> vector<16x16x128xf32>
    %13 = arith.addf %5, %12 : vector<16x16x128xf32>
    %c0_12 = arith.constant 0 : index
    %c0_13 = arith.constant 0 : index
    %c0_14 = arith.constant 0 : index
    %14 = vector.load %arg5[%c0_12, %c0_13, %c0_14] : memref<1x16x128xf32, #tpu.memory_space<vmem>>, vector<1x16x128xf32>
    %15 = vector.shape_cast %14 : vector<1x16x128xf32> to vector<16x128xf32>
    %16 = vector.shape_cast %15 : vector<16x128xf32> to vector<16x1x128xf32>
    %17 = vector.broadcast %16 : vector<16x1x128xf32> to vector<16x16x128xf32>
    %18 = arith.addf %13, %17 : vector<16x16x128xf32>
    %c0_15 = arith.constant 0 : index
    %c0_16 = arith.constant 0 : index
    %c0_17 = arith.constant 0 : index
    %19 = vector.load %arg6[%c0_15, %c0_16, %c0_17] : memref<1x16x128xf32, #tpu.memory_space<vmem>>, vector<1x16x128xf32>
    %20 = vector.shape_cast %19 : vector<1x16x128xf32> to vector<16x128xf32>
    %21 = vector.shape_cast %20 : vector<16x128xf32> to vector<1x16x128xf32>
    %22 = vector.broadcast %21 : vector<1x16x128xf32> to vector<16x16x128xf32>
    %23 = arith.addf %18, %22 : vector<16x16x128xf32>
    %24 = arith.mulf %23, %23 : vector<16x16x128xf32>
    %25 = arith.mulf %23, %24 : vector<16x16x128xf32>
    %cst_18 = arith.constant 4.471500e-02 : f32
    %26 = vector.broadcast %cst_18 : f32 to vector<16x16x128xf32>
    %27 = arith.mulf %26, %25 : vector<16x16x128xf32>
    %28 = arith.addf %23, %27 : vector<16x16x128xf32>
    %cst_19 = arith.constant 0.797884583 : f32
    %29 = vector.broadcast %cst_19 : f32 to vector<16x16x128xf32>
    %30 = arith.mulf %29, %28 : vector<16x16x128xf32>
    %31 = math.tanh %30 : vector<16x16x128xf32>
    %cst_20 = arith.constant 1.000000e+00 : f32
    %32 = vector.broadcast %cst_20 : f32 to vector<16x16x128xf32>
    %33 = arith.addf %32, %31 : vector<16x16x128xf32>
    %cst_21 = arith.constant 5.000000e-01 : f32
    %34 = vector.broadcast %cst_21 : f32 to vector<16x16x128xf32>
    %35 = arith.mulf %34, %33 : vector<16x16x128xf32>
    %36 = arith.mulf %23, %35 : vector<16x16x128xf32>
    %37 = vector.shape_cast %36 : vector<16x16x128xf32> to vector<256x128xf32>
    %c0_22 = arith.constant 0 : index
    %c0_23 = arith.constant 0 : index
    %38 = vector.load %arg9[%c0_22, %c0_23] : memref<128x128xf32, #tpu.memory_space<vmem>>, vector<128x128xf32>
    %cst_24 = arith.constant dense<0.000000e+00> : vector<256x128xf32>
    %39 = tpu.matmul %37, %38, %cst_24 {dimension_numbers = #tpu.dot_dimension_numbers<[1], [0], [0], [1], [0, 0, 1, 1], [], []>} : vector<256x128xf32>, vector<128x128xf32>, vector<256x128xf32> -> vector<256x128xf32>
    %c0_25 = arith.constant 0 : index
    %c0_26 = arith.constant 0 : index
    %40 = vector.load %arg10[%c0_25, %c0_26] : memref<1x128xf32, #tpu.memory_space<vmem>>, vector<1x128xf32>
    %41 = vector.broadcast %40 : vector<1x128xf32> to vector<256x128xf32>
    %42 = arith.addf %39, %41 : vector<256x128xf32>
    %43 = vector.shape_cast %42 : vector<256x128xf32> to vector<16x16x128xf32>
    %c0_27 = arith.constant 0 : index
    %c0_28 = arith.constant 0 : index
    %c0_29 = arith.constant 0 : index
    %c0_30 = arith.constant 0 : index
    %44 = vector.load %arg11[%c0_27, %c0_28, %c0_29, %c0_30] : memref<1x16x16x128xf32, #tpu.memory_space<vmem>>, vector<1x16x16x128xf32>
    %45 = vector.shape_cast %44 : vector<1x16x16x128xf32> to vector<16x16x128xf32>
    %46 = vector.shape_cast %43 : vector<16x16x128xf32> to vector<1x16x16x128xf32>
    tpu.vector_store %arg11[%c0_27, %c0_28, %c0_29, %c0_30], %46 {strides = array<i32>} : memref<1x16x16x128xf32, #tpu.memory_space<vmem>>, vector<1x16x16x128xf32>,
    return
  }
  func.func @transform_0(%arg0: i32, %arg1: i32, %arg2: i32) -> (i32, i32, i32, i32) {
    %c0_i32 = arith.constant 0 : i32
    %c0_i32_0 = arith.constant 0 : i32
    return %arg0, %arg1, %arg2, %c0_i32 : i32, i32, i32, i32
  }
  func.func @transform_1(%arg0: i32, %arg1: i32, %arg2: i32) -> (i32, i32, i32, i32) {
    %c0_i32 = arith.constant 0 : i32
    %c0_i32_0 = arith.constant 0 : i32
    return %arg0, %arg2, %arg1, %c0_i32 : i32, i32, i32, i32
  }
  func.func @transform_2(%arg0: i32, %arg1: i32, %arg2: i32) -> (i32, i32, i32) {
    %c0_i32 = arith.constant 0 : i32
    %c0_i32_0 = arith.constant 0 : i32
    return %arg0, %arg1, %c0_i32 : i32, i32, i32
  }
  func.func @transform_3(%arg0: i32, %arg1: i32, %arg2: i32) -> (i32, i32, i32) {
    %c0_i32 = arith.constant 0 : i32
    %c0_i32_0 = arith.constant 0 : i32
    return %arg0, %arg2, %c0_i32 : i32, i32, i32
  }
  func.func @transform_4(%arg0: i32, %arg1: i32, %arg2: i32) -> (i32, i32) {
    %c0_i32 = arith.constant 0 : i32
    %c0_i32_0 = arith.constant 0 : i32
    %c0_i32_1 = arith.constant 0 : i32
    return %c0_i32, %c0_i32_0 : i32, i32
  }
  func.func @transform_5(%arg0: i32, %arg1: i32, %arg2: i32) -> (i32, i32) {
    %c0_i32 = arith.constant 0 : i32
    %c0_i32_0 = arith.constant 0 : i32
    %c0_i32_1 = arith.constant 0 : i32
    return %c0_i32, %c0_i32_0 : i32, i32
  }
  func.func @transform_6(%arg0: i32, %arg1: i32, %arg2: i32) -> (i32, i32) {
    %c0_i32 = arith.constant 0 : i32
    %c0_i32_0 = arith.constant 0 : i32
    %c0_i32_1 = arith.constant 0 : i32
    return %c0_i32, %c0_i32_0 : i32, i32
  }
  func.func @transform_7(%arg0: i32, %arg1: i32, %arg2: i32) -> (i32, i32) {
    %c0_i32 = arith.constant 0 : i32
    %c0_i32_0 = arith.constant 0 : i32
    %c0_i32_1 = arith.constant 0 : i32
    return %c0_i32, %c0_i32_0 : i32, i32
  }
  func.func @transform_8(%arg0: i32, %arg1: i32, %arg2: i32) -> (i32, i32, i32, i32) {
    %c0_i32 = arith.constant 0 : i32
    %c0_i32_0 = arith.constant 0 : i32
    return %arg0, %arg1, %arg2, %c0_i32 : i32, i32, i32, i32
  }
}

</mosaic_0001>

<llo_original>
// kernel: edge_mlp.1
$region0: #{edge_mlp.1}
  #allocation0 [shape = 'u32[]', space=smem, size = 0x4, offset = 0x4, fixed_abs, tag = 'smem constant byte address 0x4 - core index']
  #allocation1 [shape = 'u32[144,128]{1,0:T(1,128)}', space=vmem, size = 0x12000, scoped, tag = 'internal scratch']
  #allocation6 [shape = 's32[]', space=sflag, size = 0x4, offset = 0, fixed_abs, tag = 'sflag constant byte address 0x0 - dummy sync flag']
  %s0 = inlined_call_operand.vmem [shape: f32[2,32,32,128], index: 0, kind: input, shape index: {}, may-alias: {0,1}]
  %s1 = inlined_call_operand.vmem [shape: f32[2,32,32,128], index: 1, kind: input, shape index: {}, may-alias: {0,1}]
  %s2 = inlined_call_operand.vmem [shape: f32[2,32,128], index: 2, kind: input, shape index: {}]
  %s3 = inlined_call_operand.vmem [shape: f32[2,32,128], index: 3, kind: input, shape index: {}]
  %s4 = inlined_call_operand.vmem [shape: f32[128,128], index: 4, kind: input, shape index: {}]
  %s5 = inlined_call_operand.vmem [shape: f32[128,128], index: 5, kind: input, shape index: {}]
  %s6 = inlined_call_operand.vmem [shape: f32[128,128], index: 6, kind: input, shape index: {}]
  %s7 = inlined_call_operand.vmem [shape: f32[1,128], index: 7, kind: input, shape index: {}]
  %s8 = inlined_call_operand.hbm [shape: f32[2,32,32,128], index: 8, kind: output, shape index: {}]
  %s9 = sld [smem:[#allocation0]]
  $region141: #{edge_mlp.1} parent=0
    _
  %s11 = ssub.s32 1, %s9
  %s12 = scalar_select 0, %s11, %s9
  $region1: #{edge_mlp.1} parent=0
    #allocation2 [shape = 'u8[262144]{0}', space=vmem, size = 0x40000, scoped, tag = 'input window, operand 0']
    #allocation3 [shape = 'u8[262144]{0}', space=vmem, size = 0x40000, scoped, tag = 'input window, operand 1']
    #allocation4 [shape = 'u8[262144]{0}', space=vmem, size = 0x40000, scoped, tag = 'output window, operand 0']
    #allocation5 [shape = 's32[2]{0}', space=sflag, size = 0x8, scoped, tag = 'scoped memory for edge_mlp.1']
    %13 = vsyncpa [#allocation5], 0
    %s14 = scalar_lea.sflag [#allocation5], 1
    %15 = vsyncpa %s14, 0
    loop: start=0, step=1, limit=10
    $region2: #{edge_mlp.1} parent=1 // loop_pre_header
      _
    $region3: #{edge_mlp.1} parent=1 // loop_header
      %s17 = sphi 0, %s21
      %p18 = scmp.ge.s32.totalorder %s17, 10
      %s24 = sphi 0, %s43
      %s25 = sphi 0, %s39
      %s26 = sphi 0, %s35
      %s27 = sphi 0, %s24
      %s28 = sphi 0, %s25
      %s29 = sphi 0, %s26
      %s30 = sphi 0, %s27
      %s31 = sphi 0, %s28
      %s32 = sphi 0, %s29
      %s50 = sphi 0, %s52
      %s53 = sphi 0, %s50
      %s54 = sphi 0, %s53
      %s70 = sphi 0, %s54
      %s80 = sphi 0, %s82
      %s83 = sphi 0, %s80
      %s84 = sphi 0, %s83
      %s100 = sphi 0, %s84
      %s108 = sphi 0, %s110
      %s111 = sphi 0, %s108
      %s112 = sphi 0, %s111
      %s128 = sphi 0, %s112
      %s136 = sphi 0, %s138
      %s139 = sphi 0, %s136
      %s140 = sphi 0, %s139
      %s156 = sphi 0, %s140
      %s160 = sphi 0, %s160
      %s162 = sphi 0, %s160
      %s163 = sphi 0, %s162
      %s177 = sphi 0, %s163
      %s181 = sphi 0, %s181
      %s183 = sphi 0, %s181
      %s184 = sphi 0, %s183
      %s198 = sphi 0, %s184
      %s202 = sphi 0, %s202
      %s204 = sphi 0, %s202
      %s205 = sphi 0, %s204
      %s219 = sphi 0, %s205
      %s223 = sphi 0, %s223
      %s225 = sphi 0, %s223
      %s226 = sphi 0, %s225
      %s240 = sphi 0, %s226
      %s250 = sphi 0, %s252
      %s253 = sphi 0, %s250
      %s254 = sphi 0, %s253
      %s270 = sphi 0, %s254
    $region4: #{edge_mlp.1} parent=1 // loop_header_branch
      %20 = sbr.rel (%p18) target = $region8
    $region5: #{edge_mlp.1} parent=1 // loop_body
      %s22 = ssub.s32 %s17, 1
      %s23 = ssub.s32 %s17, 2
      %s33 = sadd.s32 1, %s26
      %p34 = scmp.ge.s32.totalorder %s33, 2
      %s35 = scalar_select %p34, 0, %s33
      %s36 = sadd.s32 1, %s25
      %s37 = scalar_select %p34, %s36, %s25
      %p38 = scmp.ge.s32.totalorder %s37, 2
      %s39 = scalar_select %p38, 0, %s37
      %s40 = sadd.s32 1, %s24
      %s41 = scalar_select %p38, %s40, %s24
      %p42 = scmp.ge.s32.totalorder %s41, 2
      %s43 = scalar_select %p42, 0, %s41
      %s44 = ssub.s32 %s24, %s43
      %s45 = ssub.s32 %s25, %s39
      %s46 = sor.u32 %s44, %s45
      %s47 = ssub.s32 %s26, %s35
      %s48 = sor.u32 %s46, %s47
      %p49 = scmp.eq.s32.totalorder %s48, 0
      %s51 = sadd.s32 %s50, 1
      %s52 = scalar_select %p49, %s50, %s51
      %p55 = pneg %p49
      %p56 = scmp.eq.s32.totalorder %s17, 7
      %p57 = por %p55, %p56
      %p58 = scmp.ne.s32.totalorder %s50, %s53
      %p59 = scmp.eq.s32.totalorder %s17, 0
      %p60 = por %p58, %p59
      %p61 = scmp.ne.s32.totalorder %s50, %s53
      %p62 = scmp.eq.s32.totalorder %s22, 7
      %p63 = por %p61, %p62
      %p64 = scmp.ne.s32.totalorder %s53, %s54
      %p65 = scmp.eq.s32.totalorder %s22, 0
      %p66 = por %p64, %p65
      %p67 = scmp.ne.s32.totalorder %s53, %s54
      %p68 = scmp.eq.s32.totalorder %s23, 7
      %p69 = por %p67, %p68
      %p71 = scmp.ne.s32.totalorder %s54, %s70
      %p72 = scmp.eq.s32.totalorder %s23, 0
      %p73 = por %p71, %p72
      %s74 = ssub.s32 %s24, %s43
      %s75 = ssub.s32 %s26, %s35
      %s76 = sor.u32 %s74, %s75
      %s77 = ssub.s32 %s25, %s39
      %s78 = sor.u32 %s76, %s77
      %p79 = scmp.eq.s32.totalorder %s78, 0
      %s81 = sadd.s32 %s80, 1
      %s82 = scalar_select %p79, %s80, %s81
      %p85 = pneg %p79
      %p86 = scmp.eq.s32.totalorder %s17, 7
      %p87 = por %p85, %p86
      %p88 = scmp.ne.s32.totalorder %s80, %s83
      %p89 = scmp.eq.s32.totalorder %s17, 0
      %p90 = por %p88, %p89
      %p91 = scmp.ne.s32.totalorder %s80, %s83
      %p92 = scmp.eq.s32.totalorder %s22, 7
      %p93 = por %p91, %p92
      %p94 = scmp.ne.s32.totalorder %s83, %s84
      %p95 = scmp.eq.s32.totalorder %s22, 0
      %p96 = por %p94, %p95
      %p97 = scmp.ne.s32.totalorder %s83, %s84
      %p98 = scmp.eq.s32.totalorder %s23, 7
      %p99 = por %p97, %p98
      %p101 = scmp.ne.s32.totalorder %s84, %s100
      %p102 = scmp.eq.s32.totalorder %s23, 0
      %p103 = por %p101, %p102
      %s104 = ssub.s32 %s24, %s43
      %s105 = ssub.s32 %s25, %s39
      %s106 = sor.u32 %s104, %s105
      %p107 = scmp.eq.s32.totalorder %s106, 0
      %s109 = sadd.s32 %s108, 1
      %s110 = scalar_select %p107, %s108, %s109
      %p113 = pneg %p107
      %p114 = scmp.eq.s32.totalorder %s17, 7
      %p115 = por %p113, %p114
      %p116 = scmp.ne.s32.totalorder %s108, %s111
      %p117 = scmp.eq.s32.totalorder %s17, 0
      %p118 = por %p116, %p117
      %p119 = scmp.ne.s32.totalorder %s108, %s111
      %p120 = scmp.eq.s32.totalorder %s22, 7
      %p121 = por %p119, %p120
      %p122 = scmp.ne.s32.totalorder %s111, %s112
      %p123 = scmp.eq.s32.totalorder %s22, 0
      %p124 = por %p122, %p123
      %p125 = scmp.ne.s32.totalorder %s111, %s112
      %p126 = scmp.eq.s32.totalorder %s23, 7
      %p127 = por %p125, %p126
      %p129 = scmp.ne.s32.totalorder %s112, %s128
      %p130 = scmp.eq.s32.totalorder %s23, 0
      %p131 = por %p129, %p130
      %s132 = ssub.s32 %s24, %s43
      %s133 = ssub.s32 %s26, %s35
      %s134 = sor.u32 %s132, %s133
      %p135 = scmp.eq.s32.totalorder %s134, 0
      %s137 = sadd.s32 %s136, 1
      %s138 = scalar_select %p135, %s136, %s137
      %p141 = pneg %p135
      %p142 = scmp.eq.s32.totalorder %s17, 7
      %p143 = por %p141, %p142
      %p144 = scmp.ne.s32.totalorder %s136, %s139
      %p145 = scmp.eq.s32.totalorder %s17, 0
      %p146 = por %p144, %p145
      %p147 = scmp.ne.s32.totalorder %s136, %s139
      %p148 = scmp.eq.s32.totalorder %s22, 7
      %p149 = por %p147, %p148
      %p150 = scmp.ne.s32.totalorder %s139, %s140
      %p151 = scmp.eq.s32.totalorder %s22, 0
      %p152 = por %p150, %p151
      %p153 = scmp.ne.s32.totalorder %s139, %s140
      %p154 = scmp.eq.s32.totalorder %s23, 7
      %p155 = por %p153, %p154
      %p157 = scmp.ne.s32.totalorder %s140, %s156
      %p158 = scmp.eq.s32.totalorder %s23, 0
      %p159 = por %p157, %p158
      %s161 = sadd.s32 %s160, 1
      %p164 = scmp.eq.s32.totalorder %s17, 7
      %p165 = scmp.ne.s32.totalorder %s160, %s162
      %p166 = scmp.eq.s32.totalorder %s17, 0
      %p167 = por %p165, %p166
      %p168 = scmp.ne.s32.totalorder %s160, %s162
      %p169 = scmp.eq.s32.totalorder %s22, 7
      %p170 = por %p168, %p169
      %p171 = scmp.ne.s32.totalorder %s162, %s163
      %p172 = scmp.eq.s32.totalorder %s22, 0
      %p173 = por %p171, %p172
      %p174 = scmp.ne.s32.totalorder %s162, %s163
      %p175 = scmp.eq.s32.totalorder %s23, 7
      %p176 = por %p174, %p175
      %p178 = scmp.ne.s32.totalorder %s163, %s177
      %p179 = scmp.eq.s32.totalorder %s23, 0
      %p180 = por %p178, %p179
      %s182 = sadd.s32 %s181, 1
      %p185 = scmp.eq.s32.totalorder %s17, 7
      %p186 = scmp.ne.s32.totalorder %s181, %s183
      %p187 = scmp.eq.s32.totalorder %s17, 0
      %p188 = por %p186, %p187
      %p189 = scmp.ne.s32.totalorder %s181, %s183
      %p190 = scmp.eq.s32.totalorder %s22, 7
      %p191 = por %p189, %p190
      %p192 = scmp.ne.s32.totalorder %s183, %s184
      %p193 = scmp.eq.s32.totalorder %s22, 0
      %p194 = por %p192, %p193
      %p195 = scmp.ne.s32.totalorder %s183, %s184
      %p196 = scmp.eq.s32.totalorder %s23, 7
      %p197 = por %p195, %p196
      %p199 = scmp.ne.s32.totalorder %s184, %s198
      %p200 = scmp.eq.s32.totalorder %s23, 0
      %p201 = por %p199, %p200
      %s203 = sadd.s32 %s202, 1
      %p206 = scmp.eq.s32.totalorder %s17, 7
      %p207 = scmp.ne.s32.totalorder %s202, %s204
      %p208 = scmp.eq.s32.totalorder %s17, 0
      %p209 = por %p207, %p208
      %p210 = scmp.ne.s32.totalorder %s202, %s204
      %p211 = scmp.eq.s32.totalorder %s22, 7
      %p212 = por %p210, %p211
      %p213 = scmp.ne.s32.totalorder %s204, %s205
      %p214 = scmp.eq.s32.totalorder %s22, 0
      %p215 = por %p213, %p214
      %p216 = scmp.ne.s32.totalorder %s204, %s205
      %p217 = scmp.eq.s32.totalorder %s23, 7
      %p218 = por %p216, %p217
      %p220 = scmp.ne.s32.totalorder %s205, %s219
      %p221 = scmp.eq.s32.totalorder %s23, 0
      %p222 = por %p220, %p221
      %s224 = sadd.s32 %s223, 1
      %p227 = scmp.eq.s32.totalorder %s17, 7
      %p228 = scmp.ne.s32.totalorder %s223, %s225
      %p229 = scmp.eq.s32.totalorder %s17, 0
      %p230 = por %p228, %p229
      %p231 = scmp.ne.s32.totalorder %s223, %s225
      %p232 = scmp.eq.s32.totalorder %s22, 7
      %p233 = por %p231, %p232
      %p234 = scmp.ne.s32.totalorder %s225, %s226
      %p235 = scmp.eq.s32.totalorder %s22, 0
      %p236 = por %p234, %p235
      %p237 = scmp.ne.s32.totalorder %s225, %s226
      %p238 = scmp.eq.s32.totalorder %s23, 7
      %p239 = por %p237, %p238
      %p241 = scmp.ne.s32.totalorder %s226, %s240
      %p242 = scmp.eq.s32.totalorder %s23, 0
      %p243 = por %p241, %p242
      %s244 = ssub.s32 %s24, %s43
      %s245 = ssub.s32 %s25, %s39
      %s246 = sor.u32 %s244, %s245
      %s247 = ssub.s32 %s26, %s35
      %s248 = sor.u32 %s246, %s247
      %p249 = scmp.eq.s32.totalorder %s248, 0
      %s251 = sadd.s32 %s250, 1
      %s252 = scalar_select %p249, %s250, %s251
      %p255 = pneg %p249
      %p256 = scmp.eq.s32.totalorder %s17, 7
      %p257 = por %p255, %p256
      %p258 = scmp.ne.s32.totalorder %s250, %s253
      %p259 = scmp.eq.s32.totalorder %s17, 0
      %p260 = por %p258, %p259
      %p261 = scmp.ne.s32.totalorder %s250, %s253
      %p262 = scmp.eq.s32.totalorder %s22, 7
      %p263 = por %p261, %p262
      %p264 = scmp.ne.s32.totalorder %s253, %s254
      %p265 = scmp.eq.s32.totalorder %s22, 0
      %p266 = por %p264, %p265
      %p267 = scmp.ne.s32.totalorder %s253, %s254
      %p268 = scmp.eq.s32.totalorder %s23, 7
      %p269 = por %p267, %p268
      %p271 = scmp.ne.s32.totalorder %s254, %s270
      %p272 = scmp.eq.s32.totalorder %s23, 0
      %p273 = por %p271, %p272
      %p274 = scmp.le.s32.totalorder 1, %s17
      %p275 = scmp.lt.s32.totalorder %s17, 9
      %p276 = pnand %p274, %p275
      %p277 = pneg %p276
      // Predicated region
      $region9: #{edge_mlp.1} parent=5 // pred_check
        _
      $region10: #{edge_mlp.1} parent=5 // pred_check_branch
        %279 = sbr.rel (%p276) target = $region12
      $region11: #{edge_mlp.1} parent=5 // pred_region
        %s280 = ssub.s32 %s17, 1
        // Predicated region
        $region13: #{edge_mlp.1} parent=11 // pred_check
          %p281 = pneg %p173
        $region14: #{edge_mlp.1} parent=11 // pred_check_branch
          %283 = sbr.rel (%p281) target = $region16
        $region15: #{edge_mlp.1} parent=11 // pred_region
          _
        $region16: #{edge_mlp.1} parent=11 // pred_fallthru
          _
        // Predicated region
        $region17: #{edge_mlp.1} parent=11 // pred_check
          %p284 = pneg %p194
        $region18: #{edge_mlp.1} parent=11 // pred_check_branch
          %286 = sbr.rel (%p284) target = $region20
        $region19: #{edge_mlp.1} parent=11 // pred_region
          _
        $region20: #{edge_mlp.1} parent=11 // pred_fallthru
          _
        // Predicated region
        $region21: #{edge_mlp.1} parent=11 // pred_check
          %p287 = pneg %p215
        $region22: #{edge_mlp.1} parent=11 // pred_check_branch
          %289 = sbr.rel (%p287) target = $region24
        $region23: #{edge_mlp.1} parent=11 // pred_region
          _
        $region24: #{edge_mlp.1} parent=11 // pred_fallthru
          _
        // Predicated region
        $region25: #{edge_mlp.1} parent=11 // pred_check
          %p290 = pneg %p236
        $region26: #{edge_mlp.1} parent=11 // pred_check_branch
          %292 = sbr.rel (%p290) target = $region28
        $region27: #{edge_mlp.1} parent=11 // pred_region
          _
        $region28: #{edge_mlp.1} parent=11 // pred_fallthru
          _
      $region12: #{edge_mlp.1} parent=5 // pred_fallthru
        _
      %p293 = scmp.lt.s32.totalorder %s17, 8
      // Predicated region
      $region29: #{edge_mlp.1} parent=5 // pred_check
        %p294 = pneg %p293
      $region30: #{edge_mlp.1} parent=5 // pred_check_branch
        %296 = sbr.rel (%p294) target = $region32
      $region31: #{edge_mlp.1} parent=5 // pred_region
        // Predicated region
        $region33: #{edge_mlp.1} parent=31 // pred_check
          %p297 = pneg %p60
        $region34: #{edge_mlp.1} parent=31 // pred_check_branch
          %299 = sbr.rel (%p297) target = $region36
        $region35: #{edge_mlp.1} parent=31 // pred_region
          %s300 = sand.u32 %s50, 1
          %s301 = sand.u32 %s50, 1
          %s302 = smul.addr %s301, 256
          %s303 = scalar_lea.vmem [#allocation2], %s302
          %s304 = smul.u32 16, %s25
          %s305 = smul.u32 2, %s26
          %s306 = smul.addr %s304, 4
          %s307 = sadd.s32 %s305, %s306
          %s308 = smul.addr %s24, 128
          %s309 = sadd.s32 %s307, %s308
          %s310 = smul.addr %s309, 8
          %s311 = scalar_lea.vmem %s0, %s310
          // Predicated region
          $region37: #{edge_mlp.1} parent=35 // pred_check
            _
          $region38: #{edge_mlp.1} parent=35 // pred_check_branch
            %313 = sbr.rel (0) target = $region40
          $region39: #{edge_mlp.1} parent=35 // pred_region
            // Predicated region
            $region41: #{edge_mlp.1} parent=39 // pred_check
              _
            $region42: #{edge_mlp.1} parent=39 // pred_check_branch
              %315 = sbr.rel (0) target = $region44
            $region43: #{edge_mlp.1} parent=39 // pred_region
              // Predicated region
              $region56: #{edge_mlp.1} parent=43 // pred_check
                _
              $region57: #{edge_mlp.1} parent=43 // pred_check_branch
                %392 = sbr.rel (0) target = $region59
              $region58: #{edge_mlp.1} parent=43 // pred_region
                loop: start=0, step=1, limit=1
                $region60: #{edge_mlp.1} parent=58 // loop_pre_header
                  _
                $region61: #{edge_mlp.1} parent=58 // loop_header
                  %s394 = sphi 0, %s398
                  %p395 = scmp.ge.s32.totalorder %s394, 1
                  %s399 = sphi %s311, %s311
                  %s400 = sphi %s303, %s303
                $region62: #{edge_mlp.1} parent=58 // loop_header_branch
                  %397 = sbr.rel (%p395) target = $region66
                $region63: #{edge_mlp.1} parent=58 // loop_body
                  %v401 = vld [vmem:[%s399] sm:$0xff]
                  %402 = vst [vmem:[%s400] sm:$0xff] %v401
                  %v403 = vld [vmem:[%s399 + $0x8] sm:$0xff]
                  %404 = vst [vmem:[%s400 + $0x8] sm:$0xff] %v403
                  %v405 = vld [vmem:[%s399 + $0x20] sm:$0xff]
                  %406 = vst [vmem:[%s400 + $0x10] sm:$0xff] %v405
                  %v407 = vld [vmem:[%s399 + $0x28] sm:$0xff]
                  %408 = vst [vmem:[%s400 + $0x18] sm:$0xff] %v407
                  %v409 = vld [vmem:[%s399 + $0x40] sm:$0xff]
                  %410 = vst [vmem:[%s400 + $0x20] sm:$0xff] %v409
                  %v411 = vld [vmem:[%s399 + $0x48] sm:$0xff]
                  %412 = vst [vmem:[%s400 + $0x28] sm:$0xff] %v411
                  %v413 = vld [vmem:[%s399 + $0x60] sm:$0xff]
                  %414 = vst [vmem:[%s400 + $0x30] sm:$0xff] %v413
                  %v415 = vld [vmem:[%s399 + $0x68] sm:$0xff]
                  %416 = vst [vmem:[%s400 + $0x38] sm:$0xff] %v415
                  %v417 = vld [vmem:[%s399 + $0x80] sm:$0xff]
                  %418 = vst [vmem:[%s400 + $0x40] sm:$0xff] %v417
                  %v419 = vld [vmem:[%s399 + $0x88] sm:$0xff]
                  %420 = vst [vmem:[%s400 + $0x48] sm:$0xff] %v419
                  %v421 = vld [vmem:[%s399 + $0xa0] sm:$0xff]
                  %422 = vst [vmem:[%s400 + $0x50] sm:$0xff] %v421
                  %v423 = vld [vmem:[%s399 + $0xa8] sm:$0xff]
                  %424 = vst [vmem:[%s400 + $0x58] sm:$0xff] %v423
                  %v425 = vld [vmem:[%s399 + $0xc0] sm:$0xff]
                  %426 = vst [vmem:[%s400 + $0x60] sm:$0xff] %v425
                  %v427 = vld [vmem:[%s399 + $0xc8] sm:$0xff]
                  %428 = vst [vmem:[%s400 + $0x68] sm:$0xff] %v427
                  %v429 = vld [vmem:[%s399 + $0xe0] sm:$0xff]
                  %430 = vst [vmem:[%s400 + $0x70] sm:$0xff] %v429
                  %v431 = vld [vmem:[%s399 + $0xe8] sm:$0xff]
                  %432 = vst [vmem:[%s400 + $0x78] sm:$0xff] %v431
                  %v433 = vld [vmem:[%s399 + $0x100] sm:$0xff]
                  %434 = vst [vmem:[%s400 + $0x80] sm:$0xff] %v433
                  %v435 = vld [vmem:[%s399 + $0x108] sm:$0xff]
                  %436 = vst [vmem:[%s400 + $0x88] sm:$0xff] %v435
                  %v437 = vld [vmem:[%s399 + $0x120] sm:$0xff]
                  %438 = vst [vmem:[%s400 + $0x90] sm:$0xff] %v437
                  %v439 = vld [vmem:[%s399 + $0x128] sm:$0xff]
                  %440 = vst [vmem:[%s400 + $0x98] sm:$0xff] %v439
                  %v441 = vld [vmem:[%s399 + $0x140] sm:$0xff]
                  %442 = vst [vmem:[%s400 + $0xa0] sm:$0xff] %v441
                  %v443 = vld [vmem:[%s399 + $0x148] sm:$0xff]
                  %444 = vst [vmem:[%s400 + $0xa8] sm:$0xff] %v443
                  %v445 = vld [vmem:[%s399 + $0x160] sm:$0xff]
                  %446 = vst [vmem:[%s400 + $0xb0] sm:$0xff] %v445
                  %v447 = vld [vmem:[%s399 + $0x168] sm:$0xff]
                  %448 = vst [vmem:[%s400 + $0xb8] sm:$0xff] %v447
                  %v449 = vld [vmem:[%s399 + $0x180] sm:$0xff]
                  %450 = vst [vmem:[%s400 + $0xc0] sm:$0xff] %v449
                  %v451 = vld [vmem:[%s399 + $0x188] sm:$0xff]
                  %452 = vst [vmem:[%s400 + $0xc8] sm:$0xff] %v451
                  %v453 = vld [vmem:[%s399 + $0x1a0] sm:$0xff]
                  %454 = vst [vmem:[%s400 + $0xd0] sm:$0xff] %v453
                  %v455 = vld [vmem:[%s399 + $0x1a8] sm:$0xff]
                  %456 = vst [vmem:[%s400 + $0xd8] sm:$0xff] %v455
                  %v457 = vld [vmem:[%s399 + $0x1c0] sm:$0xff]
                  %458 = vst [vmem:[%s400 + $0xe0] sm:$0xff] %v457
                  %v459 = vld [vmem:[%s399 + $0x1c8] sm:$0xff]
                  %460 = vst [vmem:[%s400 + $0xe8] sm:$0xff] %v459
                  %v461 = vld [vmem:[%s399 + $0x1e0] sm:$0xff]
                  %462 = vst [vmem:[%s400 + $0xf0] sm:$0xff] %v461
                  %v463 = vld [vmem:[%s399 + $0x1e8] sm:$0xff]
                  %464 = vst [vmem:[%s400 + $0xf8] sm:$0xff] %v463
                $region64: #{edge_mlp.1} parent=58 // loop_footer
                  %s398 = sadd.s32 1, %s394
                $region65: #{edge_mlp.1} parent=58 // loop_footer_branch
                  %393 = sbr.rel target = $region61
                $region66: #{edge_mlp.1} parent=58 // loop_exit
                  _
              $region59: #{edge_mlp.1} parent=43 // pred_fallthru
                _
              // Predicated region
              $region67: #{edge_mlp.1} parent=43 // pred_check
                _
              $region68: #{edge_mlp.1} parent=43 // pred_check_branch
                %466 = sbr.rel target = $region70
              $region69: #{edge_mlp.1} parent=43 // pred_region
                _
              $region70: #{edge_mlp.1} parent=43 // pred_fallthru
                _
            $region44: #{edge_mlp.1} parent=39 // pred_fallthru
              _
            // Predicated region
            $region45: #{edge_mlp.1} parent=39 // pred_check
              _
            $region46: #{edge_mlp.1} parent=39 // pred_check_branch
              %317 = sbr.rel target = $region48
            $region47: #{edge_mlp.1} parent=39 // pred_region
              loop: start=0, step=1, limit=1
              $region49: #{edge_mlp.1} parent=47 // loop_pre_header
                _
              $region50: #{edge_mlp.1} parent=47 // loop_header
                %s320 = sphi 0, %s324
                %p321 = scmp.ge.s32.totalorder %s320, 1
                %s325 = sphi %s311, %s311
                %s326 = sphi %s303, %s303
              $region51: #{edge_mlp.1} parent=47 // loop_header_branch
                %323 = sbr.rel (%p321) target = $region55
              $region52: #{edge_mlp.1} parent=47 // loop_body
                %v327 = vld [vmem:[%s325] sm:$0xff]
                %328 = vst [vmem:[%s326] sm:$0xff] %v327
                %v329 = vld [vmem:[%s325 + $0x8] sm:$0xff]
                %330 = vst [vmem:[%s326 + $0x8] sm:$0xff] %v329
                %v331 = vld [vmem:[%s325 + $0x20] sm:$0xff]
                %332 = vst [vmem:[%s326 + $0x10] sm:$0xff] %v331
                %v333 = vld [vmem:[%s325 + $0x28] sm:$0xff]
                %334 = vst [vmem:[%s326 + $0x18] sm:$0xff] %v333
                %v335 = vld [vmem:[%s325 + $0x40] sm:$0xff]
                %336 = vst [vmem:[%s326 + $0x20] sm:$0xff] %v335
                %v337 = vld [vmem:[%s325 + $0x48] sm:$0xff]
                %338 = vst [vmem:[%s326 + $0x28] sm:$0xff] %v337
                %v339 = vld [vmem:[%s325 + $0x60] sm:$0xff]
                %340 = vst [vmem:[%s326 + $0x30] sm:$0xff] %v339
                %v341 = vld [vmem:[%s325 + $0x68] sm:$0xff]
                %342 = vst [vmem:[%s326 + $0x38] sm:$0xff] %v341
                %v343 = vld [vmem:[%s325 + $0x80] sm:$0xff]
                %344 = vst [vmem:[%s326 + $0x40] sm:$0xff] %v343
                %v345 = vld [vmem:[%s325 + $0x88] sm:$0xff]
                %346 = vst [vmem:[%s326 + $0x48] sm:$0xff] %v345
                %v347 = vld [vmem:[%s325 + $0xa0] sm:$0xff]
                %348 = vst [vmem:[%s326 + $0x50] sm:$0xff] %v347
                %v349 = vld [vmem:[%s325 + $0xa8] sm:$0xff]
                %350 = vst [vmem:[%s326 + $0x58] sm:$0xff] %v349
                %v351 = vld [vmem:[%s325 + $0xc0] sm:$0xff]
                %352 = vst [vmem:[%s326 + $0x60] sm:$0xff] %v351
                %v353 = vld [vmem:[%s325 + $0xc8] sm:$0xff]
                %354 = vst [vmem:[%s326 + $0x68] sm:$0xff] %v353
                %v355 = vld [vmem:[%s325 + $0xe0] sm:$0xff]
                %356 = vst [vmem:[%s326 + $0x70] sm:$0xff] %v355
                %v357 = vld [vmem:[%s325 + $0xe8] sm:$0xff]
                %358 = vst [vmem:[%s326 + $0x78] sm:$0xff] %v357
                %v359 = vld [vmem:[%s325 + $0x100] sm:$0xff]
                %360 = vst [vmem:[%s326 + $0x80] sm:$0xff] %v359
                %v361 = vld [vmem:[%s325 + $0x108] sm:$0xff]
                %362 = vst [vmem:[%s326 + $0x88] sm:$0xff] %v361
                %v363 = vld [vmem:[%s325 + $0x120] sm:$0xff]
                %364 = vst [vmem:[%s326 + $0x90] sm:$0xff] %v363
                %v365 = vld [vmem:[%s325 + $0x128] sm:$0xff]
                %366 = vst [vmem:[%s326 + $0x98] sm:$0xff] %v365
                %v367 = vld [vmem:[%s325 + $0x140] sm:$0xff]
                %368 = vst [vmem:[%s326 + $0xa0] sm:$0xff] %v367
                %v369 = vld [vmem:[%s325 + $0x148] sm:$0xff]
                %370 = vst [vmem:[%s326 + $0xa8] sm:$0xff] %v369
                %v371 = vld [vmem:[%s325 + $0x160] sm:$0xff]
                %372 = vst [vmem:[%s326 + $0xb0] sm:$0xff] %v371
                %v373 = vld [vmem:[%s325 + $0x168] sm:$0xff]
                %374 = vst [vmem:[%s326 + $0xb8] sm:$0xff] %v373
                %v375 = vld [vmem:[%s325 + $0x180] sm:$0xff]
                %376 = vst [vmem:[%s326 + $0xc0] sm:$0xff] %v375
                %v377 = vld [vmem:[%s325 + $0x188] sm:$0xff]
                %378 = vst [vmem:[%s326 + $0xc8] sm:$0xff] %v377
                %v379 = vld [vmem:[%s325 + $0x1a0] sm:$0xff]
                %380 = vst [vmem:[%s326 + $0xd0] sm:$0xff] %v379
                %v381 = vld [vmem:[%s325 + $0x1a8] sm:$0xff]
                %382 = vst [vmem:[%s326 + $0xd8] sm:$0xff] %v381
                %v383 = vld [vmem:[%s325 + $0x1c0] sm:$0xff]
                %384 = vst [vmem:[%s326 + $0xe0] sm:$0xff] %v383
                %v385 = vld [vmem:[%s325 + $0x1c8] sm:$0xff]
                %386 = vst [vmem:[%s326 + $0xe8] sm:$0xff] %v385
                %v387 = vld [vmem:[%s325 + $0x1e0] sm:$0xff]
                %388 = vst [vmem:[%s326 + $0xf0] sm:$0xff] %v387
                %v389 = vld [vmem:[%s325 + $0x1e8] sm:$0xff]
                %390 = vst [vmem:[%s326 + $0xf8] sm:$0xff] %v389
              $region53: #{edge_mlp.1} parent=47 // loop_footer
                %s324 = sadd.s32 1, %s320
              $region54: #{edge_mlp.1} parent=47 // loop_footer_branch
                %319 = sbr.rel target = $region50
              $region55: #{edge_mlp.1} parent=47 // loop_exit
                _
            $region48: #{edge_mlp.1} parent=39 // pred_fallthru
              _
          $region40: #{edge_mlp.1} parent=35 // pred_fallthru
            _
          %467 = vnop
        $region36: #{edge_mlp.1} parent=31 // pred_fallthru
          _
        // Predicated region
        $region71: #{edge_mlp.1} parent=31 // pred_check
          %p468 = pneg %p90
        $region72: #{edge_mlp.1} parent=31 // pred_check_branch
          %470 = sbr.rel (%p468) target = $region74
        $region73: #{edge_mlp.1} parent=31 // pred_region
          %s471 = sand.u32 %s80, 1
          %s472 = sand.u32 %s80, 1
          %s473 = smul.addr %s472, 256
          %s474 = scalar_lea.vmem [#allocation3], %s473
          %s475 = smul.u32 16, %s26
          %s476 = smul.u32 2, %s25
          %s477 = smul.addr %s475, 4
          %s478 = sadd.s32 %s476, %s477
          %s479 = smul.addr %s24, 128
          %s480 = sadd.s32 %s478, %s479
          %s481 = smul.addr %s480, 8
          %s482 = scalar_lea.vmem %s1, %s481
          // Predicated region
          $region75: #{edge_mlp.1} parent=73 // pred_check
            _
          $region76: #{edge_mlp.1} parent=73 // pred_check_branch
            %484 = sbr.rel (0) target = $region78
          $region77: #{edge_mlp.1} parent=73 // pred_region
            // Predicated region
            $region79: #{edge_mlp.1} parent=77 // pred_check
              _
            $region80: #{edge_mlp.1} parent=77 // pred_check_branch
              %486 = sbr.rel (0) target = $region82
            $region81: #{edge_mlp.1} parent=77 // pred_region
              // Predicated region
              $region94: #{edge_mlp.1} parent=81 // pred_check
                _
              $region95: #{edge_mlp.1} parent=81 // pred_check_branch
                %563 = sbr.rel (0) target = $region97
              $region96: #{edge_mlp.1} parent=81 // pred_region
                loop: start=0, step=1, limit=1
                $region98: #{edge_mlp.1} parent=96 // loop_pre_header
                  _
                $region99: #{edge_mlp.1} parent=96 // loop_header
                  %s565 = sphi 0, %s569
                  %p566 = scmp.ge.s32.totalorder %s565, 1
                  %s570 = sphi %s482, %s482
                  %s571 = sphi %s474, %s474
                $region100: #{edge_mlp.1} parent=96 // loop_header_branch
                  %568 = sbr.rel (%p566) target = $region104
                $region101: #{edge_mlp.1} parent=96 // loop_body
                  %v572 = vld [vmem:[%s570] sm:$0xff]
                  %573 = vst [vmem:[%s571] sm:$0xff] %v572
                  %v574 = vld [vmem:[%s570 + $0x8] sm:$0xff]
                  %575 = vst [vmem:[%s571 + $0x8] sm:$0xff] %v574
                  %v576 = vld [vmem:[%s570 + $0x20] sm:$0xff]
                  %577 = vst [vmem:[%s571 + $0x10] sm:$0xff] %v576
                  %v578 = vld [vmem:[%s570 + $0x28] sm:$0xff]
                  %579 = vst [vmem:[%s571 + $0x18] sm:$0xff] %v578
                  %v580 = vld [vmem:[%s570 + $0x40] sm:$0xff]
                  %581 = vst [vmem:[%s571 + $0x20] sm:$0xff] %v580
                  %v582 = vld [vmem:[%s570 + $0x48] sm:$0xff]
                  %583 = vst [vmem:[%s571 + $0x28] sm:$0xff] %v582
                  %v584 = vld [vmem:[%s570 + $0x60] sm:$0xff]
                  %585 = vst [vmem:[%s571 + $0x30] sm:$0xff] %v584
                  %v586 = vld [vmem:[%s570 + $0x68] sm:$0xff]
                  %587 = vst [vmem:[%s571 + $0x38] sm:$0xff] %v586
                  %v588 = vld [vmem:[%s570 + $0x80] sm:$0xff]
                  %589 = vst [vmem:[%s571 + $0x40] sm:$0xff] %v588
                  %v590 = vld [vmem:[%s570 + $0x88] sm:$0xff]
                  %591 = vst [vmem:[%s571 + $0x48] sm:$0xff] %v590
                  %v592 = vld [vmem:[%s570 + $0xa0] sm:$0xff]
                  %593 = vst [vmem:[%s571 + $0x50] sm:$0xff] %v592
                  %v594 = vld [vmem:[%s570 + $0xa8] sm:$0xff]
                  %595 = vst [vmem:[%s571 + $0x58] sm:$0xff] %v594
                  %v596 = vld [vmem:[%s570 + $0xc0] sm:$0xff]
                  %597 = vst [vmem:[%s571 + $0x60] sm:$0xff] %v596
                  %v598 = vld [vmem:[%s570 + $0xc8] sm:$0xff]
                  %599 = vst [vmem:[%s571 + $0x68] sm:$0xff] %v598
                  %v600 = vld [vmem:[%s570 + $0xe0] sm:$0xff]
                  %601 = vst [vmem:[%s571 + $0x70] sm:$0xff] %v600
                  %v602 = vld [vmem:[%s570 + $0xe8] sm:$0xff]
                  %603 = vst [vmem:[%s571 + $0x78] sm:$0xff] %v602
                  %v604 = vld [vmem:[%s570 + $0x100] sm:$0xff]
                  %605 = vst [vmem:[%s571 + $0x80] sm:$0xff] %v604
                  %v606 = vld [vmem:[%s570 + $0x108] sm:$0xff]
                  %607 = vst [vmem:[%s571 + $0x88] sm:$0xff] %v606
                  %v608 = vld [vmem:[%s570 + $0x120] sm:$0xff]
                  %609 = vst [vmem:[%s571 + $0x90] sm:$0xff] %v608
                  %v610 = vld [vmem:[%s570 + $0x128] sm:$0xff]
                  %611 = vst [vmem:[%s571 + $0x98] sm:$0xff] %v610
                  %v612 = vld [vmem:[%s570 + $0x140] sm:$0xff]
                  %613 = vst [vmem:[%s571 + $0xa0] sm:$0xff] %v612
                  %v614 = vld [vmem:[%s570 + $0x148] sm:$0xff]
                  %615 = vst [vmem:[%s571 + $0xa8] sm:$0xff] %v614
                  %v616 = vld [vmem:[%s570 + $0x160] sm:$0xff]
                  %617 = vst [vmem:[%s571 + $0xb0] sm:$0xff] %v616
                  %v618 = vld [vmem:[%s570 + $0x168] sm:$0xff]
                  %619 = vst [vmem:[%s571 + $0xb8] sm:$0xff] %v618
                  %v620 = vld [vmem:[%s570 + $0x180] sm:$0xff]
                  %621 = vst [vmem:[%s571 + $0xc0] sm:$0xff] %v620
                  %v622 = vld [vmem:[%s570 + $0x188] sm:$0xff]
                  %623 = vst [vmem:[%s571 + $0xc8] sm:$0xff] %v622
                  %v624 = vld [vmem:[%s570 + $0x1a0] sm:$0xff]
                  %625 = vst [vmem:[%s571 + $0xd0] sm:$0xff] %v624
                  %v626 = vld [vmem:[%s570 + $0x1a8] sm:$0xff]
                  %627 = vst [vmem:[%s571 + $0xd8] sm:$0xff] %v626
                  %v628 = vld [vmem:[%s570 + $0x1c0] sm:$0xff]
                  %629 = vst [vmem:[%s571 + $0xe0] sm:$0xff] %v628
                  %v630 = vld [vmem:[%s570 + $0x1c8] sm:$0xff]
                  %631 = vst [vmem:[%s571 + $0xe8] sm:$0xff] %v630
                  %v632 = vld [vmem:[%s570 + $0x1e0] sm:$0xff]
                  %633 = vst [vmem:[%s571 + $0xf0] sm:$0xff] %v632
                  %v634 = vld [vmem:[%s570 + $0x1e8] sm:$0xff]
                  %635 = vst [vmem:[%s571 + $0xf8] sm:$0xff] %v634
                $region102: #{edge_mlp.1} parent=96 // loop_footer
                  %s569 = sadd.s32 1, %s565
                $region103: #{edge_mlp.1} parent=96 // loop_footer_branch
                  %564 = sbr.rel target = $region99
                $region104: #{edge_mlp.1} parent=96 // loop_exit
                  _
              $region97: #{edge_mlp.1} parent=81 // pred_fallthru
                _
              // Predicated region
              $region105: #{edge_mlp.1} parent=81 // pred_check
                _
              $region106: #{edge_mlp.1} parent=81 // pred_check_branch
                %637 = sbr.rel target = $region108
              $region107: #{edge_mlp.1} parent=81 // pred_region
                _
              $region108: #{edge_mlp.1} parent=81 // pred_fallthru
                _
            $region82: #{edge_mlp.1} parent=77 // pred_fallthru
              _
            // Predicated region
            $region83: #{edge_mlp.1} parent=77 // pred_check
              _
            $region84: #{edge_mlp.1} parent=77 // pred_check_branch
              %488 = sbr.rel target = $region86
            $region85: #{edge_mlp.1} parent=77 // pred_region
              loop: start=0, step=1, limit=1
              $region87: #{edge_mlp.1} parent=85 // loop_pre_header
                _
              $region88: #{edge_mlp.1} parent=85 // loop_header
                %s491 = sphi 0, %s495
                %p492 = scmp.ge.s32.totalorder %s491, 1
                %s496 = sphi %s482, %s482
                %s497 = sphi %s474, %s474
              $region89: #{edge_mlp.1} parent=85 // loop_header_branch
                %494 = sbr.rel (%p492) target = $region93
              $region90: #{edge_mlp.1} parent=85 // loop_body
                %v498 = vld [vmem:[%s496] sm:$0xff]
                %499 = vst [vmem:[%s497] sm:$0xff] %v498
                %v500 = vld [vmem:[%s496 + $0x8] sm:$0xff]
                %501 = vst [vmem:[%s497 + $0x8] sm:$0xff] %v500
                %v502 = vld [vmem:[%s496 + $0x20] sm:$0xff]
                %503 = vst [vmem:[%s497 + $0x10] sm:$0xff] %v502
                %v504 = vld [vmem:[%s496 + $0x28] sm:$0xff]
                %505 = vst [vmem:[%s497 + $0x18] sm:$0xff] %v504
                %v506 = vld [vmem:[%s496 + $0x40] sm:$0xff]
                %507 = vst [vmem:[%s497 + $0x20] sm:$0xff] %v506
                %v508 = vld [vmem:[%s496 + $0x48] sm:$0xff]
                %509 = vst [vmem:[%s497 + $0x28] sm:$0xff] %v508
                %v510 = vld [vmem:[%s496 + $0x60] sm:$0xff]
                %511 = vst [vmem:[%s497 + $0x30] sm:$0xff] %v510
                %v512 = vld [vmem:[%s496 + $0x68] sm:$0xff]
                %513 = vst [vmem:[%s497 + $0x38] sm:$0xff] %v512
                %v514 = vld [vmem:[%s496 + $0x80] sm:$0xff]
                %515 = vst [vmem:[%s497 + $0x40] sm:$0xff] %v514
                %v516 = vld [vmem:[%s496 + $0x88] sm:$0xff]
                %517 = vst [vmem:[%s497 + $0x48] sm:$0xff] %v516
                %v518 = vld [vmem:[%s496 + $0xa0] sm:$0xff]
                %519 = vst [vmem:[%s497 + $0x50] sm:$0xff] %v518
                %v520 = vld [vmem:[%s496 + $0xa8] sm:$0xff]
                %521 = vst [vmem:[%s497 + $0x58] sm:$0xff] %v520
                %v522 = vld [vmem:[%s496 + $0xc0] sm:$0xff]
                %523 = vst [vmem:[%s497 + $0x60] sm:$0xff] %v522
                %v524 = vld [vmem:[%s496 + $0xc8] sm:$0xff]
                %525 = vst [vmem:[%s497 + $0x68] sm:$0xff] %v524
                %v526 = vld [vmem:[%s496 + $0xe0] sm:$0xff]
                %527 = vst [vmem:[%s497 + $0x70] sm:$0xff] %v526
                %v528 = vld [vmem:[%s496 + $0xe8] sm:$0xff]
                %529 = vst [vmem:[%s497 + $0x78] sm:$0xff] %v528
                %v530 = vld [vmem:[%s496 + $0x100] sm:$0xff]
                %531 = vst [vmem:[%s497 + $0x80] sm:$0xff] %v530
                %v532 = vld [vmem:[%s496 + $0x108] sm:$0xff]
                %533 = vst [vmem:[%s497 + $0x88] sm:$0xff] %v532
                %v534 = vld [vmem:[%s496 + $0x120] sm:$0xff]
                %535 = vst [vmem:[%s497 + $0x90] sm:$0xff] %v534
                %v536 = vld [vmem:[%s496 + $0x128] sm:$0xff]
                %537 = vst [vmem:[%s497 + $0x98] sm:$0xff] %v536
                %v538 = vld [vmem:[%s496 + $0x140] sm:$0xff]
                %539 = vst [vmem:[%s497 + $0xa0] sm:$0xff] %v538
                %v540 = vld [vmem:[%s496 + $0x148] sm:$0xff]
                %541 = vst [vmem:[%s497 + $0xa8] sm:$0xff] %v540
                %v542 = vld [vmem:[%s496 + $0x160] sm:$0xff]
                %543 = vst [vmem:[%s497 + $0xb0] sm:$0xff] %v542
                %v544 = vld [vmem:[%s496 + $0x168] sm:$0xff]
                %545 = vst [vmem:[%s497 + $0xb8] sm:$0xff] %v544
                %v546 = vld [vmem:[%s496 + $0x180] sm:$0xff]
                %547 = vst [vmem:[%s497 + $0xc0] sm:$0xff] %v546
                %v548 = vld [vmem:[%s496 + $0x188] sm:$0xff]
                %549 = vst [vmem:[%s497 + $0xc8] sm:$0xff] %v548
                %v550 = vld [vmem:[%s496 + $0x1a0] sm:$0xff]
                %551 = vst [vmem:[%s497 + $0xd0] sm:$0xff] %v550
                %v552 = vld [vmem:[%s496 + $0x1a8] sm:$0xff]
                %553 = vst [vmem:[%s497 + $0xd8] sm:$0xff] %v552
                %v554 = vld [vmem:[%s496 + $0x1c0] sm:$0xff]
                %555 = vst [vmem:[%s497 + $0xe0] sm:$0xff] %v554
                %v556 = vld [vmem:[%s496 + $0x1c8] sm:$0xff]
                %557 = vst [vmem:[%s497 + $0xe8] sm:$0xff] %v556
                %v558 = vld [vmem:[%s496 + $0x1e0] sm:$0xff]
                %559 = vst [vmem:[%s497 + $0xf0] sm:$0xff] %v558
                %v560 = vld [vmem:[%s496 + $0x1e8] sm:$0xff]
                %561 = vst [vmem:[%s497 + $0xf8] sm:$0xff] %v560
              $region91: #{edge_mlp.1} parent=85 // loop_footer
                %s495 = sadd.s32 1, %s491
              $region92: #{edge_mlp.1} parent=85 // loop_footer_branch
                %490 = sbr.rel target = $region88
              $region93: #{edge_mlp.1} parent=85 // loop_exit
                _
            $region86: #{edge_mlp.1} parent=77 // pred_fallthru
              _
          $region78: #{edge_mlp.1} parent=73 // pred_fallthru
            _
          %638 = vnop
        $region74: #{edge_mlp.1} parent=31 // pred_fallthru
          _
        // Predicated region
        $region109: #{edge_mlp.1} parent=31 // pred_check
          %p639 = pneg %p118
        $region110: #{edge_mlp.1} parent=31 // pred_check_branch
          %641 = sbr.rel (%p639) target = $region112
        $region111: #{edge_mlp.1} parent=31 // pred_region
          %s642 = smul.u32 2, %s25
          %p643 = scmp.lt.s32.totalorder %s24, 1
          %s644 = scalar_select %p643, %s24, 1
          %p645 = scmp.lt.s32.totalorder %s642, 3
          %s646 = scalar_select %p645, %s642, 3
          %s647 = smul.addr %s644, 4
          %s648 = sadd.s32 %s646, %s647
          %s649 = smul.addr %s648, 8
          %s650 = scalar_lea.vmem %s2, %s649
          %s651 = smul.u32 2, %s25
        $region112: #{edge_mlp.1} parent=31 // pred_fallthru
          _
        // Predicated region
        $region113: #{edge_mlp.1} parent=31 // pred_check
          %p652 = pneg %p146
        $region114: #{edge_mlp.1} parent=31 // pred_check_branch
          %654 = sbr.rel (%p652) target = $region116
        $region115: #{edge_mlp.1} parent=31 // pred_region
          %s655 = smul.u32 2, %s26
          %p656 = scmp.lt.s32.totalorder %s24, 1
          %s657 = scalar_select %p656, %s24, 1
          %p658 = scmp.lt.s32.totalorder %s655, 3
          %s659 = scalar_select %p658, %s655, 3
          %s660 = smul.addr %s657, 4
          %s661 = sadd.s32 %s659, %s660
          %s662 = smul.addr %s661, 8
          %s663 = scalar_lea.vmem %s3, %s662
          %s664 = smul.u32 2, %s26
        $region116: #{edge_mlp.1} parent=31 // pred_fallthru
          _
      $region32: #{edge_mlp.1} parent=5 // pred_fallthru
        _
      %p665 = scmp.le.s32.totalorder 1, %s17
      %p666 = scmp.lt.s32.totalorder %s17, 9
      %p667 = pnand %p665, %p666
      %p668 = pneg %p667
      // Predicated region
      $region117: #{edge_mlp.1} parent=5 // pred_check
        _
      $region118: #{edge_mlp.1} parent=5 // pred_check_branch
        %670 = sbr.rel (%p667) target = $region120
      $region119: #{edge_mlp.1} parent=5 // pred_region
        %s671 = ssub.s32 %s17, 1
        %s672 = sand.u32 %s53, 1
        %s673 = sand.u32 %s53, 1
        %s674 = smul.addr %s673, 256
        %s675 = scalar_lea.vmem [#allocation2], %s674
        // Predicated region
        $region121: #{edge_mlp.1} parent=119 // pred_check
          %p676 = pneg %p66
        $region122: #{edge_mlp.1} parent=119 // pred_check_branch
          %678 = sbr.rel (%p676) target = $region124
        $region123: #{edge_mlp.1} parent=119 // pred_region
          _
        $region124: #{edge_mlp.1} parent=119 // pred_fallthru
          _
        %s679 = sand.u32 %s83, 1
        %s680 = sand.u32 %s83, 1
        %s681 = smul.addr %s680, 256
        %s682 = scalar_lea.vmem [#allocation3], %s681
        // Predicated region
        $region125: #{edge_mlp.1} parent=119 // pred_check
          %p683 = pneg %p96
        $region126: #{edge_mlp.1} parent=119 // pred_check_branch
          %685 = sbr.rel (%p683) target = $region128
        $region127: #{edge_mlp.1} parent=119 // pred_region
          _
        $region128: #{edge_mlp.1} parent=119 // pred_fallthru
          _
        %s686 = sand.u32 %s53, 1
        %s687 = sand.u32 %s53, 1
        %s688 = smul.addr %s687, 256
        %s689 = scalar_lea.vmem [#allocation2], %s688
        %p690 = pneg %p66
        %p691 = pneg %p63
        %s692 = sand.u32 %s83, 1
        %s693 = sand.u32 %s83, 1
        %s694 = smul.addr %s693, 256
        %s695 = scalar_lea.vmem [#allocation3], %s694
        %p696 = pneg %p96
        %p697 = pneg %p93
        %s698 = smul.u32 2, %s28
        %p699 = scmp.lt.s32.totalorder %s27, 1
        %s700 = scalar_select %p699, %s27, 1
        %p701 = scmp.lt.s32.totalorder %s698, 3
        %s702 = scalar_select %p701, %s698, 3
        %s703 = smul.addr %s700, 4
        %s704 = sadd.s32 %s702, %s703
        %s705 = smul.addr %s704, 8
        %s706 = scalar_lea.vmem %s2, %s705
        %p707 = pneg %p124
        %p708 = pneg %p121
        %s709 = smul.u32 2, %s29
        %p710 = scmp.lt.s32.totalorder %s27, 1
        %s711 = scalar_select %p710, %s27, 1
        %p712 = scmp.lt.s32.totalorder %s709, 3
        %s713 = scalar_select %p712, %s709, 3
        %s714 = smul.addr %s711, 4
        %s715 = sadd.s32 %s713, %s714
        %s716 = smul.addr %s715, 8
        %s717 = scalar_lea.vmem %s3, %s716
        %p718 = pneg %p152
        %p719 = pneg %p149
        %p720 = pneg %p173
        %p721 = pneg %p170
        %p722 = pneg %p194
        %p723 = pneg %p191
        %p724 = pneg %p215
        %p725 = pneg %p212
        %p726 = pneg %p236
        %p727 = pneg %p233
        %p728 = pneg %p266
        %p729 = pneg %p263
        %s730 = sand.u32 %s253, 1
        %s731 = scalar_lea.sflag [#allocation5], %s730
        %s732 = sand.u32 %s253, 1
        %s733 = smul.addr %s732, 256
        %s734 = scalar_lea.vmem [#allocation4], %s733
        %s735 = smul.u32 16, %s28
        %s736 = smul.u32 2, %s29
        %s737 = smul.u32 16, %s29
        %s738 = smul.u32 2, %s28
        %s739 = smul.u32 2, %s28
        %p740 = scmp.lt.s32.totalorder %s27, 1
        %s741 = scalar_select %p740, %s27, 1
        %p742 = scmp.lt.s32.totalorder %s739, 3
        %s743 = scalar_select %p742, %s739, 3
        %s744 = smul.addr %s741, 4
        %s745 = sadd.s32 %s743, %s744
        %s746 = smul.addr %s745, 8
        %s747 = scalar_lea.vmem %s2, %s746
        %s748 = smul.u32 2, %s28
        %s749 = smul.u32 2, %s29
        %p750 = scmp.lt.s32.totalorder %s27, 1
        %s751 = scalar_select %p750, %s27, 1
        %p752 = scmp.lt.s32.totalorder %s749, 3
        %s753 = scalar_select %p752, %s749, 3
        %s754 = smul.addr %s751, 4
        %s755 = sadd.s32 %s753, %s754
        %s756 = smul.addr %s755, 8
        %s757 = scalar_lea.vmem %s3, %s756
        %s758 = smul.u32 2, %s29
        %s759 = smul.u32 16, %s28
        %s760 = smul.u32 2, %s29
        %v761 = vld [vmem:[%s675] sm:$0xff]
        %v762 = vld [vmem:[%s675 + $0x8] sm:$0xff]
        %v763 = vld [vmem:[%s675 + $0x10] sm:$0xff]
        %v764 = vld [vmem:[%s675 + $0x18] sm:$0xff]
        %v765 = vld [vmem:[%s675 + $0x20] sm:$0xff]
        %v766 = vld [vmem:[%s675 + $0x28] sm:$0xff]
        %v767 = vld [vmem:[%s675 + $0x30] sm:$0xff]
        %v768 = vld [vmem:[%s675 + $0x38] sm:$0xff]
        %v769 = vld [vmem:[%s675 + $0x40] sm:$0xff]
        %v770 = vld [vmem:[%s675 + $0x48] sm:$0xff]
        %v771 = vld [vmem:[%s675 + $0x50] sm:$0xff]
        %v772 = vld [vmem:[%s675 + $0x58] sm:$0xff]
        %v773 = vld [vmem:[%s675 + $0x60] sm:$0xff]
        %v774 = vld [vmem:[%s675 + $0x68] sm:$0xff]
        %v775 = vld [vmem:[%s675 + $0x70] sm:$0xff]
        %v776 = vld [vmem:[%s675 + $0x78] sm:$0xff]
        %v777 = vld [vmem:[%s675 + $0x80] sm:$0xff]
        %v778 = vld [vmem:[%s675 + $0x88] sm:$0xff]
        %v779 = vld [vmem:[%s675 + $0x90] sm:$0xff]
        %v780 = vld [vmem:[%s675 + $0x98] sm:$0xff]
        %v781 = vld [vmem:[%s675 + $0xa0] sm:$0xff]
        %v782 = vld [vmem:[%s675 + $0xa8] sm:$0xff]
        %v783 = vld [vmem:[%s675 + $0xb0] sm:$0xff]
        %v784 = vld [vmem:[%s675 + $0xb8] sm:$0xff]
        %v785 = vld [vmem:[%s675 + $0xc0] sm:$0xff]
        %v786 = vld [vmem:[%s675 + $0xc8] sm:$0xff]
        %v787 = vld [vmem:[%s675 + $0xd0] sm:$0xff]
        %v788 = vld [vmem:[%s675 + $0xd8] sm:$0xff]
        %v789 = vld [vmem:[%s675 + $0xe0] sm:$0xff]
        %v790 = vld [vmem:[%s675 + $0xe8] sm:$0xff]
        %v791 = vld [vmem:[%s675 + $0xf0] sm:$0xff]
        %v792 = vld [vmem:[%s675 + $0xf8] sm:$0xff]
        %v793 = vld [vmem:[%s4] sm:$0xff]
        %v794 = vld [vmem:[%s4 + $0x8] sm:$0xff]
        %v795 = vld [vmem:[%s4 + $0x10] sm:$0xff]
        %v796 = vld [vmem:[%s4 + $0x18] sm:$0xff]
        %v797 = vld [vmem:[%s4 + $0x20] sm:$0xff]
        %v798 = vld [vmem:[%s4 + $0x28] sm:$0xff]
        %v799 = vld [vmem:[%s4 + $0x30] sm:$0xff]
        %v800 = vld [vmem:[%s4 + $0x38] sm:$0xff]
        %v801 = vld [vmem:[%s4 + $0x40] sm:$0xff]
        %v802 = vld [vmem:[%s4 + $0x48] sm:$0xff]
        %v803 = vld [vmem:[%s4 + $0x50] sm:$0xff]
        %v804 = vld [vmem:[%s4 + $0x58] sm:$0xff]
        %v805 = vld [vmem:[%s4 + $0x60] sm:$0xff]
        %v806 = vld [vmem:[%s4 + $0x68] sm:$0xff]
        %v807 = vld [vmem:[%s4 + $0x70] sm:$0xff]
        %v808 = vld [vmem:[%s4 + $0x78] sm:$0xff]
        %809 = vmatprep.subr.mxu0 0.0
        %810 = vmatpush1.msra.mxu0 %v793
        %811 = vmatprep.subr.mxu0 0.0
        %812 = vmatpush1.msra.mxu0 %v794
        %813 = vmatprep.subr.mxu0 0.0
        %814 = vmatpush1.msra.mxu0 %v795
        %815 = vmatprep.subr.mxu0 0.0
        %816 = vmatpush1.msra.mxu0 %v796
        %817 = vmatprep.subr.mxu0 0.0
        %818 = vmatpush1.msra.mxu0 %v797
        %819 = vmatprep.subr.mxu0 0.0
        %820 = vmatpush1.msra.mxu0 %v798
        %821 = vmatprep.subr.mxu0 0.0
        %822 = vmatpush1.msra.mxu0 %v799
        %823 = vmatprep.subr.mxu0 0.0
        %824 = vmatpush1.msra.mxu0 %v800
        %825 = vmatprep.subr.mxu0 0.0
        %826 = vmatpush1.msra.mxu0 %v801
        %827 = vmatprep.subr.mxu0 0.0
        %828 = vmatpush1.msra.mxu0 %v802
        %829 = vmatprep.subr.mxu0 0.0
        %830 = vmatpush1.msra.mxu0 %v803
        %831 = vmatprep.subr.mxu0 0.0
        %832 = vmatpush1.msra.mxu0 %v804
        %833 = vmatprep.subr.mxu0 0.0
        %834 = vmatpush1.msra.mxu0 %v805
        %835 = vmatprep.subr.mxu0 0.0
        %836 = vmatpush1.msra.mxu0 %v806
        %837 = vmatprep.subr.mxu0 0.0
        %838 = vmatpush1.msra.mxu0 %v807
        %839 = vmatprep.subr.mxu0 0.0
        %840 = vmatpush1.msra.mxu0 %v808
        %841 = vmatprep.subr.mxu0 0.0
        %842 = vmatpush1.msra.mxu0 0.0
        %843 = vmatprep.subr.mxu0 0.0
        %844 = vmatpush1.msra.mxu0 0.0
        %845 = vmatprep.subr.mxu0 0.0
        %846 = vmatpush1.msra.mxu0 0.0
        %847 = vmatprep.subr.mxu0 0.0
        %848 = vmatpush1.msra.mxu0 0.0
        %849 = vmatprep.subr.mxu0 0.0
        %850 = vmatpush1.msra.mxu0 0.0
        %851 = vmatprep.subr.mxu0 0.0
        %852 = vmatpush1.msra.mxu0 0.0
        %853 = vmatprep.subr.mxu0 0.0
        %854 = vmatpush1.msra.mxu0 0.0
        %855 = vmatprep.subr.mxu0 0.0
        %856 = vmatpush1.msra.mxu0 0.0
        %857 = vmatprep.subr.mxu0 0.0
        %858 = vmatpush1.msra.mxu0 0.0
        %859 = vmatprep.subr.mxu0 0.0
        %860 = vmatpush1.msra.mxu0 0.0
        %861 = vmatprep.subr.mxu0 0.0
        %862 = vmatpush1.msra.mxu0 0.0
        %863 = vmatprep.subr.mxu0 0.0
        %864 = vmatpush1.msra.mxu0 0.0
        %865 = vmatprep.subr.mxu0 0.0
        %866 = vmatpush1.msra.mxu0 0.0
        %867 = vmatprep.subr.mxu0 0.0
        %868 = vmatpush1.msra.mxu0 0.0
        %869 = vmatprep.subr.mxu0 0.0
        %870 = vmatpush1.msra.mxu0 0.0
        %871 = vmatprep.subr.mxu0 0.0
        %872 = vmatpush1.msra.mxu0 0.0
        %873 = vmatprep.mubr.f32.mxu0 0.0
        %874 = vmatmul.mubr.f32.gmra.mrb[0].mxu0 %v761
        %v875 = vpop.f32.mrb[0].mxu0
        %v876 = vadd.f32 0.0, %v875
        %v877 = vpop.f32.mrb[0].mxu0
        %878 = vmatprep.mubr.f32.mxu0 0.0
        %879 = vmatmul.mubr.f32.gmra.mrb[0].mxu0 %v762
        %v880 = vpop.f32.mrb[0].mxu0
        %v881 = vadd.f32 0.0, %v880
        %v882 = vpop.f32.mrb[0].mxu0
        %883 = vmatprep.mubr.f32.mxu0 0.0
        %884 = vmatmul.mubr.f32.gmra.mrb[0].mxu0 %v763
        %v885 = vpop.f32.mrb[0].mxu0
        %v886 = vadd.f32 0.0, %v885
        %v887 = vpop.f32.mrb[0].mxu0
        %888 = vmatprep.mubr.f32.mxu0 0.0
        %889 = vmatmul.mubr.f32.gmra.mrb[0].mxu0 %v764
        %v890 = vpop.f32.mrb[0].mxu0
        %v891 = vadd.f32 0.0, %v890
        %v892 = vpop.f32.mrb[0].mxu0
        %893 = vmatprep.mubr.f32.mxu0 0.0
        %894 = vmatmul.mubr.f32.gmra.mrb[0].mxu0 %v765
        %v895 = vpop.f32.mrb[0].mxu0
        %v896 = vadd.f32 0.0, %v895
        %v897 = vpop.f32.mrb[0].mxu0
        %898 = vmatprep.mubr.f32.mxu0 0.0
        %899 = vmatmul.mubr.f32.gmra.mrb[0].mxu0 %v766
        %v900 = vpop.f32.mrb[0].mxu0
        %v901 = vadd.f32 0.0, %v900
        %v902 = vpop.f32.mrb[0].mxu0
        %903 = vmatprep.mubr.f32.mxu0 0.0
        %904 = vmatmul.mubr.f32.gmra.mrb[0].mxu0 %v767
        %v905 = vpop.f32.mrb[0].mxu0
        %v906 = vadd.f32 0.0, %v905
        %v907 = vpop.f32.mrb[0].mxu0
        %908 = vmatprep.mubr.f32.mxu0 0.0
        %909 = vmatmul.mubr.f32.gmra.mrb[0].mxu0 %v768
        %v910 = vpop.f32.mrb[0].mxu0
        %v911 = vadd.f32 0.0, %v910
        %v912 = vpop.f32.mrb[0].mxu0
        %913 = vmatprep.mubr.f32.mxu0 0.0
        %914 = vmatmul.mubr.f32.gmra.mrb[0].mxu0 %v769
        %v915 = vpop.f32.mrb[0].mxu0
        %v916 = vadd.f32 0.0, %v915
        %v917 = vpop.f32.mrb[0].mxu0
        %918 = vmatprep.mubr.f32.mxu0 0.0
        %919 = vmatmul.mubr.f32.gmra.mrb[0].mxu0 %v770
        %v920 = vpop.f32.mrb[0].mxu0
        %v921 = vadd.f32 0.0, %v920
        %v922 = vpop.f32.mrb[0].mxu0
        %923 = vmatprep.mubr.f32.mxu0 0.0
        %924 = vmatmul.mubr.f32.gmra.mrb[0].mxu0 %v771
        %v925 = vpop.f32.mrb[0].mxu0
        %v926 = vadd.f32 0.0, %v925
        %v927 = vpop.f32.mrb[0].mxu0
        %928 = vmatprep.mubr.f32.mxu0 0.0
        %929 = vmatmul.mubr.f32.gmra.mrb[0].mxu0 %v772
        %v930 = vpop.f32.mrb[0].mxu0
        %v931 = vadd.f32 0.0, %v930
        %v932 = vpop.f32.mrb[0].mxu0
        %933 = vmatprep.mubr.f32.mxu0 0.0
        %934 = vmatmul.mubr.f32.gmra.mrb[0].mxu0 %v773
        %v935 = vpop.f32.mrb[0].mxu0
        %v936 = vadd.f32 0.0, %v935
        %v937 = vpop.f32.mrb[0].mxu0
        %938 = vmatprep.mubr.f32.mxu0 0.0
        %939 = vmatmul.mubr.f32.gmra.mrb[0].mxu0 %v774
        %v940 = vpop.f32.mrb[0].mxu0
        %v941 = vadd.f32 0.0, %v940
        %v942 = vpop.f32.mrb[0].mxu0
        %943 = vmatprep.mubr.f32.mxu0 0.0
        %944 = vmatmul.mubr.f32.gmra.mrb[0].mxu0 %v775
        %v945 = vpop.f32.mrb[0].mxu0
        %v946 = vadd.f32 0.0, %v945
        %v947 = vpop.f32.mrb[0].mxu0
        %948 = vmatprep.mubr.f32.mxu0 0.0
        %949 = vmatmul.mubr.f32.gmra.mrb[0].mxu0 %v776
        %v950 = vpop.f32.mrb[0].mxu0
        %v951 = vadd.f32 0.0, %v950
        %v952 = vpop.f32.mrb[0].mxu0
        %953 = vmatprep.mubr.f32.mxu0 0.0
        %954 = vmatmul.mubr.f32.gmra.mrb[0].mxu0 %v777
        %v955 = vpop.f32.mrb[0].mxu0
        %v956 = vadd.f32 0.0, %v955
        %v957 = vpop.f32.mrb[0].mxu0
        %958 = vmatprep.mubr.f32.mxu0 0.0
        %959 = vmatmul.mubr.f32.gmra.mrb[0].mxu0 %v778
        %v960 = vpop.f32.mrb[0].mxu0
        %v961 = vadd.f32 0.0, %v960
        %v962 = vpop.f32.mrb[0].mxu0
        %963 = vmatprep.mubr.f32.mxu0 0.0
        %964 = vmatmul.mubr.f32.gmra.mrb[0].mxu0 %v779
        %v965 = vpop.f32.mrb[0].mxu0
        %v966 = vadd.f32 0.0, %v965
        %v967 = vpop.f32.mrb[0].mxu0
        %968 = vmatprep.mubr.f32.mxu0 0.0
        %969 = vmatmul.mubr.f32.gmra.mrb[0].mxu0 %v780
        %v970 = vpop.f32.mrb[0].mxu0
        %v971 = vadd.f32 0.0, %v970
        %v972 = vpop.f32.mrb[0].mxu0
        %973 = vmatprep.mubr.f32.mxu0 0.0
        %974 = vmatmul.mubr.f32.gmra.mrb[0].mxu0 %v781
        %v975 = vpop.f32.mrb[0].mxu0
        %v976 = vadd.f32 0.0, %v975
        %v977 = vpop.f32.mrb[0].mxu0
        %978 = vmatprep.mubr.f32.mxu0 0.0
        %979 = vmatmul.mubr.f32.gmra.mrb[0].mxu0 %v782
        %v980 = vpop.f32.mrb[0].mxu0
        %v981 = vadd.f32 0.0, %v980
        %v982 = vpop.f32.mrb[0].mxu0
        %983 = vmatprep.mubr.f32.mxu0 0.0
        %984 = vmatmul.mubr.f32.gmra.mrb[0].mxu0 %v783
        %v985 = vpop.f32.mrb[0].mxu0
        %v986 = vadd.f32 0.0, %v985
        %v987 = vpop.f32.mrb[0].mxu0
        %988 = vmatprep.mubr.f32.mxu0 0.0
        %989 = vmatmul.mubr.f32.gmra.mrb[0].mxu0 %v784
        %v990 = vpop.f32.mrb[0].mxu0
        %v991 = vadd.f32 0.0, %v990
        %v992 = vpop.f32.mrb[0].mxu0
        %993 = vmatprep.mubr.f32.mxu0 0.0
        %994 = vmatmul.mubr.f32.gmra.mrb[0].mxu0 %v785
        %v995 = vpop.f32.mrb[0].mxu0
        %v996 = vadd.f32 0.0, %v995
        %v997 = vpop.f32.mrb[0].mxu0
        %998 = vmatprep.mubr.f32.mxu0 0.0
        %999 = vmatmul.mubr.f32.gmra.mrb[0].mxu0 %v786
        %v1000 = vpop.f32.mrb[0].mxu0
        %v1001 = vadd.f32 0.0, %v1000
        %v1002 = vpop.f32.mrb[0].mxu0
        %1003 = vmatprep.mubr.f32.mxu0 0.0
        %1004 = vmatmul.mubr.f32.gmra.mrb[0].mxu0 %v787
        %v1005 = vpop.f32.mrb[0].mxu0
        %v1006 = vadd.f32 0.0, %v1005
        %v1007 = vpop.f32.mrb[0].mxu0
        %1008 = vmatprep.mubr.f32.mxu0 0.0
        %1009 = vmatmul.mubr.f32.gmra.mrb[0].mxu0 %v788
        %v1010 = vpop.f32.mrb[0].mxu0
        %v1011 = vadd.f32 0.0, %v1010
        %v1012 = vpop.f32.mrb[0].mxu0
        %1013 = vmatprep.mubr.f32.mxu0 0.0
        %1014 = vmatmul.mubr.f32.gmra.mrb[0].mxu0 %v789
        %v1015 = vpop.f32.mrb[0].mxu0
        %v1016 = vadd.f32 0.0, %v1015
        %v1017 = vpop.f32.mrb[0].mxu0
        %1018 = vmatprep.mubr.f32.mxu0 0.0
        %1019 = vmatmul.mubr.f32.gmra.mrb[0].mxu0 %v790
        %v1020 = vpop.f32.mrb[0].mxu0
        %v1021 = vadd.f32 0.0, %v1020
        %v1022 = vpop.f32.mrb[0].mxu0
        %1023 = vmatprep.mubr.f32.mxu0 0.0
        %1024 = vmatmul.mubr.f32.gmra.mrb[0].mxu0 %v791
        %v1025 = vpop.f32.mrb[0].mxu0
        %v1026 = vadd.f32 0.0, %v1025
        %v1027 = vpop.f32.mrb[0].mxu0
        %1028 = vmatprep.mubr.f32.mxu0 0.0
        %1029 = vmatmul.mubr.f32.gmra.mrb[0].mxu0 %v792
        %v1030 = vpop.f32.mrb[0].mxu0
        %v1031 = vadd.f32 0.0, %v1030
        %v1032 = vpop.f32.mrb[0].mxu0
        %1033 = vdwg.mxu0
        %v1034 = vld [vmem:[%s682] sm:$0xff]
        %v1035 = vld [vmem:[%s682 + $0x8] sm:$0xff]
        %v1036 = vld [vmem:[%s682 + $0x10] sm:$0xff]
        %v1037 = vld [vmem:[%s682 + $0x18] sm:$0xff]
        %v1038 = vld [vmem:[%s682 + $0x20] sm:$0xff]
        %v1039 = vld [vmem:[%s682 + $0x28] sm:$0xff]
        %v1040 = vld [vmem:[%s682 + $0x30] sm:$0xff]
        %v1041 = vld [vmem:[%s682 + $0x38] sm:$0xff]
        %v1042 = vld [vmem:[%s682 + $0x40] sm:$0xff]
        %v1043 = vld [vmem:[%s682 + $0x48] sm:$0xff]
        %v1044 = vld [vmem:[%s682 + $0x50] sm:$0xff]
        %v1045 = vld [vmem:[%s682 + $0x58] sm:$0xff]
        %v1046 = vld [vmem:[%s682 + $0x60] sm:$0xff]
        %v1047 = vld [vmem:[%s682 + $0x68] sm:$0xff]
        %v1048 = vld [vmem:[%s682 + $0x70] sm:$0xff]
        %v1049 = vld [vmem:[%s682 + $0x78] sm:$0xff]
        %v1050 = vld [vmem:[%s682 + $0x80] sm:$0xff]
        %v1051 = vld [vmem:[%s682 + $0x88] sm:$0xff]
        %v1052 = vld [vmem:[%s682 + $0x90] sm:$0xff]
        %v1053 = vld [vmem:[%s682 + $0x98] sm:$0xff]
        %v1054 = vld [vmem:[%s682 + $0xa0] sm:$0xff]
        %v1055 = vld [vmem:[%s682 + $0xa8] sm:$0xff]
        %v1056 = vld [vmem:[%s682 + $0xb0] sm:$0xff]
        %v1057 = vld [vmem:[%s682 + $0xb8] sm:$0xff]
        %v1058 = vld [vmem:[%s682 + $0xc0] sm:$0xff]
        %v1059 = vld [vmem:[%s682 + $0xc8] sm:$0xff]
        %v1060 = vld [vmem:[%s682 + $0xd0] sm:$0xff]
        %v1061 = vld [vmem:[%s682 + $0xd8] sm:$0xff]
        %v1062 = vld [vmem:[%s682 + $0xe0] sm:$0xff]
        %v1063 = vld [vmem:[%s682 + $0xe8] sm:$0xff]
        %v1064 = vld [vmem:[%s682 + $0xf0] sm:$0xff]
        %v1065 = vld [vmem:[%s682 + $0xf8] sm:$0xff]
        %v1066 = vld [vmem:[%s5] sm:$0xff]
        %v1067 = vld [vmem:[%s5 + $0x8] sm:$0xff]
        %v1068 = vld [vmem:[%s5 + $0x10] sm:$0xff]
        %v1069 = vld [vmem:[%s5 + $0x18] sm:$0xff]
        %v1070 = vld [vmem:[%s5 + $0x20] sm:$0xff]
        %v1071 = vld [vmem:[%s5 + $0x28] sm:$0xff]
        %v1072 = vld [vmem:[%s5 + $0x30] sm:$0xff]
        %v1073 = vld [vmem:[%s5 + $0x38] sm:$0xff]
        %v1074 = vld [vmem:[%s5 + $0x40] sm:$0xff]
        %v1075 = vld [vmem:[%s5 + $0x48] sm:$0xff]
        %v1076 = vld [vmem:[%s5 + $0x50] sm:$0xff]
        %v1077 = vld [vmem:[%s5 + $0x58] sm:$0xff]
        %v1078 = vld [vmem:[%s5 + $0x60] sm:$0xff]
        %v1079 = vld [vmem:[%s5 + $0x68] sm:$0xff]
        %v1080 = vld [vmem:[%s5 + $0x70] sm:$0xff]
        %v1081 = vld [vmem:[%s5 + $0x78] sm:$0xff]
        %1082 = vmatprep.subr.mxu0 0.0
        %1083 = vmatpush1.msra.mxu0 %v1066
        %1084 = vmatprep.subr.mxu0 0.0
        %1085 = vmatpush1.msra.mxu0 %v1067
        %1086 = vmatprep.subr.mxu0 0.0
        %1087 = vmatpush1.msra.mxu0 %v1068
        %1088 = vmatprep.subr.mxu0 0.0
        %1089 = vmatpush1.msra.mxu0 %v1069
        %1090 = vmatprep.subr.mxu0 0.0
        %1091 = vmatpush1.msra.mxu0 %v1070
        %1092 = vmatprep.subr.mxu0 0.0
        %1093 = vmatpush1.msra.mxu0 %v1071
        %1094 = vmatprep.subr.mxu0 0.0
        %1095 = vmatpush1.msra.mxu0 %v1072
        %1096 = vmatprep.subr.mxu0 0.0
        %1097 = vmatpush1.msra.mxu0 %v1073
        %1098 = vmatprep.subr.mxu0 0.0
        %1099 = vmatpush1.msra.mxu0 %v1074
        %1100 = vmatprep.subr.mxu0 0.0
        %1101 = vmatpush1.msra.mxu0 %v1075
        %1102 = vmatprep.subr.mxu0 0.0
        %1103 = vmatpush1.msra.mxu0 %v1076
        %1104 = vmatprep.subr.mxu0 0.0
        %1105 = vmatpush1.msra.mxu0 %v1077
        %1106 = vmatprep.subr.mxu0 0.0
        %1107 = vmatpush1.msra.mxu0 %v1078
        %1108 = vmatprep.subr.mxu0 0.0
        %1109 = vmatpush1.msra.mxu0 %v1079
        %1110 = vmatprep.subr.mxu0 0.0
        %1111 = vmatpush1.msra.mxu0 %v1080
        %1112 = vmatprep.subr.mxu0 0.0
        %1113 = vmatpush1.msra.mxu0 %v1081
        %1114 = vmatprep.subr.mxu0 0.0
        %1115 = vmatpush1.msra.mxu0 0.0
        %1116 = vmatprep.subr.mxu0 0.0
        %1117 = vmatpush1.msra.mxu0 0.0
        %1118 = vmatprep.subr.mxu0 0.0
        %1119 = vmatpush1.msra.mxu0 0.0
        %1120 = vmatprep.subr.mxu0 0.0
        %1121 = vmatpush1.msra.mxu0 0.0
        %1122 = vmatprep.subr.mxu0 0.0
        %1123 = vmatpush1.msra.mxu0 0.0
        %1124 = vmatprep.subr.mxu0 0.0
        %1125 = vmatpush1.msra.mxu0 0.0
        %1126 = vmatprep.subr.mxu0 0.0
        %1127 = vmatpush1.msra.mxu0 0.0
        %1128 = vmatprep.subr.mxu0 0.0
        %1129 = vmatpush1.msra.mxu0 0.0
        %1130 = vmatprep.subr.mxu0 0.0
        %1131 = vmatpush1.msra.mxu0 0.0
        %1132 = vmatprep.subr.mxu0 0.0
        %1133 = vmatpush1.msra.mxu0 0.0
        %1134 = vmatprep.subr.mxu0 0.0
        %1135 = vmatpush1.msra.mxu0 0.0
        %1136 = vmatprep.subr.mxu0 0.0
        %1137 = vmatpush1.msra.mxu0 0.0
        %1138 = vmatprep.subr.mxu0 0.0
        %1139 = vmatpush1.msra.mxu0 0.0
        %1140 = vmatprep.subr.mxu0 0.0
        %1141 = vmatpush1.msra.mxu0 0.0
        %1142 = vmatprep.subr.mxu0 0.0
        %1143 = vmatpush1.msra.mxu0 0.0
        %1144 = vmatprep.subr.mxu0 0.0
        %1145 = vmatpush1.msra.mxu0 0.0
        %1146 = vmatprep.mubr.f32.mxu0 0.0
        %1147 = vmatmul.mubr.f32.gmra.mrb[0].mxu0 %v1034
        %v1148 = vpop.f32.mrb[0].mxu0
        %v1149 = vadd.f32 0.0, %v1148
        %v1150 = vpop.f32.mrb[0].mxu0
        %1151 = vmatprep.mubr.f32.mxu0 0.0
        %1152 = vmatmul.mubr.f32.gmra.mrb[0].mxu0 %v1035
        %v1153 = vpop.f32.mrb[0].mxu0
        %v1154 = vadd.f32 0.0, %v1153
        %v1155 = vpop.f32.mrb[0].mxu0
        %1156 = vmatprep.mubr.f32.mxu0 0.0
        %1157 = vmatmul.mubr.f32.gmra.mrb[0].mxu0 %v1036
        %v1158 = vpop.f32.mrb[0].mxu0
        %v1159 = vadd.f32 0.0, %v1158
        %v1160 = vpop.f32.mrb[0].mxu0
        %1161 = vmatprep.mubr.f32.mxu0 0.0
        %1162 = vmatmul.mubr.f32.gmra.mrb[0].mxu0 %v1037
        %v1163 = vpop.f32.mrb[0].mxu0
        %v1164 = vadd.f32 0.0, %v1163
        %v1165 = vpop.f32.mrb[0].mxu0
        %1166 = vmatprep.mubr.f32.mxu0 0.0
        %1167 = vmatmul.mubr.f32.gmra.mrb[0].mxu0 %v1038
        %v1168 = vpop.f32.mrb[0].mxu0
        %v1169 = vadd.f32 0.0, %v1168
        %v1170 = vpop.f32.mrb[0].mxu0
        %1171 = vmatprep.mubr.f32.mxu0 0.0
        %1172 = vmatmul.mubr.f32.gmra.mrb[0].mxu0 %v1039
        %v1173 = vpop.f32.mrb[0].mxu0
        %v1174 = vadd.f32 0.0, %v1173
        %v1175 = vpop.f32.mrb[0].mxu0
        %1176 = vmatprep.mubr.f32.mxu0 0.0
        %1177 = vmatmul.mubr.f32.gmra.mrb[0].mxu0 %v1040
        %v1178 = vpop.f32.mrb[0].mxu0
        %v1179 = vadd.f32 0.0, %v1178
        %v1180 = vpop.f32.mrb[0].mxu0
        %1181 = vmatprep.mubr.f32.mxu0 0.0
        %1182 = vmatmul.mubr.f32.gmra.mrb[0].mxu0 %v1041
        %v1183 = vpop.f32.mrb[0].mxu0
        %v1184 = vadd.f32 0.0, %v1183
        %v1185 = vpop.f32.mrb[0].mxu0
        %1186 = vmatprep.mubr.f32.mxu0 0.0
        %1187 = vmatmul.mubr.f32.gmra.mrb[0].mxu0 %v1042
        %v1188 = vpop.f32.mrb[0].mxu0
        %v1189 = vadd.f32 0.0, %v1188
        %v1190 = vpop.f32.mrb[0].mxu0
        %1191 = vmatprep.mubr.f32.mxu0 0.0
        %1192 = vmatmul.mubr.f32.gmra.mrb[0].mxu0 %v1043
        %v1193 = vpop.f32.mrb[0].mxu0
        %v1194 = vadd.f32 0.0, %v1193
        %v1195 = vpop.f32.mrb[0].mxu0
        %1196 = vmatprep.mubr.f32.mxu0 0.0
        %1197 = vmatmul.mubr.f32.gmra.mrb[0].mxu0 %v1044
        %v1198 = vpop.f32.mrb[0].mxu0
        %v1199 = vadd.f32 0.0, %v1198
        %v1200 = vpop.f32.mrb[0].mxu0
        %1201 = vmatprep.mubr.f32.mxu0 0.0
        %1202 = vmatmul.mubr.f32.gmra.mrb[0].mxu0 %v1045
        %v1203 = vpop.f32.mrb[0].mxu0
        %v1204 = vadd.f32 0.0, %v1203
        %v1205 = vpop.f32.mrb[0].mxu0
        %1206 = vmatprep.mubr.f32.mxu0 0.0
        %1207 = vmatmul.mubr.f32.gmra.mrb[0].mxu0 %v1046
        %v1208 = vpop.f32.mrb[0].mxu0
        %v1209 = vadd.f32 0.0, %v1208
        %v1210 = vpop.f32.mrb[0].mxu0
        %1211 = vmatprep.mubr.f32.mxu0 0.0
        %1212 = vmatmul.mubr.f32.gmra.mrb[0].mxu0 %v1047
        %v1213 = vpop.f32.mrb[0].mxu0
        %v1214 = vadd.f32 0.0, %v1213
        %v1215 = vpop.f32.mrb[0].mxu0
        %1216 = vmatprep.mubr.f32.mxu0 0.0
        %1217 = vmatmul.mubr.f32.gmra.mrb[0].mxu0 %v1048
        %v1218 = vpop.f32.mrb[0].mxu0
        %v1219 = vadd.f32 0.0, %v1218
        %v1220 = vpop.f32.mrb[0].mxu0
        %1221 = vmatprep.mubr.f32.mxu0 0.0
        %1222 = vmatmul.mubr.f32.gmra.mrb[0].mxu0 %v1049
        %v1223 = vpop.f32.mrb[0].mxu0
        %v1224 = vadd.f32 0.0, %v1223
        %v1225 = vpop.f32.mrb[0].mxu0
        %1226 = vmatprep.mubr.f32.mxu0 0.0
        %1227 = vmatmul.mubr.f32.gmra.mrb[0].mxu0 %v1050
        %v1228 = vpop.f32.mrb[0].mxu0
        %v1229 = vadd.f32 0.0, %v1228
        %v1230 = vpop.f32.mrb[0].mxu0
        %1231 = vmatprep.mubr.f32.mxu0 0.0
        %1232 = vmatmul.mubr.f32.gmra.mrb[0].mxu0 %v1051
        %v1233 = vpop.f32.mrb[0].mxu0
        %v1234 = vadd.f32 0.0, %v1233
        %v1235 = vpop.f32.mrb[0].mxu0
        %1236 = vmatprep.mubr.f32.mxu0 0.0
        %1237 = vmatmul.mubr.f32.gmra.mrb[0].mxu0 %v1052
        %v1238 = vpop.f32.mrb[0].mxu0
        %v1239 = vadd.f32 0.0, %v1238
        %v1240 = vpop.f32.mrb[0].mxu0
        %1241 = vmatprep.mubr.f32.mxu0 0.0
        %1242 = vmatmul.mubr.f32.gmra.mrb[0].mxu0 %v1053
        %v1243 = vpop.f32.mrb[0].mxu0
        %v1244 = vadd.f32 0.0, %v1243
        %v1245 = vpop.f32.mrb[0].mxu0
        %1246 = vmatprep.mubr.f32.mxu0 0.0
        %1247 = vmatmul.mubr.f32.gmra.mrb[0].mxu0 %v1054
        %v1248 = vpop.f32.mrb[0].mxu0
        %v1249 = vadd.f32 0.0, %v1248
        %v1250 = vpop.f32.mrb[0].mxu0
        %1251 = vmatprep.mubr.f32.mxu0 0.0
        %1252 = vmatmul.mubr.f32.gmra.mrb[0].mxu0 %v1055
        %v1253 = vpop.f32.mrb[0].mxu0
        %v1254 = vadd.f32 0.0, %v1253
        %v1255 = vpop.f32.mrb[0].mxu0
        %1256 = vmatprep.mubr.f32.mxu0 0.0
        %1257 = vmatmul.mubr.f32.gmra.mrb[0].mxu0 %v1056
        %v1258 = vpop.f32.mrb[0].mxu0
        %v1259 = vadd.f32 0.0, %v1258
        %v1260 = vpop.f32.mrb[0].mxu0
        %1261 = vmatprep.mubr.f32.mxu0 0.0
        %1262 = vmatmul.mubr.f32.gmra.mrb[0].mxu0 %v1057
        %v1263 = vpop.f32.mrb[0].mxu0
        %v1264 = vadd.f32 0.0, %v1263
        %v1265 = vpop.f32.mrb[0].mxu0
        %1266 = vmatprep.mubr.f32.mxu0 0.0
        %1267 = vmatmul.mubr.f32.gmra.mrb[0].mxu0 %v1058
        %v1268 = vpop.f32.mrb[0].mxu0
        %v1269 = vadd.f32 0.0, %v1268
        %v1270 = vpop.f32.mrb[0].mxu0
        %1271 = vmatprep.mubr.f32.mxu0 0.0
        %1272 = vmatmul.mubr.f32.gmra.mrb[0].mxu0 %v1059
        %v1273 = vpop.f32.mrb[0].mxu0
        %v1274 = vadd.f32 0.0, %v1273
        %v1275 = vpop.f32.mrb[0].mxu0
        %1276 = vmatprep.mubr.f32.mxu0 0.0
        %1277 = vmatmul.mubr.f32.gmra.mrb[0].mxu0 %v1060
        %v1278 = vpop.f32.mrb[0].mxu0
        %v1279 = vadd.f32 0.0, %v1278
        %v1280 = vpop.f32.mrb[0].mxu0
        %1281 = vmatprep.mubr.f32.mxu0 0.0
        %1282 = vmatmul.mubr.f32.gmra.mrb[0].mxu0 %v1061
        %v1283 = vpop.f32.mrb[0].mxu0
        %v1284 = vadd.f32 0.0, %v1283
        %v1285 = vpop.f32.mrb[0].mxu0
        %1286 = vmatprep.mubr.f32.mxu0 0.0
        %1287 = vmatmul.mubr.f32.gmra.mrb[0].mxu0 %v1062
        %v1288 = vpop.f32.mrb[0].mxu0
        %v1289 = vadd.f32 0.0, %v1288
        %v1290 = vpop.f32.mrb[0].mxu0
        %1291 = vmatprep.mubr.f32.mxu0 0.0
        %1292 = vmatmul.mubr.f32.gmra.mrb[0].mxu0 %v1063
        %v1293 = vpop.f32.mrb[0].mxu0
        %v1294 = vadd.f32 0.0, %v1293
        %v1295 = vpop.f32.mrb[0].mxu0
        %1296 = vmatprep.mubr.f32.mxu0 0.0
        %1297 = vmatmul.mubr.f32.gmra.mrb[0].mxu0 %v1064
        %v1298 = vpop.f32.mrb[0].mxu0
        %v1299 = vadd.f32 0.0, %v1298
        %v1300 = vpop.f32.mrb[0].mxu0
        %1301 = vmatprep.mubr.f32.mxu0 0.0
        %1302 = vmatmul.mubr.f32.gmra.mrb[0].mxu0 %v1065
        %v1303 = vpop.f32.mrb[0].mxu0
        %v1304 = vadd.f32 0.0, %v1303
        %v1305 = vpop.f32.mrb[0].mxu0
        %1306 = vdwg.mxu0
        %v1307 = vcombine.low %v1149, %v1169
        %v1308 = vcombine.high %v1149, %v1169
        %v1310 = vunpack.c.l.s4 1983009808
        %v1311 = vunpack.c.0.s8 %v1310
        %v1312 = vlaneseq
        %v1313 = vshrl.u32 %v1312, 7
        %v1314 = vsub.s32 %v1311, %v1313
        %v1315 = vrot.slane %v1307, %v1314
        %v1317 = vunpack.c.l.s4 1983009808
        %v1318 = vunpack.c.0.s8 %v1317
        %v1319 = vlaneseq
        %v1320 = vshrl.u32 %v1319, 7
        %v1321 = vsub.s32 %v1318, %v1320
        %v1322 = vrot.slane %v1308, %v1321
        %v1323 = vcombine.low %v1159, %v1179
        %v1324 = vcombine.high %v1159, %v1179
        %v1326 = vunpack.c.l.s4 1983009808
        %v1327 = vunpack.c.0.s8 %v1326
        %v1328 = vlaneseq
        %v1329 = vshrl.u32 %v1328, 7
        %v1330 = vsub.s32 %v1327, %v1329
        %v1331 = vrot.slane %v1323, %v1330
        %v1333 = vunpack.c.l.s4 1983009808
        %v1334 = vunpack.c.0.s8 %v1333
        %v1335 = vlaneseq
        %v1336 = vshrl.u32 %v1335, 7
        %v1337 = vsub.s32 %v1334, %v1336
        %v1338 = vrot.slane %v1324, %v1337
        %v1339 = vcombine.low %v1189, %v1209
        %v1340 = vcombine.high %v1189, %v1209
        %v1342 = vunpack.c.l.s4 1983009808
        %v1343 = vunpack.c.0.s8 %v1342
        %v1344 = vlaneseq
        %v1345 = vshrl.u32 %v1344, 7
        %v1346 = vsub.s32 %v1343, %v1345
        %v1347 = vrot.slane %v1339, %v1346
        %v1349 = vunpack.c.l.s4 1983009808
        %v1350 = vunpack.c.0.s8 %v1349
        %v1351 = vlaneseq
        %v1352 = vshrl.u32 %v1351, 7
        %v1353 = vsub.s32 %v1350, %v1352
        %v1354 = vrot.slane %v1340, %v1353
        %v1355 = vcombine.low %v1199, %v1219
        %v1356 = vcombine.high %v1199, %v1219
        %v1358 = vunpack.c.l.s4 1983009808
        %v1359 = vunpack.c.0.s8 %v1358
        %v1360 = vlaneseq
        %v1361 = vshrl.u32 %v1360, 7
        %v1362 = vsub.s32 %v1359, %v1361
        %v1363 = vrot.slane %v1355, %v1362
        %v1365 = vunpack.c.l.s4 1983009808
        %v1366 = vunpack.c.0.s8 %v1365
        %v1367 = vlaneseq
        %v1368 = vshrl.u32 %v1367, 7
        %v1369 = vsub.s32 %v1366, %v1368
        %v1370 = vrot.slane %v1356, %v1369
        %v1371 = vcombine.low %v1315, %v1331
        %v1372 = vcombine.high %v1315, %v1331
        %v1374 = vunpack.c.l.s4 1934713408
        %v1375 = vunpack.c.0.s8 %v1374
        %v1376 = vlaneseq
        %v1377 = vshrl.u32 %v1376, 7
        %v1378 = vsub.s32 %v1375, %v1377
        %v1379 = vrot.slane %v1371, %v1378
        %v1381 = vunpack.c.l.s4 1934713408
        %v1382 = vunpack.c.0.s8 %v1381
        %v1383 = vlaneseq
        %v1384 = vshrl.u32 %v1383, 7
        %v1385 = vsub.s32 %v1382, %v1384
        %v1386 = vrot.slane %v1372, %v1385
        %v1387 = vcombine.low %v1322, %v1338
        %v1388 = vcombine.high %v1322, %v1338
        %v1390 = vunpack.c.l.s4 1934713408
        %v1391 = vunpack.c.0.s8 %v1390
        %v1392 = vlaneseq
        %v1393 = vshrl.u32 %v1392, 7
        %v1394 = vsub.s32 %v1391, %v1393
        %v1395 = vrot.slane %v1387, %v1394
        %v1397 = vunpack.c.l.s4 1934713408
        %v1398 = vunpack.c.0.s8 %v1397
        %v1399 = vlaneseq
        %v1400 = vshrl.u32 %v1399, 7
        %v1401 = vsub.s32 %v1398, %v1400
        %v1402 = vrot.slane %v1388, %v1401
        %v1403 = vcombine.low %v1347, %v1363
        %v1404 = vcombine.high %v1347, %v1363
        %v1406 = vunpack.c.l.s4 1934713408
        %v1407 = vunpack.c.0.s8 %v1406
        %v1408 = vlaneseq
        %v1409 = vshrl.u32 %v1408, 7
        %v1410 = vsub.s32 %v1407, %v1409
        %v1411 = vrot.slane %v1403, %v1410
        %v1413 = vunpack.c.l.s4 1934713408
        %v1414 = vunpack.c.0.s8 %v1413
        %v1415 = vlaneseq
        %v1416 = vshrl.u32 %v1415, 7
        %v1417 = vsub.s32 %v1414, %v1416
        %v1418 = vrot.slane %v1404, %v1417
        %v1419 = vcombine.low %v1354, %v1370
        %v1420 = vcombine.high %v1354, %v1370
        %v1422 = vunpack.c.l.s4 1934713408
        %v1423 = vunpack.c.0.s8 %v1422
        %v1424 = vlaneseq
        %v1425 = vshrl.u32 %v1424, 7
        %v1426 = vsub.s32 %v1423, %v1425
        %v1427 = vrot.slane %v1419, %v1426
        %v1429 = vunpack.c.l.s4 1934713408
        %v1430 = vunpack.c.0.s8 %v1429
        %v1431 = vlaneseq
        %v1432 = vshrl.u32 %v1431, 7
        %v1433 = vsub.s32 %v1430, %v1432
        %v1434 = vrot.slane %v1420, %v1433
        %v1435 = vcombine.low %v1379, %v1411
        %v1436 = vcombine.high %v1379, %v1411
        %v1437 = vcombine.low %v1386, %v1418
        %v1438 = vcombine.high %v1386, %v1418
        %v1439 = vcombine.low %v1395, %v1427
        %v1440 = vcombine.high %v1395, %v1427
        %v1441 = vcombine.low %v1402, %v1434
        %v1442 = vcombine.high %v1402, %v1434
        %v1443 = vcombine.low %v1229, %v1249
        %v1444 = vcombine.high %v1229, %v1249
        %v1446 = vunpack.c.l.s4 1983009808
        %v1447 = vunpack.c.0.s8 %v1446
        %v1448 = vlaneseq
        %v1449 = vshrl.u32 %v1448, 7
        %v1450 = vsub.s32 %v1447, %v1449
        %v1451 = vrot.slane %v1443, %v1450
        %v1453 = vunpack.c.l.s4 1983009808
        %v1454 = vunpack.c.0.s8 %v1453
        %v1455 = vlaneseq
        %v1456 = vshrl.u32 %v1455, 7
        %v1457 = vsub.s32 %v1454, %v1456
        %v1458 = vrot.slane %v1444, %v1457
        %v1459 = vcombine.low %v1239, %v1259
        %v1460 = vcombine.high %v1239, %v1259
        %v1462 = vunpack.c.l.s4 1983009808
        %v1463 = vunpack.c.0.s8 %v1462
        %v1464 = vlaneseq
        %v1465 = vshrl.u32 %v1464, 7
        %v1466 = vsub.s32 %v1463, %v1465
        %v1467 = vrot.slane %v1459, %v1466
        %v1469 = vunpack.c.l.s4 1983009808
        %v1470 = vunpack.c.0.s8 %v1469
        %v1471 = vlaneseq
        %v1472 = vshrl.u32 %v1471, 7
        %v1473 = vsub.s32 %v1470, %v1472
        %v1474 = vrot.slane %v1460, %v1473
        %v1475 = vcombine.low %v1269, %v1289
        %v1476 = vcombine.high %v1269, %v1289
        %v1478 = vunpack.c.l.s4 1983009808
        %v1479 = vunpack.c.0.s8 %v1478
        %v1480 = vlaneseq
        %v1481 = vshrl.u32 %v1480, 7
        %v1482 = vsub.s32 %v1479, %v1481
        %v1483 = vrot.slane %v1475, %v1482
        %v1485 = vunpack.c.l.s4 1983009808
        %v1486 = vunpack.c.0.s8 %v1485
        %v1487 = vlaneseq
        %v1488 = vshrl.u32 %v1487, 7
        %v1489 = vsub.s32 %v1486, %v1488
        %v1490 = vrot.slane %v1476, %v1489
        %v1491 = vcombine.low %v1279, %v1299
        %v1492 = vcombine.high %v1279, %v1299
        %v1494 = vunpack.c.l.s4 1983009808
        %v1495 = vunpack.c.0.s8 %v1494
        %v1496 = vlaneseq
        %v1497 = vshrl.u32 %v1496, 7
        %v1498 = vsub.s32 %v1495, %v1497
        %v1499 = vrot.slane %v1491, %v1498
        %v1501 = vunpack.c.l.s4 1983009808
        %v1502 = vunpack.c.0.s8 %v1501
        %v1503 = vlaneseq
        %v1504 = vshrl.u32 %v1503, 7
        %v1505 = vsub.s32 %v1502, %v1504
        %v1506 = vrot.slane %v1492, %v1505
        %v1507 = vcombine.low %v1451, %v1467
        %v1508 = vcombine.high %v1451, %v1467
        %v1510 = vunpack.c.l.s4 1934713408
        %v1511 = vunpack.c.0.s8 %v1510
        %v1512 = vlaneseq
        %v1513 = vshrl.u32 %v1512, 7
        %v1514 = vsub.s32 %v1511, %v1513
        %v1515 = vrot.slane %v1507, %v1514
        %v1517 = vunpack.c.l.s4 1934713408
        %v1518 = vunpack.c.0.s8 %v1517
        %v1519 = vlaneseq
        %v1520 = vshrl.u32 %v1519, 7
        %v1521 = vsub.s32 %v1518, %v1520
        %v1522 = vrot.slane %v1508, %v1521
        %v1523 = vcombine.low %v1458, %v1474
        %v1524 = vcombine.high %v1458, %v1474
        %v1526 = vunpack.c.l.s4 1934713408
        %v1527 = vunpack.c.0.s8 %v1526
        %v1528 = vlaneseq
        %v1529 = vshrl.u32 %v1528, 7
        %v1530 = vsub.s32 %v1527, %v1529
        %v1531 = vrot.slane %v1523, %v1530
        %v1533 = vunpack.c.l.s4 1934713408
        %v1534 = vunpack.c.0.s8 %v1533
        %v1535 = vlaneseq
        %v1536 = vshrl.u32 %v1535, 7
        %v1537 = vsub.s32 %v1534, %v1536
        %v1538 = vrot.slane %v1524, %v1537
        %v1539 = vcombine.low %v1483, %v1499
        %v1540 = vcombine.high %v1483, %v1499
        %v1542 = vunpack.c.l.s4 1934713408
        %v1543 = vunpack.c.0.s8 %v1542
        %v1544 = vlaneseq
        %v1545 = vshrl.u32 %v1544, 7
        %v1546 = vsub.s32 %v1543, %v1545
        %v1547 = vrot.slane %v1539, %v1546
        %v1549 = vunpack.c.l.s4 1934713408
        %v1550 = vunpack.c.0.s8 %v1549
        %v1551 = vlaneseq
        %v1552 = vshrl.u32 %v1551, 7
        %v1553 = vsub.s32 %v1550, %v1552
        %v1554 = vrot.slane %v1540, %v1553
        %v1555 = vcombine.low %v1490, %v1506
        %v1556 = vcombine.high %v1490, %v1506
        %v1558 = vunpack.c.l.s4 1934713408
        %v1559 = vunpack.c.0.s8 %v1558
        %v1560 = vlaneseq
        %v1561 = vshrl.u32 %v1560, 7
        %v1562 = vsub.s32 %v1559, %v1561
        %v1563 = vrot.slane %v1555, %v1562
        %v1565 = vunpack.c.l.s4 1934713408
        %v1566 = vunpack.c.0.s8 %v1565
        %v1567 = vlaneseq
        %v1568 = vshrl.u32 %v1567, 7
        %v1569 = vsub.s32 %v1566, %v1568
        %v1570 = vrot.slane %v1556, %v1569
        %v1571 = vcombine.low %v1515, %v1547
        %v1572 = vcombine.high %v1515, %v1547
        %v1573 = vcombine.low %v1522, %v1554
        %v1574 = vcombine.high %v1522, %v1554
        %v1575 = vcombine.low %v1531, %v1563
        %v1576 = vcombine.high %v1531, %v1563
        %v1577 = vcombine.low %v1538, %v1570
        %v1578 = vcombine.high %v1538, %v1570
        %v1579 = vcombine.low %v1154, %v1174
        %v1580 = vcombine.high %v1154, %v1174
        %v1582 = vunpack.c.l.s4 1983009808
        %v1583 = vunpack.c.0.s8 %v1582
        %v1584 = vlaneseq
        %v1585 = vshrl.u32 %v1584, 7
        %v1586 = vsub.s32 %v1583, %v1585
        %v1587 = vrot.slane %v1579, %v1586
        %v1589 = vunpack.c.l.s4 1983009808
        %v1590 = vunpack.c.0.s8 %v1589
        %v1591 = vlaneseq
        %v1592 = vshrl.u32 %v1591, 7
        %v1593 = vsub.s32 %v1590, %v1592
        %v1594 = vrot.slane %v1580, %v1593
        %v1595 = vcombine.low %v1164, %v1184
        %v1596 = vcombine.high %v1164, %v1184
        %v1598 = vunpack.c.l.s4 1983009808
        %v1599 = vunpack.c.0.s8 %v1598
        %v1600 = vlaneseq
        %v1601 = vshrl.u32 %v1600, 7
        %v1602 = vsub.s32 %v1599, %v1601
        %v1603 = vrot.slane %v1595, %v1602
        %v1605 = vunpack.c.l.s4 1983009808
        %v1606 = vunpack.c.0.s8 %v1605
        %v1607 = vlaneseq
        %v1608 = vshrl.u32 %v1607, 7
        %v1609 = vsub.s32 %v1606, %v1608
        %v1610 = vrot.slane %v1596, %v1609
        %v1611 = vcombine.low %v1194, %v1214
        %v1612 = vcombine.high %v1194, %v1214
        %v1614 = vunpack.c.l.s4 1983009808
        %v1615 = vunpack.c.0.s8 %v1614
        %v1616 = vlaneseq
        %v1617 = vshrl.u32 %v1616, 7
        %v1618 = vsub.s32 %v1615, %v1617
        %v1619 = vrot.slane %v1611, %v1618
        %v1621 = vunpack.c.l.s4 1983009808
        %v1622 = vunpack.c.0.s8 %v1621
        %v1623 = vlaneseq
        %v1624 = vshrl.u32 %v1623, 7
        %v1625 = vsub.s32 %v1622, %v1624
        %v1626 = vrot.slane %v1612, %v1625
        %v1627 = vcombine.low %v1204, %v1224
        %v1628 = vcombine.high %v1204, %v1224
        %v1630 = vunpack.c.l.s4 1983009808
        %v1631 = vunpack.c.0.s8 %v1630
        %v1632 = vlaneseq
        %v1633 = vshrl.u32 %v1632, 7
        %v1634 = vsub.s32 %v1631, %v1633
        %v1635 = vrot.slane %v1627, %v1634
        %v1637 = vunpack.c.l.s4 1983009808
        %v1638 = vunpack.c.0.s8 %v1637
        %v1639 = vlaneseq
        %v1640 = vshrl.u32 %v1639, 7
        %v1641 = vsub.s32 %v1638, %v1640
        %v1642 = vrot.slane %v1628, %v1641
        %v1643 = vcombine.low %v1587, %v1603
        %v1644 = vcombine.high %v1587, %v1603
        %v1646 = vunpack.c.l.s4 1934713408
        %v1647 = vunpack.c.0.s8 %v1646
        %v1648 = vlaneseq
        %v1649 = vshrl.u32 %v1648, 7
        %v1650 = vsub.s32 %v1647, %v1649
        %v1651 = vrot.slane %v1643, %v1650
        %v1653 = vunpack.c.l.s4 1934713408
        %v1654 = vunpack.c.0.s8 %v1653
        %v1655 = vlaneseq
        %v1656 = vshrl.u32 %v1655, 7
        %v1657 = vsub.s32 %v1654, %v1656
        %v1658 = vrot.slane %v1644, %v1657
        %v1659 = vcombine.low %v1594, %v1610
        %v1660 = vcombine.high %v1594, %v1610
        %v1662 = vunpack.c.l.s4 1934713408
        %v1663 = vunpack.c.0.s8 %v1662
        %v1664 = vlaneseq
        %v1665 = vshrl.u32 %v1664, 7
        %v1666 = vsub.s32 %v1663, %v1665
        %v1667 = vrot.slane %v1659, %v1666
        %v1669 = vunpack.c.l.s4 1934713408
        %v1670 = vunpack.c.0.s8 %v1669
        %v1671 = vlaneseq
        %v1672 = vshrl.u32 %v1671, 7
        %v1673 = vsub.s32 %v1670, %v1672
        %v1674 = vrot.slane %v1660, %v1673
        %v1675 = vcombine.low %v1619, %v1635
        %v1676 = vcombine.high %v1619, %v1635
        %v1678 = vunpack.c.l.s4 1934713408
        %v1679 = vunpack.c.0.s8 %v1678
        %v1680 = vlaneseq
        %v1681 = vshrl.u32 %v1680, 7
        %v1682 = vsub.s32 %v1679, %v1681
        %v1683 = vrot.slane %v1675, %v1682
        %v1685 = vunpack.c.l.s4 1934713408
        %v1686 = vunpack.c.0.s8 %v1685
        %v1687 = vlaneseq
        %v1688 = vshrl.u32 %v1687, 7
        %v1689 = vsub.s32 %v1686, %v1688
        %v1690 = vrot.slane %v1676, %v1689
        %v1691 = vcombine.low %v1626, %v1642
        %v1692 = vcombine.high %v1626, %v1642
        %v1694 = vunpack.c.l.s4 1934713408
        %v1695 = vunpack.c.0.s8 %v1694
        %v1696 = vlaneseq
        %v1697 = vshrl.u32 %v1696, 7
        %v1698 = vsub.s32 %v1695, %v1697
        %v1699 = vrot.slane %v1691, %v1698
        %v1701 = vunpack.c.l.s4 1934713408
        %v1702 = vunpack.c.0.s8 %v1701
        %v1703 = vlaneseq
        %v1704 = vshrl.u32 %v1703, 7
        %v1705 = vsub.s32 %v1702, %v1704
        %v1706 = vrot.slane %v1692, %v1705
        %v1707 = vcombine.low %v1651, %v1683
        %v1708 = vcombine.high %v1651, %v1683
        %v1709 = vcombine.low %v1658, %v1690
        %v1710 = vcombine.high %v1658, %v1690
        %v1711 = vcombine.low %v1667, %v1699
        %v1712 = vcombine.high %v1667, %v1699
        %v1713 = vcombine.low %v1674, %v1706
        %v1714 = vcombine.high %v1674, %v1706
        %v1715 = vcombine.low %v1234, %v1254
        %v1716 = vcombine.high %v1234, %v1254
        %v1718 = vunpack.c.l.s4 1983009808
        %v1719 = vunpack.c.0.s8 %v1718
        %v1720 = vlaneseq
        %v1721 = vshrl.u32 %v1720, 7
        %v1722 = vsub.s32 %v1719, %v1721
        %v1723 = vrot.slane %v1715, %v1722
        %v1725 = vunpack.c.l.s4 1983009808
        %v1726 = vunpack.c.0.s8 %v1725
        %v1727 = vlaneseq
        %v1728 = vshrl.u32 %v1727, 7
        %v1729 = vsub.s32 %v1726, %v1728
        %v1730 = vrot.slane %v1716, %v1729
        %v1731 = vcombine.low %v1244, %v1264
        %v1732 = vcombine.high %v1244, %v1264
        %v1734 = vunpack.c.l.s4 1983009808
        %v1735 = vunpack.c.0.s8 %v1734
        %v1736 = vlaneseq
        %v1737 = vshrl.u32 %v1736, 7
        %v1738 = vsub.s32 %v1735, %v1737
        %v1739 = vrot.slane %v1731, %v1738
        %v1741 = vunpack.c.l.s4 1983009808
        %v1742 = vunpack.c.0.s8 %v1741
        %v1743 = vlaneseq
        %v1744 = vshrl.u32 %v1743, 7
        %v1745 = vsub.s32 %v1742, %v1744
        %v1746 = vrot.slane %v1732, %v1745
        %v1747 = vcombine.low %v1274, %v1294
        %v1748 = vcombine.high %v1274, %v1294
        %v1750 = vunpack.c.l.s4 1983009808
        %v1751 = vunpack.c.0.s8 %v1750
        %v1752 = vlaneseq
        %v1753 = vshrl.u32 %v1752, 7
        %v1754 = vsub.s32 %v1751, %v1753
        %v1755 = vrot.slane %v1747, %v1754
        %v1757 = vunpack.c.l.s4 1983009808
        %v1758 = vunpack.c.0.s8 %v1757
        %v1759 = vlaneseq
        %v1760 = vshrl.u32 %v1759, 7
        %v1761 = vsub.s32 %v1758, %v1760
        %v1762 = vrot.slane %v1748, %v1761
        %v1763 = vcombine.low %v1284, %v1304
        %v1764 = vcombine.high %v1284, %v1304
        %v1766 = vunpack.c.l.s4 1983009808
        %v1767 = vunpack.c.0.s8 %v1766
        %v1768 = vlaneseq
        %v1769 = vshrl.u32 %v1768, 7
        %v1770 = vsub.s32 %v1767, %v1769
        %v1771 = vrot.slane %v1763, %v1770
        %v1773 = vunpack.c.l.s4 1983009808
        %v1774 = vunpack.c.0.s8 %v1773
        %v1775 = vlaneseq
        %v1776 = vshrl.u32 %v1775, 7
        %v1777 = vsub.s32 %v1774, %v1776
        %v1778 = vrot.slane %v1764, %v1777
        %v1779 = vcombine.low %v1723, %v1739
        %v1780 = vcombine.high %v1723, %v1739
        %v1782 = vunpack.c.l.s4 1934713408
        %v1783 = vunpack.c.0.s8 %v1782
        %v1784 = vlaneseq
        %v1785 = vshrl.u32 %v1784, 7
        %v1786 = vsub.s32 %v1783, %v1785
        %v1787 = vrot.slane %v1779, %v1786
        %v1789 = vunpack.c.l.s4 1934713408
        %v1790 = vunpack.c.0.s8 %v1789
        %v1791 = vlaneseq
        %v1792 = vshrl.u32 %v1791, 7
        %v1793 = vsub.s32 %v1790, %v1792
        %v1794 = vrot.slane %v1780, %v1793
        %v1795 = vcombine.low %v1730, %v1746
        %v1796 = vcombine.high %v1730, %v1746
        %v1798 = vunpack.c.l.s4 1934713408
        %v1799 = vunpack.c.0.s8 %v1798
        %v1800 = vlaneseq
        %v1801 = vshrl.u32 %v1800, 7
        %v1802 = vsub.s32 %v1799, %v1801
        %v1803 = vrot.slane %v1795, %v1802
        %v1805 = vunpack.c.l.s4 1934713408
        %v1806 = vunpack.c.0.s8 %v1805
        %v1807 = vlaneseq
        %v1808 = vshrl.u32 %v1807, 7
        %v1809 = vsub.s32 %v1806, %v1808
        %v1810 = vrot.slane %v1796, %v1809
        %v1811 = vcombine.low %v1755, %v1771
        %v1812 = vcombine.high %v1755, %v1771
        %v1814 = vunpack.c.l.s4 1934713408
        %v1815 = vunpack.c.0.s8 %v1814
        %v1816 = vlaneseq
        %v1817 = vshrl.u32 %v1816, 7
        %v1818 = vsub.s32 %v1815, %v1817
        %v1819 = vrot.slane %v1811, %v1818
        %v1821 = vunpack.c.l.s4 1934713408
        %v1822 = vunpack.c.0.s8 %v1821
        %v1823 = vlaneseq
        %v1824 = vshrl.u32 %v1823, 7
        %v1825 = vsub.s32 %v1822, %v1824
        %v1826 = vrot.slane %v1812, %v1825
        %v1827 = vcombine.low %v1762, %v1778
        %v1828 = vcombine.high %v1762, %v1778
        %v1830 = vunpack.c.l.s4 1934713408
        %v1831 = vunpack.c.0.s8 %v1830
        %v1832 = vlaneseq
        %v1833 = vshrl.u32 %v1832, 7
        %v1834 = vsub.s32 %v1831, %v1833
        %v1835 = vrot.slane %v1827, %v1834
        %v1837 = vunpack.c.l.s4 1934713408
        %v1838 = vunpack.c.0.s8 %v1837
        %v1839 = vlaneseq
        %v1840 = vshrl.u32 %v1839, 7
        %v1841 = vsub.s32 %v1838, %v1840
        %v1842 = vrot.slane %v1828, %v1841
        %v1843 = vcombine.low %v1787, %v1819
        %v1844 = vcombine.high %v1787, %v1819
        %v1845 = vcombine.low %v1794, %v1826
        %v1846 = vcombine.high %v1794, %v1826
        %v1847 = vcombine.low %v1803, %v1835
        %v1848 = vcombine.high %v1803, %v1835
        %v1849 = vcombine.low %v1810, %v1842
        %v1850 = vcombine.high %v1810, %v1842
        %v1851 = vadd.f32 %v876, %v1435
        %v1852 = vadd.f32 %v881, %v1571
        %v1853 = vadd.f32 %v886, %v1436
        %v1854 = vadd.f32 %v891, %v1572
        %v1855 = vadd.f32 %v896, %v1437
        %v1856 = vadd.f32 %v901, %v1573
        %v1857 = vadd.f32 %v906, %v1438
        %v1858 = vadd.f32 %v911, %v1574
        %v1859 = vadd.f32 %v916, %v1439
        %v1860 = vadd.f32 %v921, %v1575
        %v1861 = vadd.f32 %v926, %v1440
        %v1862 = vadd.f32 %v931, %v1576
        %v1863 = vadd.f32 %v936, %v1441
        %v1864 = vadd.f32 %v941, %v1577
        %v1865 = vadd.f32 %v946, %v1442
        %v1866 = vadd.f32 %v951, %v1578
        %v1867 = vadd.f32 %v956, %v1707
        %v1868 = vadd.f32 %v961, %v1843
        %v1869 = vadd.f32 %v966, %v1708
        %v1870 = vadd.f32 %v971, %v1844
        %v1871 = vadd.f32 %v976, %v1709
        %v1872 = vadd.f32 %v981, %v1845
        %v1873 = vadd.f32 %v986, %v1710
        %v1874 = vadd.f32 %v991, %v1846
        %v1875 = vadd.f32 %v996, %v1711
        %v1876 = vadd.f32 %v1001, %v1847
        %v1877 = vadd.f32 %v1006, %v1712
        %v1878 = vadd.f32 %v1011, %v1848
        %v1879 = vadd.f32 %v1016, %v1713
        %v1880 = vadd.f32 %v1021, %v1849
        %v1881 = vadd.f32 %v1026, %v1714
        %v1882 = vadd.f32 %v1031, %v1850
        %v1883 = vld [vmem:[%s747] sm:$0xff]
        %v1884 = vld [vmem:[%s747 + $0x8] sm:$0xff]
        %v1887 = vcombine.high %v1883, %v1883
        %v1889 = vunpack.c.l.s4 1966171168
        %v1890 = vunpack.c.0.s8 %v1889
        %v1891 = vlaneseq
        %v1892 = vshrl.u32 %v1891, 7
        %v1893 = vsub.s32 %v1890, %v1892
        %v1894 = vrot.slane %v1883, %v1893
        %v1896 = vunpack.c.l.s4 1966171168
        %v1897 = vunpack.c.0.s8 %v1896
        %v1898 = vlaneseq
        %v1899 = vshrl.u32 %v1898, 7
        %v1900 = vsub.s32 %v1897, %v1899
        %v1901 = vrot.slane %v1887, %v1900
        %v1902 = vcombine.high %v1894, %v1894
        %v1903 = vcombine.high %v1901, %v1901
        %v1905 = vunpack.c.l.s4 1966171168
        %v1906 = vunpack.c.0.s8 %v1905
        %v1907 = vlaneseq
        %v1908 = vshrl.u32 %v1907, 7
        %v1909 = vsub.s32 %v1906, %v1908
        %v1910 = vrot.slane %v1894, %v1909
        %v1912 = vunpack.c.l.s4 1966171168
        %v1913 = vunpack.c.0.s8 %v1912
        %v1914 = vlaneseq
        %v1915 = vshrl.u32 %v1914, 7
        %v1916 = vsub.s32 %v1913, %v1915
        %v1917 = vrot.slane %v1901, %v1916
        %v1919 = vunpack.c.l.s4 1966171168
        %v1920 = vunpack.c.0.s8 %v1919
        %v1921 = vlaneseq
        %v1922 = vshrl.u32 %v1921, 7
        %v1923 = vsub.s32 %v1920, %v1922
        %v1924 = vrot.slane %v1902, %v1923
        %v1926 = vunpack.c.l.s4 1966171168
        %v1927 = vunpack.c.0.s8 %v1926
        %v1928 = vlaneseq
        %v1929 = vshrl.u32 %v1928, 7
        %v1930 = vsub.s32 %v1927, %v1929
        %v1931 = vrot.slane %v1903, %v1930
        %v1932 = vcombine.high %v1910, %v1910
        %v1933 = vcombine.high %v1917, %v1917
        %v1934 = vcombine.high %v1924, %v1924
        %v1935 = vcombine.high %v1931, %v1931
        %v1936 = vcombine.high %v1884, %v1884
        %v1938 = vunpack.c.l.s4 1966171168
        %v1939 = vunpack.c.0.s8 %v1938
        %v1940 = vlaneseq
        %v1941 = vshrl.u32 %v1940, 7
        %v1942 = vsub.s32 %v1939, %v1941
        %v1943 = vrot.slane %v1884, %v1942
        %v1945 = vunpack.c.l.s4 1966171168
        %v1946 = vunpack.c.0.s8 %v1945
        %v1947 = vlaneseq
        %v1948 = vshrl.u32 %v1947, 7
        %v1949 = vsub.s32 %v1946, %v1948
        %v1950 = vrot.slane %v1936, %v1949
        %v1951 = vcombine.high %v1943, %v1943
        %v1952 = vcombine.high %v1950, %v1950
        %v1954 = vunpack.c.l.s4 1966171168
        %v1955 = vunpack.c.0.s8 %v1954
        %v1956 = vlaneseq
        %v1957 = vshrl.u32 %v1956, 7
        %v1958 = vsub.s32 %v1955, %v1957
        %v1959 = vrot.slane %v1943, %v1958
        %v1961 = vunpack.c.l.s4 1966171168
        %v1962 = vunpack.c.0.s8 %v1961
        %v1963 = vlaneseq
        %v1964 = vshrl.u32 %v1963, 7
        %v1965 = vsub.s32 %v1962, %v1964
        %v1966 = vrot.slane %v1950, %v1965
        %v1968 = vunpack.c.l.s4 1966171168
        %v1969 = vunpack.c.0.s8 %v1968
        %v1970 = vlaneseq
        %v1971 = vshrl.u32 %v1970, 7
        %v1972 = vsub.s32 %v1969, %v1971
        %v1973 = vrot.slane %v1951, %v1972
        %v1975 = vunpack.c.l.s4 1966171168
        %v1976 = vunpack.c.0.s8 %v1975
        %v1977 = vlaneseq
        %v1978 = vshrl.u32 %v1977, 7
        %v1979 = vsub.s32 %v1976, %v1978
        %v1980 = vrot.slane %v1952, %v1979
        %v1981 = vcombine.high %v1959, %v1959
        %v1982 = vcombine.high %v1966, %v1966
        %v1983 = vcombine.high %v1973, %v1973
        %v1984 = vcombine.high %v1980, %v1980
        %v1985 = vlaneseq
        %v1986 = vshrl.u32 %v1985, 7
        %v1987 = vsub.s32 0, %v1986
        %v1988 = vrot.slane %v1910, %v1987
        %v1989 = vlaneseq
        %v1990 = vshrl.u32 %v1989, 7
        %v1991 = vsub.s32 0, %v1990
        %v1992 = vrot.slane %v1924, %v1991
        %v1993 = vlaneseq
        %v1994 = vshrl.u32 %v1993, 7
        %v1995 = vsub.s32 0, %v1994
        %v1996 = vrot.slane %v1932, %v1995
        %v1997 = vlaneseq
        %v1998 = vshrl.u32 %v1997, 7
        %v1999 = vsub.s32 0, %v1998
        %v2000 = vrot.slane %v1934, %v1999
        %v2001 = vlaneseq
        %v2002 = vshrl.u32 %v2001, 7
        %v2003 = vsub.s32 0, %v2002
        %v2004 = vrot.slane %v1917, %v2003
        %v2005 = vlaneseq
        %v2006 = vshrl.u32 %v2005, 7
        %v2007 = vsub.s32 0, %v2006
        %v2008 = vrot.slane %v1931, %v2007
        %v2009 = vlaneseq
        %v2010 = vshrl.u32 %v2009, 7
        %v2011 = vsub.s32 0, %v2010
        %v2012 = vrot.slane %v1933, %v2011
        %v2013 = vlaneseq
        %v2014 = vshrl.u32 %v2013, 7
        %v2015 = vsub.s32 0, %v2014
        %v2016 = vrot.slane %v1935, %v2015
        %v2017 = vlaneseq
        %v2018 = vshrl.u32 %v2017, 7
        %v2019 = vsub.s32 0, %v2018
        %v2020 = vrot.slane %v1959, %v2019
        %v2021 = vlaneseq
        %v2022 = vshrl.u32 %v2021, 7
        %v2023 = vsub.s32 0, %v2022
        %v2024 = vrot.slane %v1973, %v2023
        %v2025 = vlaneseq
        %v2026 = vshrl.u32 %v2025, 7
        %v2027 = vsub.s32 0, %v2026
        %v2028 = vrot.slane %v1981, %v2027
        %v2029 = vlaneseq
        %v2030 = vshrl.u32 %v2029, 7
        %v2031 = vsub.s32 0, %v2030
        %v2032 = vrot.slane %v1983, %v2031
        %v2033 = vlaneseq
        %v2034 = vshrl.u32 %v2033, 7
        %v2035 = vsub.s32 0, %v2034
        %v2036 = vrot.slane %v1966, %v2035
        %v2037 = vlaneseq
        %v2038 = vshrl.u32 %v2037, 7
        %v2039 = vsub.s32 0, %v2038
        %v2040 = vrot.slane %v1980, %v2039
        %v2041 = vlaneseq
        %v2042 = vshrl.u32 %v2041, 7
        %v2043 = vsub.s32 0, %v2042
        %v2044 = vrot.slane %v1982, %v2043
        %v2045 = vlaneseq
        %v2046 = vshrl.u32 %v2045, 7
        %v2047 = vsub.s32 0, %v2046
        %v2048 = vrot.slane %v1984, %v2047
        %v2065 = vadd.f32 %v1851, %v1988
        %v2066 = vadd.f32 %v1852, %v1988
        %v2067 = vadd.f32 %v1853, %v1992
        %v2068 = vadd.f32 %v1854, %v1992
        %v2069 = vadd.f32 %v1855, %v1996
        %v2070 = vadd.f32 %v1856, %v1996
        %v2071 = vadd.f32 %v1857, %v2000
        %v2072 = vadd.f32 %v1858, %v2000
        %v2073 = vadd.f32 %v1859, %v2004
        %v2074 = vadd.f32 %v1860, %v2004
        %v2075 = vadd.f32 %v1861, %v2008
        %v2076 = vadd.f32 %v1862, %v2008
        %v2077 = vadd.f32 %v1863, %v2012
        %v2078 = vadd.f32 %v1864, %v2012
        %v2079 = vadd.f32 %v1865, %v2016
        %v2080 = vadd.f32 %v1866, %v2016
        %v2081 = vadd.f32 %v1867, %v2020
        %v2082 = vadd.f32 %v1868, %v2020
        %v2083 = vadd.f32 %v1869, %v2024
        %v2084 = vadd.f32 %v1870, %v2024
        %v2085 = vadd.f32 %v1871, %v2028
        %v2086 = vadd.f32 %v1872, %v2028
        %v2087 = vadd.f32 %v1873, %v2032
        %v2088 = vadd.f32 %v1874, %v2032
        %v2089 = vadd.f32 %v1875, %v2036
        %v2090 = vadd.f32 %v1876, %v2036
        %v2091 = vadd.f32 %v1877, %v2040
        %v2092 = vadd.f32 %v1878, %v2040
        %v2093 = vadd.f32 %v1879, %v2044
        %v2094 = vadd.f32 %v1880, %v2044
        %v2095 = vadd.f32 %v1881, %v2048
        %v2096 = vadd.f32 %v1882, %v2048
        %v2097 = vld [vmem:[%s757] sm:$0xff]
        %v2098 = vld [vmem:[%s757 + $0x8] sm:$0xff]
        %v2099 = vadd.f32 %v2065, %v2097
        %v2100 = vadd.f32 %v2066, %v2098
        %v2101 = vadd.f32 %v2067, %v2097
        %v2102 = vadd.f32 %v2068, %v2098
        %v2103 = vadd.f32 %v2069, %v2097
        %v2104 = vadd.f32 %v2070, %v2098
        %v2105 = vadd.f32 %v2071, %v2097
        %v2106 = vadd.f32 %v2072, %v2098
        %v2107 = vadd.f32 %v2073, %v2097
        %v2108 = vadd.f32 %v2074, %v2098
        %v2109 = vadd.f32 %v2075, %v2097
        %v2110 = vadd.f32 %v2076, %v2098
        %v2111 = vadd.f32 %v2077, %v2097
        %v2112 = vadd.f32 %v2078, %v2098
        %v2113 = vadd.f32 %v2079, %v2097
        %v2114 = vadd.f32 %v2080, %v2098
        %v2115 = vadd.f32 %v2081, %v2097
        %v2116 = vadd.f32 %v2082, %v2098
        %v2117 = vadd.f32 %v2083, %v2097
        %v2118 = vadd.f32 %v2084, %v2098
        %v2119 = vadd.f32 %v2085, %v2097
        %v2120 = vadd.f32 %v2086, %v2098
        %v2121 = vadd.f32 %v2087, %v2097
        %v2122 = vadd.f32 %v2088, %v2098
        %v2123 = vadd.f32 %v2089, %v2097
        %v2124 = vadd.f32 %v2090, %v2098
        %v2125 = vadd.f32 %v2091, %v2097
        %v2126 = vadd.f32 %v2092, %v2098
        %v2127 = vadd.f32 %v2093, %v2097
        %v2128 = vadd.f32 %v2094, %v2098
        %v2129 = vadd.f32 %v2095, %v2097
        %v2130 = vadd.f32 %v2096, %v2098
        %v2131 = vmul.f32 %v2099, %v2099
        %v2132 = vmul.f32 %v2100, %v2100
        %v2133 = vmul.f32 %v2101, %v2101
        %v2134 = vmul.f32 %v2102, %v2102
        %v2135 = vmul.f32 %v2103, %v2103
        %v2136 = vmul.f32 %v2104, %v2104
        %v2137 = vmul.f32 %v2105, %v2105
        %v2138 = vmul.f32 %v2106, %v2106
        %v2139 = vmul.f32 %v2107, %v2107
        %v2140 = vmul.f32 %v2108, %v2108
        %v2141 = vmul.f32 %v2109, %v2109
        %v2142 = vmul.f32 %v2110, %v2110
        %v2143 = vmul.f32 %v2111, %v2111
        %v2144 = vmul.f32 %v2112, %v2112
        %v2145 = vmul.f32 %v2113, %v2113
        %v2146 = vmul.f32 %v2114, %v2114
        %v2147 = vmul.f32 %v2115, %v2115
        %v2148 = vmul.f32 %v2116, %v2116
        %v2149 = vmul.f32 %v2117, %v2117
        %v2150 = vmul.f32 %v2118, %v2118
        %v2151 = vmul.f32 %v2119, %v2119
        %v2152 = vmul.f32 %v2120, %v2120
        %v2153 = vmul.f32 %v2121, %v2121
        %v2154 = vmul.f32 %v2122, %v2122
        %v2155 = vmul.f32 %v2123, %v2123
        %v2156 = vmul.f32 %v2124, %v2124
        %v2157 = vmul.f32 %v2125, %v2125
        %v2158 = vmul.f32 %v2126, %v2126
        %v2159 = vmul.f32 %v2127, %v2127
        %v2160 = vmul.f32 %v2128, %v2128
        %v2161 = vmul.f32 %v2129, %v2129
        %v2162 = vmul.f32 %v2130, %v2130
        %v2163 = vmul.f32 %v2099, %v2131
        %v2164 = vmul.f32 %v2100, %v2132
        %v2165 = vmul.f32 %v2101, %v2133
        %v2166 = vmul.f32 %v2102, %v2134
        %v2167 = vmul.f32 %v2103, %v2135
        %v2168 = vmul.f32 %v2104, %v2136
        %v2169 = vmul.f32 %v2105, %v2137
        %v2170 = vmul.f32 %v2106, %v2138
        %v2171 = vmul.f32 %v2107, %v2139
        %v2172 = vmul.f32 %v2108, %v2140
        %v2173 = vmul.f32 %v2109, %v2141
        %v2174 = vmul.f32 %v2110, %v2142
        %v2175 = vmul.f32 %v2111, %v2143
        %v2176 = vmul.f32 %v2112, %v2144
        %v2177 = vmul.f32 %v2113, %v2145
        %v2178 = vmul.f32 %v2114, %v2146
        %v2179 = vmul.f32 %v2115, %v2147
        %v2180 = vmul.f32 %v2116, %v2148
        %v2181 = vmul.f32 %v2117, %v2149
        %v2182 = vmul.f32 %v2118, %v2150
        %v2183 = vmul.f32 %v2119, %v2151
        %v2184 = vmul.f32 %v2120, %v2152
        %v2185 = vmul.f32 %v2121, %v2153
        %v2186 = vmul.f32 %v2122, %v2154
        %v2187 = vmul.f32 %v2123, %v2155
        %v2188 = vmul.f32 %v2124, %v2156
        %v2189 = vmul.f32 %v2125, %v2157
        %v2190 = vmul.f32 %v2126, %v2158
        %v2191 = vmul.f32 %v2127, %v2159
        %v2192 = vmul.f32 %v2128, %v2160
        %v2193 = vmul.f32 %v2129, %v2161
        %v2194 = vmul.f32 %v2130, %v2162
        %v2195 = vmul.f32 %v2163, 0.044715
        %v2196 = vmul.f32 %v2164, 0.044715
        %v2197 = vmul.f32 %v2165, 0.044715
        %v2198 = vmul.f32 %v2166, 0.044715
        %v2199 = vmul.f32 %v2167, 0.044715
        %v2200 = vmul.f32 %v2168, 0.044715
        %v2201 = vmul.f32 %v2169, 0.044715
        %v2202 = vmul.f32 %v2170, 0.044715
        %v2203 = vmul.f32 %v2171, 0.044715
        %v2204 = vmul.f32 %v2172, 0.044715
        %v2205 = vmul.f32 %v2173, 0.044715
        %v2206 = vmul.f32 %v2174, 0.044715
        %v2207 = vmul.f32 %v2175, 0.044715
        %v2208 = vmul.f32 %v2176, 0.044715
        %v2209 = vmul.f32 %v2177, 0.044715
        %v2210 = vmul.f32 %v2178, 0.044715
        %v2211 = vmul.f32 %v2179, 0.044715
        %v2212 = vmul.f32 %v2180, 0.044715
        %v2213 = vmul.f32 %v2181, 0.044715
        %v2214 = vmul.f32 %v2182, 0.044715
        %v2215 = vmul.f32 %v2183, 0.044715
        %v2216 = vmul.f32 %v2184, 0.044715
        %v2217 = vmul.f32 %v2185, 0.044715
        %v2218 = vmul.f32 %v2186, 0.044715
        %v2219 = vmul.f32 %v2187, 0.044715
        %v2220 = vmul.f32 %v2188, 0.044715
        %v2221 = vmul.f32 %v2189, 0.044715
        %v2222 = vmul.f32 %v2190, 0.044715
        %v2223 = vmul.f32 %v2191, 0.044715
        %v2224 = vmul.f32 %v2192, 0.044715
        %v2225 = vmul.f32 %v2193, 0.044715
        %v2226 = vmul.f32 %v2194, 0.044715
        %v2227 = vadd.f32 %v2099, %v2195
        %v2228 = vadd.f32 %v2100, %v2196
        %v2229 = vadd.f32 %v2101, %v2197
        %v2230 = vadd.f32 %v2102, %v2198
        %v2231 = vadd.f32 %v2103, %v2199
        %v2232 = vadd.f32 %v2104, %v2200
        %v2233 = vadd.f32 %v2105, %v2201
        %v2234 = vadd.f32 %v2106, %v2202
        %v2235 = vadd.f32 %v2107, %v2203
        %v2236 = vadd.f32 %v2108, %v2204
        %v2237 = vadd.f32 %v2109, %v2205
        %v2238 = vadd.f32 %v2110, %v2206
        %v2239 = vadd.f32 %v2111, %v2207
        %v2240 = vadd.f32 %v2112, %v2208
        %v2241 = vadd.f32 %v2113, %v2209
        %v2242 = vadd.f32 %v2114, %v2210
        %v2243 = vadd.f32 %v2115, %v2211
        %v2244 = vadd.f32 %v2116, %v2212
        %v2245 = vadd.f32 %v2117, %v2213
        %v2246 = vadd.f32 %v2118, %v2214
        %v2247 = vadd.f32 %v2119, %v2215
        %v2248 = vadd.f32 %v2120, %v2216
        %v2249 = vadd.f32 %v2121, %v2217
        %v2250 = vadd.f32 %v2122, %v2218
        %v2251 = vadd.f32 %v2123, %v2219
        %v2252 = vadd.f32 %v2124, %v2220
        %v2253 = vadd.f32 %v2125, %v2221
        %v2254 = vadd.f32 %v2126, %v2222
        %v2255 = vadd.f32 %v2127, %v2223
        %v2256 = vadd.f32 %v2128, %v2224
        %v2257 = vadd.f32 %v2129, %v2225
        %v2258 = vadd.f32 %v2130, %v2226
        %v2259 = vmul.f32 %v2227, 0.7978846
        %v2260 = vmul.f32 %v2228, 0.7978846
        %v2261 = vmul.f32 %v2229, 0.7978846
        %v2262 = vmul.f32 %v2230, 0.7978846
        %v2263 = vmul.f32 %v2231, 0.7978846
        %v2264 = vmul.f32 %v2232, 0.7978846
        %v2265 = vmul.f32 %v2233, 0.7978846
        %v2266 = vmul.f32 %v2234, 0.7978846
        %v2267 = vmul.f32 %v2235, 0.7978846
        %v2268 = vmul.f32 %v2236, 0.7978846
        %v2269 = vmul.f32 %v2237, 0.7978846
        %v2270 = vmul.f32 %v2238, 0.7978846
        %v2271 = vmul.f32 %v2239, 0.7978846
        %v2272 = vmul.f32 %v2240, 0.7978846
        %v2273 = vmul.f32 %v2241, 0.7978846
        %v2274 = vmul.f32 %v2242, 0.7978846
        %v2275 = vmul.f32 %v2243, 0.7978846
        %v2276 = vmul.f32 %v2244, 0.7978846
        %v2277 = vmul.f32 %v2245, 0.7978846
        %v2278 = vmul.f32 %v2246, 0.7978846
        %v2279 = vmul.f32 %v2247, 0.7978846
        %v2280 = vmul.f32 %v2248, 0.7978846
        %v2281 = vmul.f32 %v2249, 0.7978846
        %v2282 = vmul.f32 %v2250, 0.7978846
        %v2283 = vmul.f32 %v2251, 0.7978846
        %v2284 = vmul.f32 %v2252, 0.7978846
        %v2285 = vmul.f32 %v2253, 0.7978846
        %v2286 = vmul.f32 %v2254, 0.7978846
        %v2287 = vmul.f32 %v2255, 0.7978846
        %v2288 = vmul.f32 %v2256, 0.7978846
        %v2289 = vmul.f32 %v2257, 0.7978846
        %v2290 = vmul.f32 %v2258, 0.7978846
        %v2291 = vtanh.pop %v2259
        %v2292 = vtanh.pop %v2260
        %v2293 = vtanh.pop %v2261
        %v2294 = vtanh.pop %v2262
        %v2295 = vtanh.pop %v2263
        %v2296 = vtanh.pop %v2264
        %v2297 = vtanh.pop %v2265
        %v2298 = vtanh.pop %v2266
        %v2299 = vtanh.pop %v2267
        %v2300 = vtanh.pop %v2268
        %v2301 = vtanh.pop %v2269
        %v2302 = vtanh.pop %v2270
        %v2303 = vtanh.pop %v2271
        %v2304 = vtanh.pop %v2272
        %v2305 = vtanh.pop %v2273
        %v2306 = vtanh.pop %v2274
        %v2307 = vtanh.pop %v2275
        %v2308 = vtanh.pop %v2276
        %v2309 = vtanh.pop %v2277
        %v2310 = vtanh.pop %v2278
        %v2311 = vtanh.pop %v2279
        %v2312 = vtanh.pop %v2280
        %v2313 = vtanh.pop %v2281
        %v2314 = vtanh.pop %v2282
        %v2315 = vtanh.pop %v2283
        %v2316 = vtanh.pop %v2284
        %v2317 = vtanh.pop %v2285
        %v2318 = vtanh.pop %v2286
        %v2319 = vtanh.pop %v2287
        %v2320 = vtanh.pop %v2288
        %v2321 = vtanh.pop %v2289
        %v2322 = vtanh.pop %v2290
        %v2323 = vadd.f32 %v2291, 1.0
        %v2324 = vadd.f32 %v2292, 1.0
        %v2325 = vadd.f32 %v2293, 1.0
        %v2326 = vadd.f32 %v2294, 1.0
        %v2327 = vadd.f32 %v2295, 1.0
        %v2328 = vadd.f32 %v2296, 1.0
        %v2329 = vadd.f32 %v2297, 1.0
        %v2330 = vadd.f32 %v2298, 1.0
        %v2331 = vadd.f32 %v2299, 1.0
        %v2332 = vadd.f32 %v2300, 1.0
        %v2333 = vadd.f32 %v2301, 1.0
        %v2334 = vadd.f32 %v2302, 1.0
        %v2335 = vadd.f32 %v2303, 1.0
        %v2336 = vadd.f32 %v2304, 1.0
        %v2337 = vadd.f32 %v2305, 1.0
        %v2338 = vadd.f32 %v2306, 1.0
        %v2339 = vadd.f32 %v2307, 1.0
        %v2340 = vadd.f32 %v2308, 1.0
        %v2341 = vadd.f32 %v2309, 1.0
        %v2342 = vadd.f32 %v2310, 1.0
        %v2343 = vadd.f32 %v2311, 1.0
        %v2344 = vadd.f32 %v2312, 1.0
        %v2345 = vadd.f32 %v2313, 1.0
        %v2346 = vadd.f32 %v2314, 1.0
        %v2347 = vadd.f32 %v2315, 1.0
        %v2348 = vadd.f32 %v2316, 1.0
        %v2349 = vadd.f32 %v2317, 1.0
        %v2350 = vadd.f32 %v2318, 1.0
        %v2351 = vadd.f32 %v2319, 1.0
        %v2352 = vadd.f32 %v2320, 1.0
        %v2353 = vadd.f32 %v2321, 1.0
        %v2354 = vadd.f32 %v2322, 1.0
        %v2355 = vmul.f32 %v2323, 0.5
        %v2356 = vmul.f32 %v2324, 0.5
        %v2357 = vmul.f32 %v2325, 0.5
        %v2358 = vmul.f32 %v2326, 0.5
        %v2359 = vmul.f32 %v2327, 0.5
        %v2360 = vmul.f32 %v2328, 0.5
        %v2361 = vmul.f32 %v2329, 0.5
        %v2362 = vmul.f32 %v2330, 0.5
        %v2363 = vmul.f32 %v2331, 0.5
        %v2364 = vmul.f32 %v2332, 0.5
        %v2365 = vmul.f32 %v2333, 0.5
        %v2366 = vmul.f32 %v2334, 0.5
        %v2367 = vmul.f32 %v2335, 0.5
        %v2368 = vmul.f32 %v2336, 0.5
        %v2369 = vmul.f32 %v2337, 0.5
        %v2370 = vmul.f32 %v2338, 0.5
        %v2371 = vmul.f32 %v2339, 0.5
        %v2372 = vmul.f32 %v2340, 0.5
        %v2373 = vmul.f32 %v2341, 0.5
        %v2374 = vmul.f32 %v2342, 0.5
        %v2375 = vmul.f32 %v2343, 0.5
        %v2376 = vmul.f32 %v2344, 0.5
        %v2377 = vmul.f32 %v2345, 0.5
        %v2378 = vmul.f32 %v2346, 0.5
        %v2379 = vmul.f32 %v2347, 0.5
        %v2380 = vmul.f32 %v2348, 0.5
        %v2381 = vmul.f32 %v2349, 0.5
        %v2382 = vmul.f32 %v2350, 0.5
        %v2383 = vmul.f32 %v2351, 0.5
        %v2384 = vmul.f32 %v2352, 0.5
        %v2385 = vmul.f32 %v2353, 0.5
        %v2386 = vmul.f32 %v2354, 0.5
        %v2387 = vmul.f32 %v2099, %v2355
        %v2388 = vmul.f32 %v2100, %v2356
        %v2389 = vmul.f32 %v2101, %v2357
        %v2390 = vmul.f32 %v2102, %v2358
        %v2391 = vmul.f32 %v2103, %v2359
        %v2392 = vmul.f32 %v2104, %v2360
        %v2393 = vmul.f32 %v2105, %v2361
        %v2394 = vmul.f32 %v2106, %v2362
        %v2395 = vmul.f32 %v2107, %v2363
        %v2396 = vmul.f32 %v2108, %v2364
        %v2397 = vmul.f32 %v2109, %v2365
        %v2398 = vmul.f32 %v2110, %v2366
        %v2399 = vmul.f32 %v2111, %v2367
        %v2400 = vmul.f32 %v2112, %v2368
        %v2401 = vmul.f32 %v2113, %v2369
        %v2402 = vmul.f32 %v2114, %v2370
        %v2403 = vmul.f32 %v2115, %v2371
        %v2404 = vmul.f32 %v2116, %v2372
        %v2405 = vmul.f32 %v2117, %v2373
        %v2406 = vmul.f32 %v2118, %v2374
        %v2407 = vmul.f32 %v2119, %v2375
        %v2408 = vmul.f32 %v2120, %v2376
        %v2409 = vmul.f32 %v2121, %v2377
        %v2410 = vmul.f32 %v2122, %v2378
        %v2411 = vmul.f32 %v2123, %v2379
        %v2412 = vmul.f32 %v2124, %v2380
        %v2413 = vmul.f32 %v2125, %v2381
        %v2414 = vmul.f32 %v2126, %v2382
        %v2415 = vmul.f32 %v2127, %v2383
        %v2416 = vmul.f32 %v2128, %v2384
        %v2417 = vmul.f32 %v2129, %v2385
        %v2418 = vmul.f32 %v2130, %v2386
        %v2419 = vld [vmem:[%s6] sm:$0xff]
        %v2420 = vld [vmem:[%s6 + $0x8] sm:$0xff]
        %v2421 = vld [vmem:[%s6 + $0x10] sm:$0xff]
        %v2422 = vld [vmem:[%s6 + $0x18] sm:$0xff]
        %v2423 = vld [vmem:[%s6 + $0x20] sm:$0xff]
        %v2424 = vld [vmem:[%s6 + $0x28] sm:$0xff]
        %v2425 = vld [vmem:[%s6 + $0x30] sm:$0xff]
        %v2426 = vld [vmem:[%s6 + $0x38] sm:$0xff]
        %v2427 = vld [vmem:[%s6 + $0x40] sm:$0xff]
        %v2428 = vld [vmem:[%s6 + $0x48] sm:$0xff]
        %v2429 = vld [vmem:[%s6 + $0x50] sm:$0xff]
        %v2430 = vld [vmem:[%s6 + $0x58] sm:$0xff]
        %v2431 = vld [vmem:[%s6 + $0x60] sm:$0xff]
        %v2432 = vld [vmem:[%s6 + $0x68] sm:$0xff]
        %v2433 = vld [vmem:[%s6 + $0x70] sm:$0xff]
        %v2434 = vld [vmem:[%s6 + $0x78] sm:$0xff]
        %v2435 = vld [vmem:[%s7] sm:$0x1]
        %v2437 = vlaneseq
        %v2438 = vshrl.u32 %v2437, 7
        %v2439 = vsub.s32 0, %v2438
        %v2440 = vrot.slane %v2435, %v2439
        %2442 = vmatprep.subr.mxu0 0.0
        %2443 = vmatpush1.msra.mxu0 %v2419
        %2444 = vmatprep.subr.mxu0 0.0
        %2445 = vmatpush1.msra.mxu0 %v2420
        %2446 = vmatprep.subr.mxu0 0.0
        %2447 = vmatpush1.msra.mxu0 %v2421
        %2448 = vmatprep.subr.mxu0 0.0
        %2449 = vmatpush1.msra.mxu0 %v2422
        %2450 = vmatprep.subr.mxu0 0.0
        %2451 = vmatpush1.msra.mxu0 %v2423
        %2452 = vmatprep.subr.mxu0 0.0
        %2453 = vmatpush1.msra.mxu0 %v2424
        %2454 = vmatprep.subr.mxu0 0.0
        %2455 = vmatpush1.msra.mxu0 %v2425
        %2456 = vmatprep.subr.mxu0 0.0
        %2457 = vmatpush1.msra.mxu0 %v2426
        %2458 = vmatprep.subr.mxu0 0.0
        %2459 = vmatpush1.msra.mxu0 %v2427
        %2460 = vmatprep.subr.mxu0 0.0
        %2461 = vmatpush1.msra.mxu0 %v2428
        %2462 = vmatprep.subr.mxu0 0.0
        %2463 = vmatpush1.msra.mxu0 %v2429
        %2464 = vmatprep.subr.mxu0 0.0
        %2465 = vmatpush1.msra.mxu0 %v2430
        %2466 = vmatprep.subr.mxu0 0.0
        %2467 = vmatpush1.msra.mxu0 %v2431
        %2468 = vmatprep.subr.mxu0 0.0
        %2469 = vmatpush1.msra.mxu0 %v2432
        %2470 = vmatprep.subr.mxu0 0.0
        %2471 = vmatpush1.msra.mxu0 %v2433
        %2472 = vmatprep.subr.mxu0 0.0
        %2473 = vmatpush1.msra.mxu0 %v2434
        %2474 = vmatprep.subr.mxu0 0.0
        %2475 = vmatpush1.msra.mxu0 0.0
        %2476 = vmatprep.subr.mxu0 0.0
        %2477 = vmatpush1.msra.mxu0 0.0
        %2478 = vmatprep.subr.mxu0 0.0
        %2479 = vmatpush1.msra.mxu0 0.0
        %2480 = vmatprep.subr.mxu0 0.0
        %2481 = vmatpush1.msra.mxu0 0.0
        %2482 = vmatprep.subr.mxu0 0.0
        %2483 = vmatpush1.msra.mxu0 0.0
        %2484 = vmatprep.subr.mxu0 0.0
        %2485 = vmatpush1.msra.mxu0 0.0
        %2486 = vmatprep.subr.mxu0 0.0
        %2487 = vmatpush1.msra.mxu0 0.0
        %2488 = vmatprep.subr.mxu0 0.0
        %2489 = vmatpush1.msra.mxu0 0.0
        %2490 = vmatprep.subr.mxu0 0.0
        %2491 = vmatpush1.msra.mxu0 0.0
        %2492 = vmatprep.subr.mxu0 0.0
        %2493 = vmatpush1.msra.mxu0 0.0
        %2494 = vmatprep.subr.mxu0 0.0
        %2495 = vmatpush1.msra.mxu0 0.0
        %2496 = vmatprep.subr.mxu0 0.0
        %2497 = vmatpush1.msra.mxu0 0.0
        %2498 = vmatprep.subr.mxu0 0.0
        %2499 = vmatpush1.msra.mxu0 0.0
        %2500 = vmatprep.subr.mxu0 0.0
        %2501 = vmatpush1.msra.mxu0 0.0
        %2502 = vmatprep.subr.mxu0 0.0
        %2503 = vmatpush1.msra.mxu0 0.0
        %2504 = vmatprep.subr.mxu0 0.0
        %2505 = vmatpush1.msra.mxu0 0.0
        %2506 = vmatprep.mubr.f32.mxu0 0.0
        %2507 = vmatmul.mubr.f32.gmra.mrb[0].mxu0 %v2387
        %v2508 = vpop.f32.mrb[0].mxu0
        %v2509 = vadd.f32 %v2440, %v2508
        %v2510 = vpop.f32.mrb[0].mxu0
        %2511 = vmatprep.mubr.f32.mxu0 0.0
        %2512 = vmatmul.mubr.f32.gmra.mrb[0].mxu0 %v2388
        %v2513 = vpop.f32.mrb[0].mxu0
        %v2514 = vadd.f32 %v2440, %v2513
        %v2515 = vpop.f32.mrb[0].mxu0
        %2516 = vmatprep.mubr.f32.mxu0 0.0
        %2517 = vmatmul.mubr.f32.gmra.mrb[0].mxu0 %v2389
        %v2518 = vpop.f32.mrb[0].mxu0
        %v2519 = vadd.f32 %v2440, %v2518
        %v2520 = vpop.f32.mrb[0].mxu0
        %2521 = vmatprep.mubr.f32.mxu0 0.0
        %2522 = vmatmul.mubr.f32.gmra.mrb[0].mxu0 %v2390
        %v2523 = vpop.f32.mrb[0].mxu0
        %v2524 = vadd.f32 %v2440, %v2523
        %v2525 = vpop.f32.mrb[0].mxu0
        %2526 = vmatprep.mubr.f32.mxu0 0.0
        %2527 = vmatmul.mubr.f32.gmra.mrb[0].mxu0 %v2391
        %v2528 = vpop.f32.mrb[0].mxu0
        %v2529 = vadd.f32 %v2440, %v2528
        %v2530 = vpop.f32.mrb[0].mxu0
        %2531 = vmatprep.mubr.f32.mxu0 0.0
        %2532 = vmatmul.mubr.f32.gmra.mrb[0].mxu0 %v2392
        %v2533 = vpop.f32.mrb[0].mxu0
        %v2534 = vadd.f32 %v2440, %v2533
        %v2535 = vpop.f32.mrb[0].mxu0
        %2536 = vmatprep.mubr.f32.mxu0 0.0
        %2537 = vmatmul.mubr.f32.gmra.mrb[0].mxu0 %v2393
        %v2538 = vpop.f32.mrb[0].mxu0
        %v2539 = vadd.f32 %v2440, %v2538
        %v2540 = vpop.f32.mrb[0].mxu0
        %2541 = vmatprep.mubr.f32.mxu0 0.0
        %2542 = vmatmul.mubr.f32.gmra.mrb[0].mxu0 %v2394
        %v2543 = vpop.f32.mrb[0].mxu0
        %v2544 = vadd.f32 %v2440, %v2543
        %v2545 = vpop.f32.mrb[0].mxu0
        %2546 = vmatprep.mubr.f32.mxu0 0.0
        %2547 = vmatmul.mubr.f32.gmra.mrb[0].mxu0 %v2395
        %v2548 = vpop.f32.mrb[0].mxu0
        %v2549 = vadd.f32 %v2440, %v2548
        %v2550 = vpop.f32.mrb[0].mxu0
        %2551 = vmatprep.mubr.f32.mxu0 0.0
        %2552 = vmatmul.mubr.f32.gmra.mrb[0].mxu0 %v2396
        %v2553 = vpop.f32.mrb[0].mxu0
        %v2554 = vadd.f32 %v2440, %v2553
        %v2555 = vpop.f32.mrb[0].mxu0
        %2556 = vmatprep.mubr.f32.mxu0 0.0
        %2557 = vmatmul.mubr.f32.gmra.mrb[0].mxu0 %v2397
        %v2558 = vpop.f32.mrb[0].mxu0
        %v2559 = vadd.f32 %v2440, %v2558
        %v2560 = vpop.f32.mrb[0].mxu0
        %2561 = vmatprep.mubr.f32.mxu0 0.0
        %2562 = vmatmul.mubr.f32.gmra.mrb[0].mxu0 %v2398
        %v2563 = vpop.f32.mrb[0].mxu0
        %v2564 = vadd.f32 %v2440, %v2563
        %v2565 = vpop.f32.mrb[0].mxu0
        %2566 = vmatprep.mubr.f32.mxu0 0.0
        %2567 = vmatmul.mubr.f32.gmra.mrb[0].mxu0 %v2399
        %v2568 = vpop.f32.mrb[0].mxu0
        %v2569 = vadd.f32 %v2440, %v2568
        %v2570 = vpop.f32.mrb[0].mxu0
        %2571 = vmatprep.mubr.f32.mxu0 0.0
        %2572 = vmatmul.mubr.f32.gmra.mrb[0].mxu0 %v2400
        %v2573 = vpop.f32.mrb[0].mxu0
        %v2574 = vadd.f32 %v2440, %v2573
        %v2575 = vpop.f32.mrb[0].mxu0
        %2576 = vmatprep.mubr.f32.mxu0 0.0
        %2577 = vmatmul.mubr.f32.gmra.mrb[0].mxu0 %v2401
        %v2578 = vpop.f32.mrb[0].mxu0
        %v2579 = vadd.f32 %v2440, %v2578
        %v2580 = vpop.f32.mrb[0].mxu0
        %2581 = vmatprep.mubr.f32.mxu0 0.0
        %2582 = vmatmul.mubr.f32.gmra.mrb[0].mxu0 %v2402
        %v2583 = vpop.f32.mrb[0].mxu0
        %v2584 = vadd.f32 %v2440, %v2583
        %v2585 = vpop.f32.mrb[0].mxu0
        %2586 = vmatprep.mubr.f32.mxu0 0.0
        %2587 = vmatmul.mubr.f32.gmra.mrb[0].mxu0 %v2403
        %v2588 = vpop.f32.mrb[0].mxu0
        %v2589 = vadd.f32 %v2440, %v2588
        %v2590 = vpop.f32.mrb[0].mxu0
        %2591 = vmatprep.mubr.f32.mxu0 0.0
        %2592 = vmatmul.mubr.f32.gmra.mrb[0].mxu0 %v2404
        %v2593 = vpop.f32.mrb[0].mxu0
        %v2594 = vadd.f32 %v2440, %v2593
        %v2595 = vpop.f32.mrb[0].mxu0
        %2596 = vmatprep.mubr.f32.mxu0 0.0
        %2597 = vmatmul.mubr.f32.gmra.mrb[0].mxu0 %v2405
        %v2598 = vpop.f32.mrb[0].mxu0
        %v2599 = vadd.f32 %v2440, %v2598
        %v2600 = vpop.f32.mrb[0].mxu0
        %2601 = vmatprep.mubr.f32.mxu0 0.0
        %2602 = vmatmul.mubr.f32.gmra.mrb[0].mxu0 %v2406
        %v2603 = vpop.f32.mrb[0].mxu0
        %v2604 = vadd.f32 %v2440, %v2603
        %v2605 = vpop.f32.mrb[0].mxu0
        %2606 = vmatprep.mubr.f32.mxu0 0.0
        %2607 = vmatmul.mubr.f32.gmra.mrb[0].mxu0 %v2407
        %v2608 = vpop.f32.mrb[0].mxu0
        %v2609 = vadd.f32 %v2440, %v2608
        %v2610 = vpop.f32.mrb[0].mxu0
        %2611 = vmatprep.mubr.f32.mxu0 0.0
        %2612 = vmatmul.mubr.f32.gmra.mrb[0].mxu0 %v2408
        %v2613 = vpop.f32.mrb[0].mxu0
        %v2614 = vadd.f32 %v2440, %v2613
        %v2615 = vpop.f32.mrb[0].mxu0
        %2616 = vmatprep.mubr.f32.mxu0 0.0
        %2617 = vmatmul.mubr.f32.gmra.mrb[0].mxu0 %v2409
        %v2618 = vpop.f32.mrb[0].mxu0
        %v2619 = vadd.f32 %v2440, %v2618
        %v2620 = vpop.f32.mrb[0].mxu0
        %2621 = vmatprep.mubr.f32.mxu0 0.0
        %2622 = vmatmul.mubr.f32.gmra.mrb[0].mxu0 %v2410
        %v2623 = vpop.f32.mrb[0].mxu0
        %v2624 = vadd.f32 %v2440, %v2623
        %v2625 = vpop.f32.mrb[0].mxu0
        %2626 = vmatprep.mubr.f32.mxu0 0.0
        %2627 = vmatmul.mubr.f32.gmra.mrb[0].mxu0 %v2411
        %v2628 = vpop.f32.mrb[0].mxu0
        %v2629 = vadd.f32 %v2440, %v2628
        %v2630 = vpop.f32.mrb[0].mxu0
        %2631 = vmatprep.mubr.f32.mxu0 0.0
        %2632 = vmatmul.mubr.f32.gmra.mrb[0].mxu0 %v2412
        %v2633 = vpop.f32.mrb[0].mxu0
        %v2634 = vadd.f32 %v2440, %v2633
        %v2635 = vpop.f32.mrb[0].mxu0
        %2636 = vmatprep.mubr.f32.mxu0 0.0
        %2637 = vmatmul.mubr.f32.gmra.mrb[0].mxu0 %v2413
        %v2638 = vpop.f32.mrb[0].mxu0
        %v2639 = vadd.f32 %v2440, %v2638
        %v2640 = vpop.f32.mrb[0].mxu0
        %2641 = vmatprep.mubr.f32.mxu0 0.0
        %2642 = vmatmul.mubr.f32.gmra.mrb[0].mxu0 %v2414
        %v2643 = vpop.f32.mrb[0].mxu0
        %v2644 = vadd.f32 %v2440, %v2643
        %v2645 = vpop.f32.mrb[0].mxu0
        %2646 = vmatprep.mubr.f32.mxu0 0.0
        %2647 = vmatmul.mubr.f32.gmra.mrb[0].mxu0 %v2415
        %v2648 = vpop.f32.mrb[0].mxu0
        %v2649 = vadd.f32 %v2440, %v2648
        %v2650 = vpop.f32.mrb[0].mxu0
        %2651 = vmatprep.mubr.f32.mxu0 0.0
        %2652 = vmatmul.mubr.f32.gmra.mrb[0].mxu0 %v2416
        %v2653 = vpop.f32.mrb[0].mxu0
        %v2654 = vadd.f32 %v2440, %v2653
        %v2655 = vpop.f32.mrb[0].mxu0
        %2656 = vmatprep.mubr.f32.mxu0 0.0
        %2657 = vmatmul.mubr.f32.gmra.mrb[0].mxu0 %v2417
        %v2658 = vpop.f32.mrb[0].mxu0
        %v2659 = vadd.f32 %v2440, %v2658
        %v2660 = vpop.f32.mrb[0].mxu0
        %2661 = vmatprep.mubr.f32.mxu0 0.0
        %2662 = vmatmul.mubr.f32.gmra.mrb[0].mxu0 %v2418
        %v2663 = vpop.f32.mrb[0].mxu0
        %v2664 = vadd.f32 %v2440, %v2663
        %v2665 = vpop.f32.mrb[0].mxu0
        %2666 = vdwg.mxu0
        %2667 = vst [vmem:[%s734] sm:$0xff] %v2509
        %2668 = vst [vmem:[%s734 + $0x8] sm:$0xff] %v2514
        %2669 = vst [vmem:[%s734 + $0x10] sm:$0xff] %v2519
        %2670 = vst [vmem:[%s734 + $0x18] sm:$0xff] %v2524
        %2671 = vst [vmem:[%s734 + $0x20] sm:$0xff] %v2529
        %2672 = vst [vmem:[%s734 + $0x28] sm:$0xff] %v2534
        %2673 = vst [vmem:[%s734 + $0x30] sm:$0xff] %v2539
        %2674 = vst [vmem:[%s734 + $0x38] sm:$0xff] %v2544
        %2675 = vst [vmem:[%s734 + $0x40] sm:$0xff] %v2549
        %2676 = vst [vmem:[%s734 + $0x48] sm:$0xff] %v2554
        %2677 = vst [vmem:[%s734 + $0x50] sm:$0xff] %v2559
        %2678 = vst [vmem:[%s734 + $0x58] sm:$0xff] %v2564
        %2679 = vst [vmem:[%s734 + $0x60] sm:$0xff] %v2569
        %2680 = vst [vmem:[%s734 + $0x68] sm:$0xff] %v2574
        %2681 = vst [vmem:[%s734 + $0x70] sm:$0xff] %v2579
        %2682 = vst [vmem:[%s734 + $0x78] sm:$0xff] %v2584
        %2683 = vst [vmem:[%s734 + $0x80] sm:$0xff] %v2589
        %2684 = vst [vmem:[%s734 + $0x88] sm:$0xff] %v2594
        %2685 = vst [vmem:[%s734 + $0x90] sm:$0xff] %v2599
        %2686 = vst [vmem:[%s734 + $0x98] sm:$0xff] %v2604
        %2687 = vst [vmem:[%s734 + $0xa0] sm:$0xff] %v2609
        %2688 = vst [vmem:[%s734 + $0xa8] sm:$0xff] %v2614
        %2689 = vst [vmem:[%s734 + $0xb0] sm:$0xff] %v2619
        %2690 = vst [vmem:[%s734 + $0xb8] sm:$0xff] %v2624
        %2691 = vst [vmem:[%s734 + $0xc0] sm:$0xff] %v2629
        %2692 = vst [vmem:[%s734 + $0xc8] sm:$0xff] %v2634
        %2693 = vst [vmem:[%s734 + $0xd0] sm:$0xff] %v2639
        %2694 = vst [vmem:[%s734 + $0xd8] sm:$0xff] %v2644
        %2695 = vst [vmem:[%s734 + $0xe0] sm:$0xff] %v2649
        %2696 = vst [vmem:[%s734 + $0xe8] sm:$0xff] %v2654
        %2697 = vst [vmem:[%s734 + $0xf0] sm:$0xff] %v2659
        %2698 = vst [vmem:[%s734 + $0xf8] sm:$0xff] %v2664
        %s2699 = sand.u32 %s253, 1
        %s2700 = scalar_lea.sflag [#allocation5], %s2699
        %s2701 = sand.u32 %s253, 1
        %s2702 = smul.addr %s2701, 256
        %s2703 = scalar_lea.vmem [#allocation4], %s2702
        // Predicated region
        $region129: #{edge_mlp.1} parent=119 // pred_check
          %p2704 = pneg %p263
        $region130: #{edge_mlp.1} parent=119 // pred_check_branch
          %2706 = sbr.rel (%p2704) target = $region132
        $region131: #{edge_mlp.1} parent=119 // pred_region
          #allocation7 [shape = 'u32[6]{0}', space=smem, size = 0x18, scoped, tag = 'DMA stride descriptor']
          %s2707 = smul.u32 16, %s28
          %s2708 = smul.u32 2, %s29
          %s2710 = ssub.s32 4096, 4096
          %2711 = vsyncadd %s2700, %s2710
          %s2712 = smul.addr %s2707, 4
          %s2713 = sadd.s32 %s2708, %s2712
          %s2714 = smul.addr %s27, 128
          %s2715 = sadd.s32 %s2713, %s2714
          %s2716 = smul.addr %s2715, 128
          %s2717 = scalar_lea.hbm %s8, %s2716
          %s2719 = sshll.u32 1, 14
          %s2720 = sxor.u32 4294967295, %s2719
          %s2723 = sshll.u32 7, 18
          %s2724 = sxor.u32 4294967295, %s2723
          %s2725 = sand.u32 0, %s2724
          %s2727 = sor.u32 %s2725, 0
          %s2729 = sshll.u32 3, 24
          %s2730 = sxor.u32 4294967295, %s2729
          %s2731 = sand.u32 %s2727, %s2730
          %s2733 = sor.u32 %s2731, 0
          %s2734 = sshll.u32 %s2703, 4
          %s2735 = int_to_ptr.vmem [resolvable:$true] %s2734
          %2741 = sst [smem:[#allocation7]] 256
          %s2742 = scalar_lea.smem [#allocation7], 1
          %2743 = sst [smem:[%s2742]] 512
          %s2744 = scalar_lea.smem [#allocation7], 2
          %2745 = sst [smem:[%s2744]] 2
          %s2746 = scalar_lea.smem [#allocation7], 3
          %2747 = sst [smem:[%s2746]] 128
          %s2748 = scalar_lea.smem [#allocation7], 4
          %2749 = sst [smem:[%s2748]] 128
          %s2750 = scalar_lea.smem [#allocation7], 5
          %2751 = sst [smem:[%s2750]] 8
          %2753 = dma.general %s2735, 4096, %s2717, %s2700, [#allocation6], [#allocation7], %s2733, 0
        $region132: #{edge_mlp.1} parent=119 // pred_fallthru
          _
      $region120: #{edge_mlp.1} parent=5 // pred_fallthru
        _
      %p2754 = scmp.le.s32.totalorder 2, %s17
      // Predicated region
      $region133: #{edge_mlp.1} parent=5 // pred_check
        %p2755 = pneg %p2754
      $region134: #{edge_mlp.1} parent=5 // pred_check_branch
        %2757 = sbr.rel (%p2755) target = $region136
      $region135: #{edge_mlp.1} parent=5 // pred_region
        %s2758 = ssub.s32 %s17, 2
        // Predicated region
        $region137: #{edge_mlp.1} parent=135 // pred_check
          %p2759 = pneg %p269
        $region138: #{edge_mlp.1} parent=135 // pred_check_branch
          %2761 = sbr.rel (%p2759) target = $region140
        $region139: #{edge_mlp.1} parent=135 // pred_region
          %s2762 = sand.u32 %s254, 1
          %s2763 = scalar_lea.sflag [#allocation5], %s2762
          %s2764 = sand.u32 %s254, 1
          %s2765 = smul.addr %s2764, 256
          %s2766 = scalar_lea.vmem [#allocation4], %s2765
          %2767 = dma.done %s2763, 4096
        $region140: #{edge_mlp.1} parent=135 // pred_fallthru
          _
      $region136: #{edge_mlp.1} parent=5 // pred_fallthru
        _
    $region6: #{edge_mlp.1} parent=1 // loop_footer
      %s21 = sadd.s32 1, %s17
    $region7: #{edge_mlp.1} parent=1 // loop_footer_branch
      %16 = sbr.rel target = $region3
    $region8: #{edge_mlp.1} parent=1 // loop_exit
      _
    %2768 = vsyncpa [#allocation5], 1
    %s2769 = scalar_lea.sflag [#allocation5], 1
    %2770 = vsyncpa %s2769, 1

// kernel: edge_mlp.1
$region0: #{edge_mlp.1}
  #allocation0 [shape = 'u32[]', space=smem, size = 0x4, offset = 0x4, fixed_abs, tag = 'smem constant byte address 0x4 - core index']
  #allocation1 [shape = 'u32[144,128]{1,0:T(1,128)}', space=vmem, size = 0x12000, scoped, tag = 'internal scratch']
  #allocation6 [shape = 's32[]', space=sflag, size = 0x4, offset = 0, fixed_abs, tag = 'sflag constant byte address 0x0 - dummy sync flag']
  %s0 = inlined_call_operand.vmem [shape: f32[2,32,32,128], index: 0, kind: input, shape index: {}, may-alias: {0,1}]
  %s1 = inlined_call_operand.vmem [shape: f32[2,32,32,128], index: 1, kind: input, shape index: {}, may-alias: {0,1}]
  %s2 = inlined_call_operand.vmem [shape: f32[2,32,128], index: 2, kind: input, shape index: {}]
  %s3 = inlined_call_operand.vmem [shape: f32[2,32,128], index: 3, kind: input, shape index: {}]
  %s4 = inlined_call_operand.vmem [shape: f32[128,128], index: 4, kind: input, shape index: {}]
  %s5 = inlined_call_operand.vmem [shape: f32[128,128], index: 5, kind: input, shape index: {}]
  %s6 = inlined_call_operand.vmem [shape: f32[128,128], index: 6, kind: input, shape index: {}]
  %s7 = inlined_call_operand.vmem [shape: f32[1,128], index: 7, kind: input, shape index: {}]
  %s8 = inlined_call_operand.hbm [shape: f32[2,32,32,128], index: 8, kind: output, shape index: {}]
  %s9 = sld [smem:[#allocation0]]
  $region141: #{edge_mlp.1} parent=0
    _
  %s11 = ssub.s32 1, %s9
  %s12 = scalar_select 0, %s11, %s9
  $region1: #{edge_mlp.1} parent=0
    #allocation2 [shape = 'u8[262144]{0}', space=vmem, size = 0x40000, scoped, tag = 'input window, operand 0']
    #allocation3 [shape = 'u8[262144]{0}', space=vmem, size = 0x40000, scoped, tag = 'input window, operand 1']
    #allocation4 [shape = 'u8[262144]{0}', space=vmem, size = 0x40000, scoped, tag = 'output window, operand 0']
    #allocation5 [shape = 's32[2]{0}', space=sflag, size = 0x8, scoped, tag = 'scoped memory for edge_mlp.1']
    %13 = vsyncpa [#allocation5], 0
    %s14 = scalar_lea.sflag [#allocation5], 1
    %15 = vsyncpa %s14, 0
    loop: start=0, step=1, limit=10
    $region2: #{edge_mlp.1} parent=1 // loop_pre_header
      _
    $region3: #{edge_mlp.1} parent=1 // loop_header
      %s17 = sphi 0, %s21
      %p18 = scmp.ge.s32.totalorder %s17, 10
      %s24 = sphi 0, %s43
      %s25 = sphi 0, %s39
      %s26 = sphi 0, %s35
      %s27 = sphi 0, %s24
      %s28 = sphi 0, %s25
      %s29 = sphi 0, %s26
      %s30 = sphi 0, %s27
      %s31 = sphi 0, %s28
      %s32 = sphi 0, %s29
      %s50 = sphi 0, %s52
      %s53 = sphi 0, %s50
      %s54 = sphi 0, %s53
      %s70 = sphi 0, %s54
      %s80 = sphi 0, %s82
      %s83 = sphi 0, %s80
      %s84 = sphi 0, %s83
      %s100 = sphi 0, %s84
      %s108 = sphi 0, %s110
      %s111 = sphi 0, %s108
      %s112 = sphi 0, %s111
      %s128 = sphi 0, %s112
      %s136 = sphi 0, %s138
      %s139 = sphi 0, %s136
      %s140 = sphi 0, %s139
      %s156 = sphi 0, %s140
      %s160 = sphi 0, %s160
      %s162 = sphi 0, %s160
      %s163 = sphi 0, %s162
      %s177 = sphi 0, %s163
      %s181 = sphi 0, %s181
      %s183 = sphi 0, %s181
      %s184 = sphi 0, %s183
      %s198 = sphi 0, %s184
      %s202 = sphi 0, %s202
      %s204 = sphi 0, %s202
      %s205 = sphi 0, %s204
      %s219 = sphi 0, %s205
      %s223 = sphi 0, %s223
      %s225 = sphi 0, %s223
      %s226 = sphi 0, %s225
      %s240 = sphi 0, %s226
      %s250 = sphi 0, %s252
      %s253 = sphi 0, %s250
      %s254 = sphi 0, %s253
      %s270 = sphi 0, %s254
    $region4: #{edge_mlp.1} parent=1 // loop_header_branch
      %20 = sbr.rel (%p18) target = $region8
    $region5: #{edge_mlp.1} parent=1 // loop_body
      %s22 = ssub.s32 %s17, 1
      %s23 = ssub.s32 %s17, 2
      %s33 = sadd.s32 1, %s26
      %p34 = scmp.ge.s32.totalorder %s33, 2
      %s35 = scalar_select %p34, 0, %s33
      %s36 = sadd.s32 1, %s25
      %s37 = scalar_select %p34, %s36, %s25
      %p38 = scmp.ge.s32.totalorder %s37, 2
      %s39 = scalar_select %p38, 0, %s37
      %s40 = sadd.s32 1, %s24
      %s41 = scalar_select %p38, %s40, %s24
      %p42 = scmp.ge.s32.totalorder %s41, 2
      %s43 = scalar_select %p42, 0, %s41
      %s44 = ssub.s32 %s24, %s43
      %s45 = ssub.s32 %s25, %s39
      %s46 = sor.u32 %s44, %s45
      %s47 = ssub.s32 %s26, %s35
      %s48 = sor.u32 %s46, %s47
      %p49 = scmp.eq.s32.totalorder %s48, 0
      %s51 = sadd.s32 %s50, 1
      %s52 = scalar_select %p49, %s50, %s51
      %p55 = pneg %p49
      %p56 = scmp.eq.s32.totalorder %s17, 7
      %p57 = por %p55, %p56
      %p58 = scmp.ne.s32.totalorder %s50, %s53
      %p59 = scmp.eq.s32.totalorder %s17, 0
      %p60 = por %p58, %p59
      %p61 = scmp.ne.s32.totalorder %s50, %s53
      %p62 = scmp.eq.s32.totalorder %s22, 7
      %p63 = por %p61, %p62
      %p64 = scmp.ne.s32.totalorder %s53, %s54
      %p65 = scmp.eq.s32.totalorder %s22, 0
      %p66 = por %p64, %p65
      %p67 = scmp.ne.s32.totalorder %s53, %s54
      %p68 = scmp.eq.s32.totalorder %s23, 7
      %p69 = por %p67, %p68
      %p71 = scmp.ne.s32.totalorder %s54, %s70
      %p72 = scmp.eq.s32.totalorder %s23, 0
      %p73 = por %p71, %p72
      %s74 = ssub.s32 %s24, %s43
      %s75 = ssub.s32 %s26, %s35
      %s76 = sor.u32 %s74, %s75
      %s77 = ssub.s32 %s25, %s39
      %s78 = sor.u32 %s76, %s77
      %p79 = scmp.eq.s32.totalorder %s78, 0
      %s81 = sadd.s32 %s80, 1
      %s82 = scalar_select %p79, %s80, %s81
      %p85 = pneg %p79
      %p86 = scmp.eq.s32.totalorder %s17, 7
      %p87 = por %p85, %p86
      %p88 = scmp.ne.s32.totalorder %s80, %s83
      %p89 = scmp.eq.s32.totalorder %s17, 0
      %p90 = por %p88, %p89
      %p91 = scmp.ne.s32.totalorder %s80, %s83
      %p92 = scmp.eq.s32.totalorder %s22, 7
      %p93 = por %p91, %p92
      %p94 = scmp.ne.s32.totalorder %s83, %s84
      %p95 = scmp.eq.s32.totalorder %s22, 0
      %p96 = por %p94, %p95
      %p97 = scmp.ne.s32.totalorder %s83, %s84
      %p98 = scmp.eq.s32.totalorder %s23, 7
      %p99 = por %p97, %p98
      %p101 = scmp.ne.s32.totalorder %s84, %s100
      %p102 = scmp.eq.s32.totalorder %s23, 0
      %p103 = por %p101, %p102
      %s104 = ssub.s32 %s24, %s43
      %s105 = ssub.s32 %s25, %s39
      %s106 = sor.u32 %s104, %s105
      %p107 = scmp.eq.s32.totalorder %s106, 0
      %s109 = sadd.s32 %s108, 1
      %s110 = scalar_select %p107, %s108, %s109
      %p113 = pneg %p107
      %p114 = scmp.eq.s32.totalorder %s17, 7
      %p115 = por %p113, %p114
      %p116 = scmp.ne.s32.totalorder %s108, %s111
      %p117 = scmp.eq.s32.totalorder %s17, 0
      %p118 = por %p116, %p117
      %p119 = scmp.ne.s32.totalorder %s108, %s111
      %p120 = scmp.eq.s32.totalorder %s22, 7
      %p121 = por %p119, %p120
      %p122 = scmp.ne.s32.totalorder %s111, %s112
      %p123 = scmp.eq.s32.totalorder %s22, 0
      %p124 = por %p122, %p123
      %p125 = scmp.ne.s32.totalorder %s111, %s112
      %p126 = scmp.eq.s32.totalorder %s23, 7
      %p127 = por %p125, %p126
      %p129 = scmp.ne.s32.totalorder %s112, %s128
      %p130 = scmp.eq.s32.totalorder %s23, 0
      %p131 = por %p129, %p130
      %s132 = ssub.s32 %s24, %s43
      %s133 = ssub.s32 %s26, %s35
      %s134 = sor.u32 %s132, %s133
      %p135 = scmp.eq.s32.totalorder %s134, 0
      %s137 = sadd.s32 %s136, 1
      %s138 = scalar_select %p135, %s136, %s137
      %p141 = pneg %p135
      %p142 = scmp.eq.s32.totalorder %s17, 7
      %p143 = por %p141, %p142
      %p144 = scmp.ne.s32.totalorder %s136, %s139
      %p145 = scmp.eq.s32.totalorder %s17, 0
      %p146 = por %p144, %p145
      %p147 = scmp.ne.s32.totalorder %s136, %s139
      %p148 = scmp.eq.s32.totalorder %s22, 7
      %p149 = por %p147, %p148
      %p150 = scmp.ne.s32.totalorder %s139, %s140
      %p151 = scmp.eq.s32.totalorder %s22, 0
      %p152 = por %p150, %p151
      %p153 = scmp.ne.s32.totalorder %s139, %s140
      %p154 = scmp.eq.s32.totalorder %s23, 7
      %p155 = por %p153, %p154
      %p157 = scmp.ne.s32.totalorder %s140, %s156
      %p158 = scmp.eq.s32.totalorder %s23, 0
      %p159 = por %p157, %p158
      %s161 = sadd.s32 %s160, 1
      %p164 = scmp.eq.s32.totalorder %s17, 7
      %p165 = scmp.ne.s32.totalorder %s160, %s162
      %p166 = scmp.eq.s32.totalorder %s17, 0
      %p167 = por %p165, %p166
      %p168 = scmp.ne.s32.totalorder %s160, %s162
      %p169 = scmp.eq.s32.totalorder %s22, 7
      %p170 = por %p168, %p169
      %p171 = scmp.ne.s32.totalorder %s162, %s163
      %p172 = scmp.eq.s32.totalorder %s22, 0
      %p173 = por %p171, %p172
      %p174 = scmp.ne.s32.totalorder %s162, %s163
      %p175 = scmp.eq.s32.totalorder %s23, 7
      %p176 = por %p174, %p175
      %p178 = scmp.ne.s32.totalorder %s163, %s177
      %p179 = scmp.eq.s32.totalorder %s23, 0
      %p180 = por %p178, %p179
      %s182 = sadd.s32 %s181, 1
      %p185 = scmp.eq.s32.totalorder %s17, 7
      %p186 = scmp.ne.s32.totalorder %s181, %s183
      %p187 = scmp.eq.s32.totalorder %s17, 0
      %p188 = por %p186, %p187
      %p189 = scmp.ne.s32.totalorder %s181, %s183
      %p190 = scmp.eq.s32.totalorder %s22, 7
      %p191 = por %p189, %p190
      %p192 = scmp.ne.s32.totalorder %s183, %s184
      %p193 = scmp.eq.s32.totalorder %s22, 0
      %p194 = por %p192, %p193
      %p195 = scmp.ne.s32.totalorder %s183, %s184
      %p196 = scmp.eq.s32.totalorder %s23, 7
      %p197 = por %p195, %p196
      %p199 = scmp.ne.s32.totalorder %s184, %s198
      %p200 = scmp.eq.s32.totalorder %s23, 0
      %p201 = por %p199, %p200
      %s203 = sadd.s32 %s202, 1
      %p206 = scmp.eq.s32.totalorder %s17, 7
      %p207 = scmp.ne.s32.totalorder %s202, %s204
      %p208 = scmp.eq.s32.totalorder %s17, 0
      %p209 = por %p207, %p208
      %p210 = scmp.ne.s32.totalorder %s202, %s204
      %p211 = scmp.eq.s32.totalorder %s22, 7
      %p212 = por %p210, %p211
      %p213 = scmp.ne.s32.totalorder %s204, %s205
      %p214 = scmp.eq.s32.totalorder %s22, 0
      %p215 = por %p213, %p214
      %p216 = scmp.ne.s32.totalorder %s204, %s205
      %p217 = scmp.eq.s32.totalorder %s23, 7
      %p218 = por %p216, %p217
      %p220 = scmp.ne.s32.totalorder %s205, %s219
      %p221 = scmp.eq.s32.totalorder %s23, 0
      %p222 = por %p220, %p221
      %s224 = sadd.s32 %s223, 1
      %p227 = scmp.eq.s32.totalorder %s17, 7
      %p228 = scmp.ne.s32.totalorder %s223, %s225
      %p229 = scmp.eq.s32.totalorder %s17, 0
      %p230 = por %p228, %p229
      %p231 = scmp.ne.s32.totalorder %s223, %s225
      %p232 = scmp.eq.s32.totalorder %s22, 7
      %p233 = por %p231, %p232
      %p234 = scmp.ne.s32.totalorder %s225, %s226
      %p235 = scmp.eq.s32.totalorder %s22, 0
      %p236 = por %p234, %p235
      %p237 = scmp.ne.s32.totalorder %s225, %s226
      %p238 = scmp.eq.s32.totalorder %s23, 7
      %p239 = por %p237, %p238
      %p241 = scmp.ne.s32.totalorder %s226, %s240
      %p242 = scmp.eq.s32.totalorder %s23, 0
      %p243 = por %p241, %p242
      %s244 = ssub.s32 %s24, %s43
      %s245 = ssub.s32 %s25, %s39
      %s246 = sor.u32 %s244, %s245
      %s247 = ssub.s32 %s26, %s35
      %s248 = sor.u32 %s246, %s247
      %p249 = scmp.eq.s32.totalorder %s248, 0
      %s251 = sadd.s32 %s250, 1
      %s252 = scalar_select %p249, %s250, %s251
      %p255 = pneg %p249
      %p256 = scmp.eq.s32.totalorder %s17, 7
      %p257 = por %p255, %p256
      %p258 = scmp.ne.s32.totalorder %s250, %s253
      %p259 = scmp.eq.s32.totalorder %s17, 0
      %p260 = por %p258, %p259
      %p261 = scmp.ne.s32.totalorder %s250, %s253
      %p262 = scmp.eq.s32.totalorder %s22, 7
      %p263 = por %p261, %p262
      %p264 = scmp.ne.s32.totalorder %s253, %s254
      %p265 = scmp.eq.s32.totalorder %s22, 0
      %p266 = por %p264, %p265
      %p267 = scmp.ne.s32.totalorder %s253, %s254
      %p268 = scmp.eq.s32.totalorder %s23, 7
      %p269 = por %p267, %p268
      %p271 = scmp.ne.s32.totalorder %s254, %s270
      %p272 = scmp.eq.s32.totalorder %s23, 0
      %p273 = por %p271, %p272
      %p274 = scmp.le.s32.totalorder 1, %s17
      %p275 = scmp.lt.s32.totalorder %s17, 9
      %p276 = pnand %p274, %p275
      %p277 = pneg %p276
      // Predicated region
      $region9: #{edge_mlp.1} parent=5 // pred_check
        _
      $region10: #{edge_mlp.1} parent=5 // pred_check_branch
        %279 = sbr.rel (%p276) target = $region12
      $region11: #{edge_mlp.1} parent=5 // pred_region
        %s280 = ssub.s32 %s17, 1
        // Predicated region
        $region13: #{edge_mlp.1} parent=11 // pred_check
          %p281 = pneg %p173
        $region14: #{edge_mlp.1} parent=11 // pred_check_branch
          %283 = sbr.rel (%p281) target = $region16
        $region15: #{edge_mlp.1} parent=11 // pred_region
          _
        $region16: #{edge_mlp.1} parent=11 // pred_fallthru
          _
        // Predicated region
        $region17: #{edge_mlp.1} parent=11 // pred_check
          %p284 = pneg %p194
        $region18: #{edge_mlp.1} parent=11 // pred_check_branch
          %286 = sbr.rel (%p284) target = $region20
        $region19: #{edge_mlp.1} parent=11 // pred_region
          _
        $region20: #{edge_mlp.1} parent=11 // pred_fallthru
          _
        // Predicated region
        $region21: #{edge_mlp.1} parent=11 // pred_check
          %p287 = pneg %p215
        $region22: #{edge_mlp.1} parent=11 // pred_check_branch
          %289 = sbr.rel (%p287) target = $region24
        $region23: #{edge_mlp.1} parent=11 // pred_region
          _
        $region24: #{edge_mlp.1} parent=11 // pred_fallthru
          _
        // Predicated region
        $region25: #{edge_mlp.1} parent=11 // pred_check
          %p290 = pneg %p236
        $region26: #{edge_mlp.1} parent=11 // pred_check_branch
          %292 = sbr.rel (%p290) target = $region28
        $region27: #{edge_mlp.1} parent=11 // pred_region
          _
        $region28: #{edge_mlp.1} parent=11 // pred_fallthru
          _
      $region12: #{edge_mlp.1} parent=5 // pred_fallthru
        _
      %p293 = scmp.lt.s32.totalorder %s17, 8
      // Predicated region
      $region29: #{edge_mlp.1} parent=5 // pred_check
        %p294 = pneg %p293
      $region30: #{edge_mlp.1} parent=5 // pred_check_branch
        %296 = sbr.rel (%p294) target = $region32
      $region31: #{edge_mlp.1} parent=5 // pred_region
        // Predicated region
        $region33: #{edge_mlp.1} parent=31 // pred_check
          %p297 = pneg %p60
        $region34: #{edge_mlp.1} parent=31 // pred_check_branch
          %299 = sbr.rel (%p297) target = $region36
        $region35: #{edge_mlp.1} parent=31 // pred_region
          %s300 = sand.u32 %s50, 1
          %s301 = sand.u32 %s50, 1
          %s302 = smul.addr %s301, 256
          %s303 = scalar_lea.vmem [#allocation2], %s302
          %s304 = smul.u32 16, %s25
          %s305 = smul.u32 2, %s26
          %s306 = smul.addr %s304, 4
          %s307 = sadd.s32 %s305, %s306
          %s308 = smul.addr %s24, 128
          %s309 = sadd.s32 %s307, %s308
          %s310 = smul.addr %s309, 8
          %s311 = scalar_lea.vmem %s0, %s310
          // Predicated region
          $region37: #{edge_mlp.1} parent=35 // pred_check
            _
          $region38: #{edge_mlp.1} parent=35 // pred_check_branch
            %313 = sbr.rel (0) target = $region40
          $region39: #{edge_mlp.1} parent=35 // pred_region
            // Predicated region
            $region41: #{edge_mlp.1} parent=39 // pred_check
              _
            $region42: #{edge_mlp.1} parent=39 // pred_check_branch
              %315 = sbr.rel (0) target = $region44
            $region43: #{edge_mlp.1} parent=39 // pred_region
              // Predicated region
              $region56: #{edge_mlp.1} parent=43 // pred_check
                _
              $region57: #{edge_mlp.1} parent=43 // pred_check_branch
                %392 = sbr.rel (0) target = $region59
              $region58: #{edge_mlp.1} parent=43 // pred_region
                loop: start=0, step=1, limit=1
                $region60: #{edge_mlp.1} parent=58 // loop_pre_header
                  _
                $region61: #{edge_mlp.1} parent=58 // loop_header
                  %s394 = sphi 0, %s398
                  %p395 = scmp.ge.s32.totalorder %s394, 1
                  %s399 = sphi %s311, %s311
                  %s400 = sphi %s303, %s303
                $region62: #{edge_mlp.1} parent=58 // loop_header_branch
                  %397 = sbr.rel (%p395) target = $region66
                $region63: #{edge_mlp.1} parent=58 // loop_body
                  %v401 = vld [vmem:[%s399] sm:$0xff]
                  %402 = vst [vmem:[%s400] sm:$0xff] %v401
                  %v403 = vld [vmem:[%s399 + $0x8] sm:$0xff]
                  %404 = vst [vmem:[%s400 + $0x8] sm:$0xff] %v403
                  %v405 = vld [vmem:[%s399 + $0x20] sm:$0xff]
                  %406 = vst [vmem:[%s400 + $0x10] sm:$0xff] %v405
                  %v407 = vld [vmem:[%s399 + $0x28] sm:$0xff]
                  %408 = vst [vmem:[%s400 + $0x18] sm:$0xff] %v407
                  %v409 = vld [vmem:[%s399 + $0x40] sm:$0xff]
                  %410 = vst [vmem:[%s400 + $0x20] sm:$0xff] %v409
                  %v411 = vld [vmem:[%s399 + $0x48] sm:$0xff]
                  %412 = vst [vmem:[%s400 + $0x28] sm:$0xff] %v411
                  %v413 = vld [vmem:[%s399 + $0x60] sm:$0xff]
                  %414 = vst [vmem:[%s400 + $0x30] sm:$0xff] %v413
                  %v415 = vld [vmem:[%s399 + $0x68] sm:$0xff]
                  %416 = vst [vmem:[%s400 + $0x38] sm:$0xff] %v415
                  %v417 = vld [vmem:[%s399 + $0x80] sm:$0xff]
                  %418 = vst [vmem:[%s400 + $0x40] sm:$0xff] %v417
                  %v419 = vld [vmem:[%s399 + $0x88] sm:$0xff]
                  %420 = vst [vmem:[%s400 + $0x48] sm:$0xff] %v419
                  %v421 = vld [vmem:[%s399 + $0xa0] sm:$0xff]
                  %422 = vst [vmem:[%s400 + $0x50] sm:$0xff] %v421
                  %v423 = vld [vmem:[%s399 + $0xa8] sm:$0xff]
                  %424 = vst [vmem:[%s400 + $0x58] sm:$0xff] %v423
                  %v425 = vld [vmem:[%s399 + $0xc0] sm:$0xff]
                  %426 = vst [vmem:[%s400 + $0x60] sm:$0xff] %v425
                  %v427 = vld [vmem:[%s399 + $0xc8] sm:$0xff]
                  %428 = vst [vmem:[%s400 + $0x68] sm:$0xff] %v427
                  %v429 = vld [vmem:[%s399 + $0xe0] sm:$0xff]
                  %430 = vst [vmem:[%s400 + $0x70] sm:$0xff] %v429
                  %v431 = vld [vmem:[%s399 + $0xe8] sm:$0xff]
                  %432 = vst [vmem:[%s400 + $0x78] sm:$0xff] %v431
                  %v433 = vld [vmem:[%s399 + $0x100] sm:$0xff]
                  %434 = vst [vmem:[%s400 + $0x80] sm:$0xff] %v433
                  %v435 = vld [vmem:[%s399 + $0x108] sm:$0xff]
                  %436 = vst [vmem:[%s400 + $0x88] sm:$0xff] %v435
                  %v437 = vld [vmem:[%s399 + $0x120] sm:$0xff]
                  %438 = vst [vmem:[%s400 + $0x90] sm:$0xff] %v437
                  %v439 = vld [vmem:[%s399 + $0x128] sm:$0xff]
                  %440 = vst [vmem:[%s400 + $0x98] sm:$0xff] %v439
                  %v441 = vld [vmem:[%s399 + $0x140] sm:$0xff]
                  %442 = vst [vmem:[%s400 + $0xa0] sm:$0xff] %v441
                  %v443 = vld [vmem:[%s399 + $0x148] sm:$0xff]
                  %444 = vst [vmem:[%s400 + $0xa8] sm:$0xff] %v443
                  %v445 = vld [vmem:[%s399 + $0x160] sm:$0xff]
                  %446 = vst [vmem:[%s400 + $0xb0] sm:$0xff] %v445
                  %v447 = vld [vmem:[%s399 + $0x168] sm:$0xff]
                  %448 = vst [vmem:[%s400 + $0xb8] sm:$0xff] %v447
                  %v449 = vld [vmem:[%s399 + $0x180] sm:$0xff]
                  %450 = vst [vmem:[%s400 + $0xc0] sm:$0xff] %v449
                  %v451 = vld [vmem:[%s399 + $0x188] sm:$0xff]
                  %452 = vst [vmem:[%s400 + $0xc8] sm:$0xff] %v451
                  %v453 = vld [vmem:[%s399 + $0x1a0] sm:$0xff]
                  %454 = vst [vmem:[%s400 + $0xd0] sm:$0xff] %v453
                  %v455 = vld [vmem:[%s399 + $0x1a8] sm:$0xff]
                  %456 = vst [vmem:[%s400 + $0xd8] sm:$0xff] %v455
                  %v457 = vld [vmem:[%s399 + $0x1c0] sm:$0xff]
                  %458 = vst [vmem:[%s400 + $0xe0] sm:$0xff] %v457
                  %v459 = vld [vmem:[%s399 + $0x1c8] sm:$0xff]
                  %460 = vst [vmem:[%s400 + $0xe8] sm:$0xff] %v459
                  %v461 = vld [vmem:[%s399 + $0x1e0] sm:$0xff]
                  %462 = vst [vmem:[%s400 + $0xf0] sm:$0xff] %v461
                  %v463 = vld [vmem:[%s399 + $0x1e8] sm:$0xff]
                  %464 = vst [vmem:[%s400 + $0xf8] sm:$0xff] %v463
                $region64: #{edge_mlp.1} parent=58 // loop_footer
                  %s398 = sadd.s32 1, %s394
                $region65: #{edge_mlp.1} parent=58 // loop_footer_branch
                  %393 = sbr.rel target = $region61
                $region66: #{edge_mlp.1} parent=58 // loop_exit
                  _
              $region59: #{edge_mlp.1} parent=43 // pred_fallthru
                _
              // Predicated region
              $region67: #{edge_mlp.1} parent=43 // pred_check
                _
              $region68: #{edge_mlp.1} parent=43 // pred_check_branch
                %466 = sbr.rel target = $region70
              $region69: #{edge_mlp.1} parent=43 // pred_region
                _
              $region70: #{edge_mlp.1} parent=43 // pred_fallthru
                _
            $region44: #{edge_mlp.1} parent=39 // pred_fallthru
              _
            // Predicated region
            $region45: #{edge_mlp.1} parent=39 // pred_check
              _
            $region46: #{edge_mlp.1} parent=39 // pred_check_branch
              %317 = sbr.rel target = $region48
            $region47: #{edge_mlp.1} parent=39 // pred_region
              loop: start=0, step=1, limit=1
              $region49: #{edge_mlp.1} parent=47 // loop_pre_header
                _
              $region50: #{edge_mlp.1} parent=47 // loop_header
                %s320 = sphi 0, %s324
                %p321 = scmp.ge.s32.totalorder %s320, 1
                %s325 = sphi %s311, %s311
                %s326 = sphi %s303, %s303
              $region51: #{edge_mlp.1} parent=47 // loop_header_branch
                %323 = sbr.rel (%p321) target = $region55
              $region52: #{edge_mlp.1} parent=47 // loop_body
                %v327 = vld [vmem:[%s325] sm:$0xff]
                %328 = vst [vmem:[%s326] sm:$0xff] %v327
                %v329 = vld [vmem:[%s325 + $0x8] sm:$0xff]
                %330 = vst [vmem:[%s326 + $0x8] sm:$0xff] %v329
                %v331 = vld [vmem:[%s325 + $0x20] sm:$0xff]
                %332 = vst [vmem:[%s326 + $0x10] sm:$0xff] %v331
                %v333 = vld [vmem:[%s325 + $0x28] sm:$0xff]
                %334 = vst [vmem:[%s326 + $0x18] sm:$0xff] %v333
                %v335 = vld [vmem:[%s325 + $0x40] sm:$0xff]
                %336 = vst [vmem:[%s326 + $0x20] sm:$0xff] %v335
                %v337 = vld [vmem:[%s325 + $0x48] sm:$0xff]
                %338 = vst [vmem:[%s326 + $0x28] sm:$0xff] %v337
                %v339 = vld [vmem:[%s325 + $0x60] sm:$0xff]
                %340 = vst [vmem:[%s326 + $0x30] sm:$0xff] %v339
                %v341 = vld [vmem:[%s325 + $0x68] sm:$0xff]
                %342 = vst [vmem:[%s326 + $0x38] sm:$0xff] %v341
                %v343 = vld [vmem:[%s325 + $0x80] sm:$0xff]
                %344 = vst [vmem:[%s326 + $0x40] sm:$0xff] %v343
                %v345 = vld [vmem:[%s325 + $0x88] sm:$0xff]
                %346 = vst [vmem:[%s326 + $0x48] sm:$0xff] %v345
                %v347 = vld [vmem:[%s325 + $0xa0] sm:$0xff]
                %348 = vst [vmem:[%s326 + $0x50] sm:$0xff] %v347
                %v349 = vld [vmem:[%s325 + $0xa8] sm:$0xff]
                %350 = vst [vmem:[%s326 + $0x58] sm:$0xff] %v349
                %v351 = vld [vmem:[%s325 + $0xc0] sm:$0xff]
                %352 = vst [vmem:[%s326 + $0x60] sm:$0xff] %v351
                %v353 = vld [vmem:[%s325 + $0xc8] sm:$0xff]
                %354 = vst [vmem:[%s326 + $0x68] sm:$0xff] %v353
                %v355 = vld [vmem:[%s325 + $0xe0] sm:$0xff]
                %356 = vst [vmem:[%s326 + $0x70] sm:$0xff] %v355
                %v357 = vld [vmem:[%s325 + $0xe8] sm:$0xff]
                %358 = vst [vmem:[%s326 + $0x78] sm:$0xff] %v357
                %v359 = vld [vmem:[%s325 + $0x100] sm:$0xff]
                %360 = vst [vmem:[%s326 + $0x80] sm:$0xff] %v359
                %v361 = vld [vmem:[%s325 + $0x108] sm:$0xff]
                %362 = vst [vmem:[%s326 + $0x88] sm:$0xff] %v361
                %v363 = vld [vmem:[%s325 + $0x120] sm:$0xff]
                %364 = vst [vmem:[%s326 + $0x90] sm:$0xff] %v363
                %v365 = vld [vmem:[%s325 + $0x128] sm:$0xff]
                %366 = vst [vmem:[%s326 + $0x98] sm:$0xff] %v365
                %v367 = vld [vmem:[%s325 + $0x140] sm:$0xff]
                %368 = vst [vmem:[%s326 + $0xa0] sm:$0xff] %v367
                %v369 = vld [vmem:[%s325 + $0x148] sm:$0xff]
                %370 = vst [vmem:[%s326 + $0xa8] sm:$0xff] %v369
                %v371 = vld [vmem:[%s325 + $0x160] sm:$0xff]
                %372 = vst [vmem:[%s326 + $0xb0] sm:$0xff] %v371
                %v373 = vld [vmem:[%s325 + $0x168] sm:$0xff]
                %374 = vst [vmem:[%s326 + $0xb8] sm:$0xff] %v373
                %v375 = vld [vmem:[%s325 + $0x180] sm:$0xff]
                %376 = vst [vmem:[%s326 + $0xc0] sm:$0xff] %v375
                %v377 = vld [vmem:[%s325 + $0x188] sm:$0xff]
                %378 = vst [vmem:[%s326 + $0xc8] sm:$0xff] %v377
                %v379 = vld [vmem:[%s325 + $0x1a0] sm:$0xff]
                %380 = vst [vmem:[%s326 + $0xd0] sm:$0xff] %v379
                %v381 = vld [vmem:[%s325 + $0x1a8] sm:$0xff]
                %382 = vst [vmem:[%s326 + $0xd8] sm:$0xff] %v381
                %v383 = vld [vmem:[%s325 + $0x1c0] sm:$0xff]
                %384 = vst [vmem:[%s326 + $0xe0] sm:$0xff] %v383
                %v385 = vld [vmem:[%s325 + $0x1c8] sm:$0xff]
                %386 = vst [vmem:[%s326 + $0xe8] sm:$0xff] %v385
                %v387 = vld [vmem:[%s325 + $0x1e0] sm:$0xff]
                %388 = vst [vmem:[%s326 + $0xf0] sm:$0xff] %v387
                %v389 = vld [vmem:[%s325 + $0x1e8] sm:$0xff]
                %390 = vst [vmem:[%s326 + $0xf8] sm:$0xff] %v389
              $region53: #{edge_mlp.1} parent=47 // loop_footer
                %s324 = sadd.s32 1, %s320
              $region54: #{edge_mlp.1} parent=47 // loop_footer_branch
                %319 = sbr.rel target = $region50
              $region55: #{edge_mlp.1} parent=47 // loop_exit
                _
            $region48: #{edge_mlp.1} parent=39 // pred_fallthru
              _
          $region40: #{edge_mlp.1} parent=35 // pred_fallthru
            _
          %467 = vnop
        $region36: #{edge_mlp.1} parent=31 // pred_fallthru
          _
        // Predicated region
        $region71: #{edge_mlp.1} parent=31 // pred_check
          %p468 = pneg %p90
        $region72: #{edge_mlp.1} parent=31 // pred_check_branch
          %470 = sbr.rel (%p468) target = $region74
        $region73: #{edge_mlp.1} parent=31 // pred_region
          %s471 = sand.u32 %s80, 1
          %s472 = sand.u32 %s80, 1
          %s473 = smul.addr %s472, 256
          %s474 = scalar_lea.vmem [#allocation3], %s473
          %s475 = smul.u32 16, %s26
          %s476 = smul.u32 2, %s25
          %s477 = smul.addr %s475, 4
          %s478 = sadd.s32 %s476, %s477
          %s479 = smul.addr %s24, 128
          %s480 = sadd.s32 %s478, %s479
          %s481 = smul.addr %s480, 8
          %s482 = scalar_lea.vmem %s1, %s481
          // Predicated region
          $region75: #{edge_mlp.1} parent=73 // pred_check
            _
          $region76: #{edge_mlp.1} parent=73 // pred_check_branch
            %484 = sbr.rel (0) target = $region78
          $region77: #{edge_mlp.1} parent=73 // pred_region
            // Predicated region
            $region79: #{edge_mlp.1} parent=77 // pred_check
              _
            $region80: #{edge_mlp.1} parent=77 // pred_check_branch
              %486 = sbr.rel (0) target = $region82
            $region81: #{edge_mlp.1} parent=77 // pred_region
              // Predicated region
              $region94: #{edge_mlp.1} parent=81 // pred_check
                _
              $region95: #{edge_mlp.1} parent=81 // pred_check_branch
                %563 = sbr.rel (0) target = $region97
              $region96: #{edge_mlp.1} parent=81 // pred_region
                loop: start=0, step=1, limit=1
                $region98: #{edge_mlp.1} parent=96 // loop_pre_header
                  _
                $region99: #{edge_mlp.1} parent=96 // loop_header
                  %s565 = sphi 0, %s569
                  %p566 = scmp.ge.s32.totalorder %s565, 1
                  %s570 = sphi %s482, %s482
                  %s571 = sphi %s474, %s474
                $region100: #{edge_mlp.1} parent=96 // loop_header_branch
                  %568 = sbr.rel (%p566) target = $region104
                $region101: #{edge_mlp.1} parent=96 // loop_body
                  %v572 = vld [vmem:[%s570] sm:$0xff]
                  %573 = vst [vmem:[%s571] sm:$0xff] %v572
                  %v574 = vld [vmem:[%s570 + $0x8] sm:$0xff]
                  %575 = vst [vmem:[%s571 + $0x8] sm:$0xff] %v574
                  %v576 = vld [vmem:[%s570 + $0x20] sm:$0xff]
                  %577 = vst [vmem:[%s571 + $0x10] sm:$0xff] %v576
                  %v578 = vld [vmem:[%s570 + $0x28] sm:$0xff]
                  %579 = vst [vmem:[%s571 + $0x18] sm:$0xff] %v578
                  %v580 = vld [vmem:[%s570 + $0x40] sm:$0xff]
                  %581 = vst [vmem:[%s571 + $0x20] sm:$0xff] %v580
                  %v582 = vld [vmem:[%s570 + $0x48] sm:$0xff]
                  %583 = vst [vmem:[%s571 + $0x28] sm:$0xff] %v582
                  %v584 = vld [vmem:[%s570 + $0x60] sm:$0xff]
                  %585 = vst [vmem:[%s571 + $0x30] sm:$0xff] %v584
                  %v586 = vld [vmem:[%s570 + $0x68] sm:$0xff]
                  %587 = vst [vmem:[%s571 + $0x38] sm:$0xff] %v586
                  %v588 = vld [vmem:[%s570 + $0x80] sm:$0xff]
                  %589 = vst [vmem:[%s571 + $0x40] sm:$0xff] %v588
                  %v590 = vld [vmem:[%s570 + $0x88] sm:$0xff]
                  %591 = vst [vmem:[%s571 + $0x48] sm:$0xff] %v590
                  %v592 = vld [vmem:[%s570 + $0xa0] sm:$0xff]
                  %593 = vst [vmem:[%s571 + $0x50] sm:$0xff] %v592
                  %v594 = vld [vmem:[%s570 + $0xa8] sm:$0xff]
                  %595 = vst [vmem:[%s571 + $0x58] sm:$0xff] %v594
                  %v596 = vld [vmem:[%s570 + $0xc0] sm:$0xff]
                  %597 = vst [vmem:[%s571 + $0x60] sm:$0xff] %v596
                  %v598 = vld [vmem:[%s570 + $0xc8] sm:$0xff]
                  %599 = vst [vmem:[%s571 + $0x68] sm:$0xff] %v598
                  %v600 = vld [vmem:[%s570 + $0xe0] sm:$0xff]
                  %601 = vst [vmem:[%s571 + $0x70] sm:$0xff] %v600
                  %v602 = vld [vmem:[%s570 + $0xe8] sm:$0xff]
                  %603 = vst [vmem:[%s571 + $0x78] sm:$0xff] %v602
                  %v604 = vld [vmem:[%s570 + $0x100] sm:$0xff]
                  %605 = vst [vmem:[%s571 + $0x80] sm:$0xff] %v604
                  %v606 = vld [vmem:[%s570 + $0x108] sm:$0xff]
                  %607 = vst [vmem:[%s571 + $0x88] sm:$0xff] %v606
                  %v608 = vld [vmem:[%s570 + $0x120] sm:$0xff]
                  %609 = vst [vmem:[%s571 + $0x90] sm:$0xff] %v608
                  %v610 = vld [vmem:[%s570 + $0x128] sm:$0xff]
                  %611 = vst [vmem:[%s571 + $0x98] sm:$0xff] %v610
                  %v612 = vld [vmem:[%s570 + $0x140] sm:$0xff]
                  %613 = vst [vmem:[%s571 + $0xa0] sm:$0xff] %v612
                  %v614 = vld [vmem:[%s570 + $0x148] sm:$0xff]
                  %615 = vst [vmem:[%s571 + $0xa8] sm:$0xff] %v614
                  %v616 = vld [vmem:[%s570 + $0x160] sm:$0xff]
                  %617 = vst [vmem:[%s571 + $0xb0] sm:$0xff] %v616
                  %v618 = vld [vmem:[%s570 + $0x168] sm:$0xff]
                  %619 = vst [vmem:[%s571 + $0xb8] sm:$0xff] %v618
                  %v620 = vld [vmem:[%s570 + $0x180] sm:$0xff]
                  %621 = vst [vmem:[%s571 + $0xc0] sm:$0xff] %v620
                  %v622 = vld [vmem:[%s570 + $0x188] sm:$0xff]
                  %623 = vst [vmem:[%s571 + $0xc8] sm:$0xff] %v622
                  %v624 = vld [vmem:[%s570 + $0x1a0] sm:$0xff]
                  %625 = vst [vmem:[%s571 + $0xd0] sm:$0xff] %v624
                  %v626 = vld [vmem:[%s570 + $0x1a8] sm:$0xff]
                  %627 = vst [vmem:[%s571 + $0xd8] sm:$0xff] %v626
                  %v628 = vld [vmem:[%s570 + $0x1c0] sm:$0xff]
                  %629 = vst [vmem:[%s571 + $0xe0] sm:$0xff] %v628
                  %v630 = vld [vmem:[%s570 + $0x1c8] sm:$0xff]
                  %631 = vst [vmem:[%s571 + $0xe8] sm:$0xff] %v630
                  %v632 = vld [vmem:[%s570 + $0x1e0] sm:$0xff]
                  %633 = vst [vmem:[%s571 + $0xf0] sm:$0xff] %v632
                  %v634 = vld [vmem:[%s570 + $0x1e8] sm:$0xff]
                  %635 = vst [vmem:[%s571 + $0xf8] sm:$0xff] %v634
                $region102: #{edge_mlp.1} parent=96 // loop_footer
                  %s569 = sadd.s32 1, %s565
                $region103: #{edge_mlp.1} parent=96 // loop_footer_branch
                  %564 = sbr.rel target = $region99
                $region104: #{edge_mlp.1} parent=96 // loop_exit
                  _
              $region97: #{edge_mlp.1} parent=81 // pred_fallthru
                _
              // Predicated region
              $region105: #{edge_mlp.1} parent=81 // pred_check
                _
              $region106: #{edge_mlp.1} parent=81 // pred_check_branch
                %637 = sbr.rel target = $region108
              $region107: #{edge_mlp.1} parent=81 // pred_region
                _
              $region108: #{edge_mlp.1} parent=81 // pred_fallthru
                _
            $region82: #{edge_mlp.1} parent=77 // pred_fallthru
              _
            // Predicated region
            $region83: #{edge_mlp.1} parent=77 // pred_check
              _
            $region84: #{edge_mlp.1} parent=77 // pred_check_branch
              %488 = sbr.rel target = $region86
            $region85: #{edge_mlp.1} parent=77 // pred_region
              loop: start=0, step=1, limit=1
              $region87: #{edge_mlp.1} parent=85 // loop_pre_header
                _
              $region88: #{edge_mlp.1} parent=85 // loop_header
                %s491 = sphi 0, %s495
                %p492 = scmp.ge.s32.totalorder %s491, 1
                %s496 = sphi %s482, %s482
                %s497 = sphi %s474, %s474
              $region89: #{edge_mlp.1} parent=85 // loop_header_branch
                %494 = sbr.rel (%p492) target = $region93
              $region90: #{edge_mlp.1} parent=85 // loop_body
                %v498 = vld [vmem:[%s496] sm:$0xff]
                %499 = vst [vmem:[%s497] sm:$0xff] %v498
                %v500 = vld [vmem:[%s496 + $0x8] sm:$0xff]
                %501 = vst [vmem:[%s497 + $0x8] sm:$0xff] %v500
                %v502 = vld [vmem:[%s496 + $0x20] sm:$0xff]
                %503 = vst [vmem:[%s497 + $0x10] sm:$0xff] %v502
                %v504 = vld [vmem:[%s496 + $0x28] sm:$0xff]
                %505 = vst [vmem:[%s497 + $0x18] sm:$0xff] %v504
                %v506 = vld [vmem:[%s496 + $0x40] sm:$0xff]
                %507 = vst [vmem:[%s497 + $0x20] sm:$0xff] %v506
                %v508 = vld [vmem:[%s496 + $0x48] sm:$0xff]
                %509 = vst [vmem:[%s497 + $0x28] sm:$0xff] %v508
                %v510 = vld [vmem:[%s496 + $0x60] sm:$0xff]
                %511 = vst [vmem:[%s497 + $0x30] sm:$0xff] %v510
                %v512 = vld [vmem:[%s496 + $0x68] sm:$0xff]
                %513 = vst [vmem:[%s497 + $0x38] sm:$0xff] %v512
                %v514 = vld [vmem:[%s496 + $0x80] sm:$0xff]
                %515 = vst [vmem:[%s497 + $0x40] sm:$0xff] %v514
                %v516 = vld [vmem:[%s496 + $0x88] sm:$0xff]
                %517 = vst [vmem:[%s497 + $0x48] sm:$0xff] %v516
                %v518 = vld [vmem:[%s496 + $0xa0] sm:$0xff]
                %519 = vst [vmem:[%s497 + $0x50] sm:$0xff] %v518
                %v520 = vld [vmem:[%s496 + $0xa8] sm:$0xff]
                %521 = vst [vmem:[%s497 + $0x58] sm:$0xff] %v520
                %v522 = vld [vmem:[%s496 + $0xc0] sm:$0xff]
                %523 = vst [vmem:[%s497 + $0x60] sm:$0xff] %v522
                %v524 = vld [vmem:[%s496 + $0xc8] sm:$0xff]
                %525 = vst [vmem:[%s497 + $0x68] sm:$0xff] %v524
                %v526 = vld [vmem:[%s496 + $0xe0] sm:$0xff]
                %527 = vst [vmem:[%s497 + $0x70] sm:$0xff] %v526
                %v528 = vld [vmem:[%s496 + $0xe8] sm:$0xff]
                %529 = vst [vmem:[%s497 + $0x78] sm:$0xff] %v528
                %v530 = vld [vmem:[%s496 + $0x100] sm:$0xff]
                %531 = vst [vmem:[%s497 + $0x80] sm:$0xff] %v530
                %v532 = vld [vmem:[%s496 + $0x108] sm:$0xff]
                %533 = vst [vmem:[%s497 + $0x88] sm:$0xff] %v532
                %v534 = vld [vmem:[%s496 + $0x120] sm:$0xff]
                %535 = vst [vmem:[%s497 + $0x90] sm:$0xff] %v534
                %v536 = vld [vmem:[%s496 + $0x128] sm:$0xff]
                %537 = vst [vmem:[%s497 + $0x98] sm:$0xff] %v536
                %v538 = vld [vmem:[%s496 + $0x140] sm:$0xff]
                %539 = vst [vmem:[%s497 + $0xa0] sm:$0xff] %v538
                %v540 = vld [vmem:[%s496 + $0x148] sm:$0xff]
                %541 = vst [vmem:[%s497 + $0xa8] sm:$0xff] %v540
                %v542 = vld [vmem:[%s496 + $0x160] sm:$0xff]
                %543 = vst [vmem:[%s497 + $0xb0] sm:$0xff] %v542
                %v544 = vld [vmem:[%s496 + $0x168] sm:$0xff]
                %545 = vst [vmem:[%s497 + $0xb8] sm:$0xff] %v544
                %v546 = vld [vmem:[%s496 + $0x180] sm:$0xff]
                %547 = vst [vmem:[%s497 + $0xc0] sm:$0xff] %v546
                %v548 = vld [vmem:[%s496 + $0x188] sm:$0xff]
                %549 = vst [vmem:[%s497 + $0xc8] sm:$0xff] %v548
                %v550 = vld [vmem:[%s496 + $0x1a0] sm:$0xff]
                %551 = vst [vmem:[%s497 + $0xd0] sm:$0xff] %v550
                %v552 = vld [vmem:[%s496 + $0x1a8] sm:$0xff]
                %553 = vst [vmem:[%s497 + $0xd8] sm:$0xff] %v552
                %v554 = vld [vmem:[%s496 + $0x1c0] sm:$0xff]
                %555 = vst [vmem:[%s497 + $0xe0] sm:$0xff] %v554
                %v556 = vld [vmem:[%s496 + $0x1c8] sm:$0xff]
                %557 = vst [vmem:[%s497 + $0xe8] sm:$0xff] %v556
                %v558 = vld [vmem:[%s496 + $0x1e0] sm:$0xff]
                %559 = vst [vmem:[%s497 + $0xf0] sm:$0xff] %v558
                %v560 = vld [vmem:[%s496 + $0x1e8] sm:$0xff]
                %561 = vst [vmem:[%s497 + $0xf8] sm:$0xff] %v560
              $region91: #{edge_mlp.1} parent=85 // loop_footer
                %s495 = sadd.s32 1, %s491
              $region92: #{edge_mlp.1} parent=85 // loop_footer_branch
                %490 = sbr.rel target = $region88
              $region93: #{edge_mlp.1} parent=85 // loop_exit
                _
            $region86: #{edge_mlp.1} parent=77 // pred_fallthru
              _
          $region78: #{edge_mlp.1} parent=73 // pred_fallthru
            _
          %638 = vnop
        $region74: #{edge_mlp.1} parent=31 // pred_fallthru
          _
        // Predicated region
        $region109: #{edge_mlp.1} parent=31 // pred_check
          %p639 = pneg %p118
        $region110: #{edge_mlp.1} parent=31 // pred_check_branch
          %641 = sbr.rel (%p639) target = $region112
        $region111: #{edge_mlp.1} parent=31 // pred_region
          %s642 = smul.u32 2, %s25
          %p643 = scmp.lt.s32.totalorder %s24, 1
          %s644 = scalar_select %p643, %s24, 1
          %p645 = scmp.lt.s32.totalorder %s642, 3
          %s646 = scalar_select %p645, %s642, 3
          %s647 = smul.addr %s644, 4
          %s648 = sadd.s32 %s646, %s647
          %s649 = smul.addr %s648, 8
          %s650 = scalar_lea.vmem %s2, %s649
          %s651 = smul.u32 2, %s25
        $region112: #{edge_mlp.1} parent=31 // pred_fallthru
          _
        // Predicated region
        $region113: #{edge_mlp.1} parent=31 // pred_check
          %p652 = pneg %p146
        $region114: #{edge_mlp.1} parent=31 // pred_check_branch
          %654 = sbr.rel (%p652) target = $region116
        $region115: #{edge_mlp.1} parent=31 // pred_region
          %s655 = smul.u32 2, %s26
          %p656 = scmp.lt.s32.totalorder %s24, 1
          %s657 = scalar_select %p656, %s24, 1
          %p658 = scmp.lt.s32.totalorder %s655, 3
          %s659 = scalar_select %p658, %s655, 3
          %s660 = smul.addr %s657, 4
          %s661 = sadd.s32 %s659, %s660
          %s662 = smul.addr %s661, 8
          %s663 = scalar_lea.vmem %s3, %s662
          %s664 = smul.u32 2, %s26
        $region116: #{edge_mlp.1} parent=31 // pred_fallthru
          _
      $region32: #{edge_mlp.1} parent=5 // pred_fallthru
        _
      %p665 = scmp.le.s32.totalorder 1, %s17
      %p666 = scmp.lt.s32.totalorder %s17, 9
      %p667 = pnand %p665, %p666
      %p668 = pneg %p667
      // Predicated region
      $region117: #{edge_mlp.1} parent=5 // pred_check
        _
      $region118: #{edge_mlp.1} parent=5 // pred_check_branch
        %670 = sbr.rel (%p667) target = $region120
      $region119: #{edge_mlp.1} parent=5 // pred_region
        %s671 = ssub.s32 %s17, 1
        %s672 = sand.u32 %s53, 1
        %s673 = sand.u32 %s53, 1
        %s674 = smul.addr %s673, 256
        %s675 = scalar_lea.vmem [#allocation2], %s674
        // Predicated region
        $region121: #{edge_mlp.1} parent=119 // pred_check
          %p676 = pneg %p66
        $region122: #{edge_mlp.1} parent=119 // pred_check_branch
          %678 = sbr.rel (%p676) target = $region124
        $region123: #{edge_mlp.1} parent=119 // pred_region
          _
        $region124: #{edge_mlp.1} parent=119 // pred_fallthru
          _
        %s679 = sand.u32 %s83, 1
        %s680 = sand.u32 %s83, 1
        %s681 = smul.addr %s680, 256
        %s682 = scalar_lea.vmem [#allocation3], %s681
        // Predicated region
        $region125: #{edge_mlp.1} parent=119 // pred_check
          %p683 = pneg %p96
        $region126: #{edge_mlp.1} parent=119 // pred_check_branch
          %685 = sbr.rel (%p683) target = $region128
        $region127: #{edge_mlp.1} parent=119 // pred_region
          _
        $region128: #{edge_mlp.1} parent=119 // pred_fallthru
          _
        %s686 = sand.u32 %s53, 1
        %s687 = sand.u32 %s53, 1
        %s688 = smul.addr %s687, 256
        %s689 = scalar_lea.vmem [#allocation2], %s688
        %p690 = pneg %p66
        %p691 = pneg %p63
        %s692 = sand.u32 %s83, 1
        %s693 = sand.u32 %s83, 1
        %s694 = smul.addr %s693, 256
        %s695 = scalar_lea.vmem [#allocation3], %s694
        %p696 = pneg %p96
        %p697 = pneg %p93
        %s698 = smul.u32 2, %s28
        %p699 = scmp.lt.s32.totalorder %s27, 1
        %s700 = scalar_select %p699, %s27, 1
        %p701 = scmp.lt.s32.totalorder %s698, 3
        %s702 = scalar_select %p701, %s698, 3
        %s703 = smul.addr %s700, 4
        %s704 = sadd.s32 %s702, %s703
        %s705 = smul.addr %s704, 8
        %s706 = scalar_lea.vmem %s2, %s705
        %p707 = pneg %p124
        %p708 = pneg %p121
        %s709 = smul.u32 2, %s29
        %p710 = scmp.lt.s32.totalorder %s27, 1
        %s711 = scalar_select %p710, %s27, 1
        %p712 = scmp.lt.s32.totalorder %s709, 3
        %s713 = scalar_select %p712, %s709, 3
        %s714 = smul.addr %s711, 4
        %s715 = sadd.s32 %s713, %s714
        %s716 = smul.addr %s715, 8
        %s717 = scalar_lea.vmem %s3, %s716
        %p718 = pneg %p152
        %p719 = pneg %p149
        %p720 = pneg %p173
        %p721 = pneg %p170
        %p722 = pneg %p194
        %p723 = pneg %p191
        %p724 = pneg %p215
        %p725 = pneg %p212
        %p726 = pneg %p236
        %p727 = pneg %p233
        %p728 = pneg %p266
        %p729 = pneg %p263
        %s730 = sand.u32 %s253, 1
        %s731 = scalar_lea.sflag [#allocation5], %s730
        %s732 = sand.u32 %s253, 1
        %s733 = smul.addr %s732, 256
        %s734 = scalar_lea.vmem [#allocation4], %s733
        %s735 = smul.u32 16, %s28
        %s736 = smul.u32 2, %s29
        %s737 = smul.u32 16, %s29
        %s738 = smul.u32 2, %s28
        %s739 = smul.u32 2, %s28
        %p740 = scmp.lt.s32.totalorder %s27, 1
        %s741 = scalar_select %p740, %s27, 1
        %p742 = scmp.lt.s32.totalorder %s739, 3
        %s743 = scalar_select %p742, %s739, 3
        %s744 = smul.addr %s741, 4
        %s745 = sadd.s32 %s743, %s744
        %s746 = smul.addr %s745, 8
        %s747 = scalar_lea.vmem %s2, %s746
        %s748 = smul.u32 2, %s28
        %s749 = smul.u32 2, %s29
        %p750 = scmp.lt.s32.totalorder %s27, 1
        %s751 = scalar_select %p750, %s27, 1
        %p752 = scmp.lt.s32.totalorder %s749, 3
        %s753 = scalar_select %p752, %s749, 3
        %s754 = smul.addr %s751, 4
        %s755 = sadd.s32 %s753, %s754
        %s756 = smul.addr %s755, 8
        %s757 = scalar_lea.vmem %s3, %s756
        %s758 = smul.u32 2, %s29
        %s759 = smul.u32 16, %s28
        %s760 = smul.u32 2, %s29
        %v761 = vld [vmem:[%s675] sm:$0xff]
        %v762 = vld [vmem:[%s675 + $0x8] sm:$0xff]
        %v763 = vld [vmem:[%s675 + $0x10] sm:$0xff]
        %v764 = vld [vmem:[%s675 + $0x18] sm:$0xff]
        %v765 = vld [vmem:[%s675 + $0x20] sm:$0xff]
        %v766 = vld [vmem:[%s675 + $0x28] sm:$0xff]
        %v767 = vld [vmem:[%s675 + $0x30] sm:$0xff]
        %v768 = vld [vmem:[%s675 + $0x38] sm:$0xff]
        %v769 = vld [vmem:[%s675 + $0x40] sm:$0xff]
        %v770 = vld [vmem:[%s675 + $0x48] sm:$0xff]
        %v771 = vld [vmem:[%s675 + $0x50] sm:$0xff]
        %v772 = vld [vmem:[%s675 + $0x58] sm:$0xff]
        %v773 = vld [vmem:[%s675 + $0x60] sm:$0xff]
        %v774 = vld [vmem:[%s675 + $0x68] sm:$0xff]
        %v775 = vld [vmem:[%s675 + $0x70] sm:$0xff]
        %v776 = vld [vmem:[%s675 + $0x78] sm:$0xff]
        %v777 = vld [vmem:[%s675 + $0x80] sm:$0xff]
        %v778 = vld [vmem:[%s675 + $0x88] sm:$0xff]
        %v779 = vld [vmem:[%s675 + $0x90] sm:$0xff]
        %v780 = vld [vmem:[%s675 + $0x98] sm:$0xff]
        %v781 = vld [vmem:[%s675 + $0xa0] sm:$0xff]
        %v782 = vld [vmem:[%s675 + $0xa8] sm:$0xff]
        %v783 = vld [vmem:[%s675 + $0xb0] sm:$0xff]
        %v784 = vld [vmem:[%s675 + $0xb8] sm:$0xff]
        %v785 = vld [vmem:[%s675 + $0xc0] sm:$0xff]
        %v786 = vld [vmem:[%s675 + $0xc8] sm:$0xff]
        %v787 = vld [vmem:[%s675 + $0xd0] sm:$0xff]
        %v788 = vld [vmem:[%s675 + $0xd8] sm:$0xff]
        %v789 = vld [vmem:[%s675 + $0xe0] sm:$0xff]
        %v790 = vld [vmem:[%s675 + $0xe8] sm:$0xff]
        %v791 = vld [vmem:[%s675 + $0xf0] sm:$0xff]
        %v792 = vld [vmem:[%s675 + $0xf8] sm:$0xff]
        %v793 = vld [vmem:[%s4] sm:$0xff]
        %v794 = vld [vmem:[%s4 + $0x8] sm:$0xff]
        %v795 = vld [vmem:[%s4 + $0x10] sm:$0xff]
        %v796 = vld [vmem:[%s4 + $0x18] sm:$0xff]
        %v797 = vld [vmem:[%s4 + $0x20] sm:$0xff]
        %v798 = vld [vmem:[%s4 + $0x28] sm:$0xff]
        %v799 = vld [vmem:[%s4 + $0x30] sm:$0xff]
        %v800 = vld [vmem:[%s4 + $0x38] sm:$0xff]
        %v801 = vld [vmem:[%s4 + $0x40] sm:$0xff]
        %v802 = vld [vmem:[%s4 + $0x48] sm:$0xff]
        %v803 = vld [vmem:[%s4 + $0x50] sm:$0xff]
        %v804 = vld [vmem:[%s4 + $0x58] sm:$0xff]
        %v805 = vld [vmem:[%s4 + $0x60] sm:$0xff]
        %v806 = vld [vmem:[%s4 + $0x68] sm:$0xff]
        %v807 = vld [vmem:[%s4 + $0x70] sm:$0xff]
        %v808 = vld [vmem:[%s4 + $0x78] sm:$0xff]
        %809 = vmatprep.subr.mxu0 0.0
        %810 = vmatpush1.msra.mxu0 %v793
        %811 = vmatprep.subr.mxu0 0.0
        %812 = vmatpush1.msra.mxu0 %v794
        %813 = vmatprep.subr.mxu0 0.0
        %814 = vmatpush1.msra.mxu0 %v795
        %815 = vmatprep.subr.mxu0 0.0
        %816 = vmatpush1.msra.mxu0 %v796
        %817 = vmatprep.subr.mxu0 0.0
        %818 = vmatpush1.msra.mxu0 %v797
        %819 = vmatprep.subr.mxu0 0.0
        %820 = vmatpush1.msra.mxu0 %v798
        %821 = vmatprep.subr.mxu0 0.0
        %822 = vmatpush1.msra.mxu0 %v799
        %823 = vmatprep.subr.mxu0 0.0
        %824 = vmatpush1.msra.mxu0 %v800
        %825 = vmatprep.subr.mxu0 0.0
        %826 = vmatpush1.msra.mxu0 %v801
        %827 = vmatprep.subr.mxu0 0.0
        %828 = vmatpush1.msra.mxu0 %v802
        %829 = vmatprep.subr.mxu0 0.0
        %830 = vmatpush1.msra.mxu0 %v803
        %831 = vmatprep.subr.mxu0 0.0
        %832 = vmatpush1.msra.mxu0 %v804
        %833 = vmatprep.subr.mxu0 0.0
        %834 = vmatpush1.msra.mxu0 %v805
        %835 = vmatprep.subr.mxu0 0.0
        %836 = vmatpush1.msra.mxu0 %v806
        %837 = vmatprep.subr.mxu0 0.0
        %838 = vmatpush1.msra.mxu0 %v807
        %839 = vmatprep.subr.mxu0 0.0
        %840 = vmatpush1.msra.mxu0 %v808
        %841 = vmatprep.subr.mxu0 0.0
        %842 = vmatpush1.msra.mxu0 0.0
        %843 = vmatprep.subr.mxu0 0.0
        %844 = vmatpush1.msra.mxu0 0.0
        %845 = vmatprep.subr.mxu0 0.0
        %846 = vmatpush1.msra.mxu0 0.0
        %847 = vmatprep.subr.mxu0 0.0
        %848 = vmatpush1.msra.mxu0 0.0
        %849 = vmatprep.subr.mxu0 0.0
        %850 = vmatpush1.msra.mxu0 0.0
        %851 = vmatprep.subr.mxu0 0.0
        %852 = vmatpush1.msra.mxu0 0.0
        %853 = vmatprep.subr.mxu0 0.0
        %854 = vmatpush1.msra.mxu0 0.0
        %855 = vmatprep.subr.mxu0 0.0
        %856 = vmatpush1.msra.mxu0 0.0
        %857 = vmatprep.subr.mxu0 0.0
        %858 = vmatpush1.msra.mxu0 0.0
        %859 = vmatprep.subr.mxu0 0.0
        %860 = vmatpush1.msra.mxu0 0.0
        %861 = vmatprep.subr.mxu0 0.0
        %862 = vmatpush1.msra.mxu0 0.0
        %863 = vmatprep.subr.mxu0 0.0
        %864 = vmatpush1.msra.mxu0 0.0
        %865 = vmatprep.subr.mxu0 0.0
        %866 = vmatpush1.msra.mxu0 0.0
        %867 = vmatprep.subr.mxu0 0.0
        %868 = vmatpush1.msra.mxu0 0.0
        %869 = vmatprep.subr.mxu0 0.0
        %870 = vmatpush1.msra.mxu0 0.0
        %871 = vmatprep.subr.mxu0 0.0
        %872 = vmatpush1.msra.mxu0 0.0
        %873 = vmatprep.mubr.f32.mxu0 0.0
        %874 = vmatmul.mubr.f32.gmra.mrb[0].mxu0 %v761
        %v875 = vpop.f32.mrb[0].mxu0
        %v876 = vadd.f32 0.0, %v875
        %v877 = vpop.f32.mrb[0].mxu0
        %878 = vmatprep.mubr.f32.mxu0 0.0
        %879 = vmatmul.mubr.f32.gmra.mrb[0].mxu0 %v762
        %v880 = vpop.f32.mrb[0].mxu0
        %v881 = vadd.f32 0.0, %v880
        %v882 = vpop.f32.mrb[0].mxu0
        %883 = vmatprep.mubr.f32.mxu0 0.0
        %884 = vmatmul.mubr.f32.gmra.mrb[0].mxu0 %v763
        %v885 = vpop.f32.mrb[0].mxu0
        %v886 = vadd.f32 0.0, %v885
        %v887 = vpop.f32.mrb[0].mxu0
        %888 = vmatprep.mubr.f32.mxu0 0.0
        %889 = vmatmul.mubr.f32.gmra.mrb[0].mxu0 %v764
        %v890 = vpop.f32.mrb[0].mxu0
        %v891 = vadd.f32 0.0, %v890
        %v892 = vpop.f32.mrb[0].mxu0
        %893 = vmatprep.mubr.f32.mxu0 0.0
        %894 = vmatmul.mubr.f32.gmra.mrb[0].mxu0 %v765
        %v895 = vpop.f32.mrb[0].mxu0
        %v896 = vadd.f32 0.0, %v895
        %v897 = vpop.f32.mrb[0].mxu0
        %898 = vmatprep.mubr.f32.mxu0 0.0
        %899 = vmatmul.mubr.f32.gmra.mrb[0].mxu0 %v766
        %v900 = vpop.f32.mrb[0].mxu0
        %v901 = vadd.f32 0.0, %v900
        %v902 = vpop.f32.mrb[0].mxu0
        %903 = vmatprep.mubr.f32.mxu0 0.0
        %904 = vmatmul.mubr.f32.gmra.mrb[0].mxu0 %v767
        %v905 = vpop.f32.mrb[0].mxu0
        %v906 = vadd.f32 0.0, %v905
        %v907 = vpop.f32.mrb[0].mxu0
        %908 = vmatprep.mubr.f32.mxu0 0.0
        %909 = vmatmul.mubr.f32.gmra.mrb[0].mxu0 %v768
        %v910 = vpop.f32.mrb[0].mxu0
        %v911 = vadd.f32 0.0, %v910
        %v912 = vpop.f32.mrb[0].mxu0
        %913 = vmatprep.mubr.f32.mxu0 0.0
        %914 = vmatmul.mubr.f32.gmra.mrb[0].mxu0 %v769
        %v915 = vpop.f32.mrb[0].mxu0
        %v916 = vadd.f32 0.0, %v915
        %v917 = vpop.f32.mrb[0].mxu0
        %918 = vmatprep.mubr.f32.mxu0 0.0
        %919 = vmatmul.mubr.f32.gmra.mrb[0].mxu0 %v770
        %v920 = vpop.f32.mrb[0].mxu0
        %v921 = vadd.f32 0.0, %v920
        %v922 = vpop.f32.mrb[0].mxu0
        %923 = vmatprep.mubr.f32.mxu0 0.0
        %924 = vmatmul.mubr.f32.gmra.mrb[0].mxu0 %v771
        %v925 = vpop.f32.mrb[0].mxu0
        %v926 = vadd.f32 0.0, %v925
        %v927 = vpop.f32.mrb[0].mxu0
        %928 = vmatprep.mubr.f32.mxu0 0.0
        %929 = vmatmul.mubr.f32.gmra.mrb[0].mxu0 %v772
        %v930 = vpop.f32.mrb[0].mxu0
        %v931 = vadd.f32 0.0, %v930
        %v932 = vpop.f32.mrb[0].mxu0
        %933 = vmatprep.mubr.f32.mxu0 0.0
        %934 = vmatmul.mubr.f32.gmra.mrb[0].mxu0 %v773
        %v935 = vpop.f32.mrb[0].mxu0
        %v936 = vadd.f32 0.0, %v935
        %v937 = vpop.f32.mrb[0].mxu0
        %938 = vmatprep.mubr.f32.mxu0 0.0
        %939 = vmatmul.mubr.f32.gmra.mrb[0].mxu0 %v774
        %v940 = vpop.f32.mrb[0].mxu0
        %v941 = vadd.f32 0.0, %v940
        %v942 = vpop.f32.mrb[0].mxu0
        %943 = vmatprep.mubr.f32.mxu0 0.0
        %944 = vmatmul.mubr.f32.gmra.mrb[0].mxu0 %v775
        %v945 = vpop.f32.mrb[0].mxu0
        %v946 = vadd.f32 0.0, %v945
        %v947 = vpop.f32.mrb[0].mxu0
        %948 = vmatprep.mubr.f32.mxu0 0.0
        %949 = vmatmul.mubr.f32.gmra.mrb[0].mxu0 %v776
        %v950 = vpop.f32.mrb[0].mxu0
        %v951 = vadd.f32 0.0, %v950
        %v952 = vpop.f32.mrb[0].mxu0
        %953 = vmatprep.mubr.f32.mxu0 0.0
        %954 = vmatmul.mubr.f32.gmra.mrb[0].mxu0 %v777
        %v955 = vpop.f32.mrb[0].mxu0
        %v956 = vadd.f32 0.0, %v955
        %v957 = vpop.f32.mrb[0].mxu0
        %958 = vmatprep.mubr.f32.mxu0 0.0
        %959 = vmatmul.mubr.f32.gmra.mrb[0].mxu0 %v778
        %v960 = vpop.f32.mrb[0].mxu0
        %v961 = vadd.f32 0.0, %v960
        %v962 = vpop.f32.mrb[0].mxu0
        %963 = vmatprep.mubr.f32.mxu0 0.0
        %964 = vmatmul.mubr.f32.gmra.mrb[0].mxu0 %v779
        %v965 = vpop.f32.mrb[0].mxu0
        %v966 = vadd.f32 0.0, %v965
        %v967 = vpop.f32.mrb[0].mxu0
        %968 = vmatprep.mubr.f32.mxu0 0.0
        %969 = vmatmul.mubr.f32.gmra.mrb[0].mxu0 %v780
        %v970 = vpop.f32.mrb[0].mxu0
        %v971 = vadd.f32 0.0, %v970
        %v972 = vpop.f32.mrb[0].mxu0
        %973 = vmatprep.mubr.f32.mxu0 0.0
        %974 = vmatmul.mubr.f32.gmra.mrb[0].mxu0 %v781
        %v975 = vpop.f32.mrb[0].mxu0
        %v976 = vadd.f32 0.0, %v975
        %v977 = vpop.f32.mrb[0].mxu0
        %978 = vmatprep.mubr.f32.mxu0 0.0
        %979 = vmatmul.mubr.f32.gmra.mrb[0].mxu0 %v782
        %v980 = vpop.f32.mrb[0].mxu0
        %v981 = vadd.f32 0.0, %v980
        %v982 = vpop.f32.mrb[0].mxu0
        %983 = vmatprep.mubr.f32.mxu0 0.0
        %984 = vmatmul.mubr.f32.gmra.mrb[0].mxu0 %v783
        %v985 = vpop.f32.mrb[0].mxu0
        %v986 = vadd.f32 0.0, %v985
        %v987 = vpop.f32.mrb[0].mxu0
        %988 = vmatprep.mubr.f32.mxu0 0.0
        %989 = vmatmul.mubr.f32.gmra.mrb[0].mxu0 %v784
        %v990 = vpop.f32.mrb[0].mxu0
        %v991 = vadd.f32 0.0, %v990
        %v992 = vpop.f32.mrb[0].mxu0
        %993 = vmatprep.mubr.f32.mxu0 0.0
        %994 = vmatmul.mubr.f32.gmra.mrb[0].mxu0 %v785
        %v995 = vpop.f32.mrb[0].mxu0
        %v996 = vadd.f32 0.0, %v995
        %v997 = vpop.f32.mrb[0].mxu0
        %998 = vmatprep.mubr.f32.mxu0 0.0
        %999 = vmatmul.mubr.f32.gmra.mrb[0].mxu0 %v786
        %v1000 = vpop.f32.mrb[0].mxu0
        %v1001 = vadd.f32 0.0, %v1000
        %v1002 = vpop.f32.mrb[0].mxu0
        %1003 = vmatprep.mubr.f32.mxu0 0.0
        %1004 = vmatmul.mubr.f32.gmra.mrb[0].mxu0 %v787
        %v1005 = vpop.f32.mrb[0].mxu0
        %v1006 = vadd.f32 0.0, %v1005
        %v1007 = vpop.f32.mrb[0].mxu0
        %1008 = vmatprep.mubr.f32.mxu0 0.0
        %1009 = vmatmul.mubr.f32.gmra.mrb[0].mxu0 %v788
        %v1010 = vpop.f32.mrb[0].mxu0
        %v1011 = vadd.f32 0.0, %v1010
        %v1012 = vpop.f32.mrb[0].mxu0
        %1013 = vmatprep.mubr.f32.mxu0 0.0
        %1014 = vmatmul.mubr.f32.gmra.mrb[0].mxu0 %v789
        %v1015 = vpop.f32.mrb[0].mxu0
        %v1016 = vadd.f32 0.0, %v1015
        %v1017 = vpop.f32.mrb[0].mxu0
        %1018 = vmatprep.mubr.f32.mxu0 0.0
        %1019 = vmatmul.mubr.f32.gmra.mrb[0].mxu0 %v790
        %v1020 = vpop.f32.mrb[0].mxu0
        %v1021 = vadd.f32 0.0, %v1020
        %v1022 = vpop.f32.mrb[0].mxu0
        %1023 = vmatprep.mubr.f32.mxu0 0.0
        %1024 = vmatmul.mubr.f32.gmra.mrb[0].mxu0 %v791
        %v1025 = vpop.f32.mrb[0].mxu0
        %v1026 = vadd.f32 0.0, %v1025
        %v1027 = vpop.f32.mrb[0].mxu0
        %1028 = vmatprep.mubr.f32.mxu0 0.0
        %1029 = vmatmul.mubr.f32.gmra.mrb[0].mxu0 %v792
        %v1030 = vpop.f32.mrb[0].mxu0
        %v1031 = vadd.f32 0.0, %v1030
        %v1032 = vpop.f32.mrb[0].mxu0
        %1033 = vdwg.mxu0
        %v1034 = vld [vmem:[%s682] sm:$0xff]
        %v1035 = vld [vmem:[%s682 + $0x8] sm:$0xff]
        %v1036 = vld [vmem:[%s682 + $0x10] sm:$0xff]
        %v1037 = vld [vmem:[%s682 + $0x18] sm:$0xff]
        %v1038 = vld [vmem:[%s682 + $0x20] sm:$0xff]
        %v1039 = vld [vmem:[%s682 + $0x28] sm:$0xff]
        %v1040 = vld [vmem:[%s682 + $0x30] sm:$0xff]
        %v1041 = vld [vmem:[%s682 + $0x38] sm:$0xff]
        %v1042 = vld [vmem:[%s682 + $0x40] sm:$0xff]
        %v1043 = vld [vmem:[%s682 + $0x48] sm:$0xff]
        %v1044 = vld [vmem:[%s682 + $0x50] sm:$0xff]
        %v1045 = vld [vmem:[%s682 + $0x58] sm:$0xff]
        %v1046 = vld [vmem:[%s682 + $0x60] sm:$0xff]
        %v1047 = vld [vmem:[%s682 + $0x68] sm:$0xff]
        %v1048 = vld [vmem:[%s682 + $0x70] sm:$0xff]
        %v1049 = vld [vmem:[%s682 + $0x78] sm:$0xff]
        %v1050 = vld [vmem:[%s682 + $0x80] sm:$0xff]
        %v1051 = vld [vmem:[%s682 + $0x88] sm:$0xff]
        %v1052 = vld [vmem:[%s682 + $0x90] sm:$0xff]
        %v1053 = vld [vmem:[%s682 + $0x98] sm:$0xff]
        %v1054 = vld [vmem:[%s682 + $0xa0] sm:$0xff]
        %v1055 = vld [vmem:[%s682 + $0xa8] sm:$0xff]
        %v1056 = vld [vmem:[%s682 + $0xb0] sm:$0xff]
        %v1057 = vld [vmem:[%s682 + $0xb8] sm:$0xff]
        %v1058 = vld [vmem:[%s682 + $0xc0] sm:$0xff]
        %v1059 = vld [vmem:[%s682 + $0xc8] sm:$0xff]
        %v1060 = vld [vmem:[%s682 + $0xd0] sm:$0xff]
        %v1061 = vld [vmem:[%s682 + $0xd8] sm:$0xff]
        %v1062 = vld [vmem:[%s682 + $0xe0] sm:$0xff]
        %v1063 = vld [vmem:[%s682 + $0xe8] sm:$0xff]
        %v1064 = vld [vmem:[%s682 + $0xf0] sm:$0xff]
        %v1065 = vld [vmem:[%s682 + $0xf8] sm:$0xff]
        %v1066 = vld [vmem:[%s5] sm:$0xff]
        %v1067 = vld [vmem:[%s5 + $0x8] sm:$0xff]
        %v1068 = vld [vmem:[%s5 + $0x10] sm:$0xff]
        %v1069 = vld [vmem:[%s5 + $0x18] sm:$0xff]
        %v1070 = vld [vmem:[%s5 + $0x20] sm:$0xff]
        %v1071 = vld [vmem:[%s5 + $0x28] sm:$0xff]
        %v1072 = vld [vmem:[%s5 + $0x30] sm:$0xff]
        %v1073 = vld [vmem:[%s5 + $0x38] sm:$0xff]
        %v1074 = vld [vmem:[%s5 + $0x40] sm:$0xff]
        %v1075 = vld [vmem:[%s5 + $0x48] sm:$0xff]
        %v1076 = vld [vmem:[%s5 + $0x50] sm:$0xff]
        %v1077 = vld [vmem:[%s5 + $0x58] sm:$0xff]
        %v1078 = vld [vmem:[%s5 + $0x60] sm:$0xff]
        %v1079 = vld [vmem:[%s5 + $0x68] sm:$0xff]
        %v1080 = vld [vmem:[%s5 + $0x70] sm:$0xff]
        %v1081 = vld [vmem:[%s5 + $0x78] sm:$0xff]
        %1082 = vmatprep.subr.mxu0 0.0
        %1083 = vmatpush1.msra.mxu0 %v1066
        %1084 = vmatprep.subr.mxu0 0.0
        %1085 = vmatpush1.msra.mxu0 %v1067
        %1086 = vmatprep.subr.mxu0 0.0
        %1087 = vmatpush1.msra.mxu0 %v1068
        %1088 = vmatprep.subr.mxu0 0.0
        %1089 = vmatpush1.msra.mxu0 %v1069
        %1090 = vmatprep.subr.mxu0 0.0
        %1091 = vmatpush1.msra.mxu0 %v1070
        %1092 = vmatprep.subr.mxu0 0.0
        %1093 = vmatpush1.msra.mxu0 %v1071
        %1094 = vmatprep.subr.mxu0 0.0
        %1095 = vmatpush1.msra.mxu0 %v1072
        %1096 = vmatprep.subr.mxu0 0.0
        %1097 = vmatpush1.msra.mxu0 %v1073
        %1098 = vmatprep.subr.mxu0 0.0
        %1099 = vmatpush1.msra.mxu0 %v1074
        %1100 = vmatprep.subr.mxu0 0.0
        %1101 = vmatpush1.msra.mxu0 %v1075
        %1102 = vmatprep.subr.mxu0 0.0
        %1103 = vmatpush1.msra.mxu0 %v1076
        %1104 = vmatprep.subr.mxu0 0.0
        %1105 = vmatpush1.msra.mxu0 %v1077
        %1106 = vmatprep.subr.mxu0 0.0
        %1107 = vmatpush1.msra.mxu0 %v1078
        %1108 = vmatprep.subr.mxu0 0.0
        %1109 = vmatpush1.msra.mxu0 %v1079
        %1110 = vmatprep.subr.mxu0 0.0
        %1111 = vmatpush1.msra.mxu0 %v1080
        %1112 = vmatprep.subr.mxu0 0.0
        %1113 = vmatpush1.msra.mxu0 %v1081
        %1114 = vmatprep.subr.mxu0 0.0
        %1115 = vmatpush1.msra.mxu0 0.0
        %1116 = vmatprep.subr.mxu0 0.0
        %1117 = vmatpush1.msra.mxu0 0.0
        %1118 = vmatprep.subr.mxu0 0.0
        %1119 = vmatpush1.msra.mxu0 0.0
        %1120 = vmatprep.subr.mxu0 0.0
        %1121 = vmatpush1.msra.mxu0 0.0
        %1122 = vmatprep.subr.mxu0 0.0
        %1123 = vmatpush1.msra.mxu0 0.0
        %1124 = vmatprep.subr.mxu0 0.0
        %1125 = vmatpush1.msra.mxu0 0.0
        %1126 = vmatprep.subr.mxu0 0.0
        %1127 = vmatpush1.msra.mxu0 0.0
        %1128 = vmatprep.subr.mxu0 0.0
        %1129 = vmatpush1.msra.mxu0 0.0
        %1130 = vmatprep.subr.mxu0 0.0
        %1131 = vmatpush1.msra.mxu0 0.0
        %1132 = vmatprep.subr.mxu0 0.0
        %1133 = vmatpush1.msra.mxu0 0.0
        %1134 = vmatprep.subr.mxu0 0.0
        %1135 = vmatpush1.msra.mxu0 0.0
        %1136 = vmatprep.subr.mxu0 0.0
        %1137 = vmatpush1.msra.mxu0 0.0
        %1138 = vmatprep.subr.mxu0 0.0
        %1139 = vmatpush1.msra.mxu0 0.0
        %1140 = vmatprep.subr.mxu0 0.0
        %1141 = vmatpush1.msra.mxu0 0.0
        %1142 = vmatprep.subr.mxu0 0.0
        %1143 = vmatpush1.msra.mxu0 0.0
        %1144 = vmatprep.subr.mxu0 0.0
        %1145 = vmatpush1.msra.mxu0 0.0
        %1146 = vmatprep.mubr.f32.mxu0 0.0
        %1147 = vmatmul.mubr.f32.gmra.mrb[0].mxu0 %v1034
        %v1148 = vpop.f32.mrb[0].mxu0
        %v1149 = vadd.f32 0.0, %v1148
        %v1150 = vpop.f32.mrb[0].mxu0
        %1151 = vmatprep.mubr.f32.mxu0 0.0
        %1152 = vmatmul.mubr.f32.gmra.mrb[0].mxu0 %v1035
        %v1153 = vpop.f32.mrb[0].mxu0
        %v1154 = vadd.f32 0.0, %v1153
        %v1155 = vpop.f32.mrb[0].mxu0
        %1156 = vmatprep.mubr.f32.mxu0 0.0
        %1157 = vmatmul.mubr.f32.gmra.mrb[0].mxu0 %v1036
        %v1158 = vpop.f32.mrb[0].mxu0
        %v1159 = vadd.f32 0.0, %v1158
        %v1160 = vpop.f32.mrb[0].mxu0
        %1161 = vmatprep.mubr.f32.mxu0 0.0
        %1162 = vmatmul.mubr.f32.gmra.mrb[0].mxu0 %v1037
        %v1163 = vpop.f32.mrb[0].mxu0
        %v1164 = vadd.f32 0.0, %v1163
        %v1165 = vpop.f32.mrb[0].mxu0
        %1166 = vmatprep.mubr.f32.mxu0 0.0
        %1167 = vmatmul.mubr.f32.gmra.mrb[0].mxu0 %v1038
        %v1168 = vpop.f32.mrb[0].mxu0
        %v1169 = vadd.f32 0.0, %v1168
        %v1170 = vpop.f32.mrb[0].mxu0
        %1171 = vmatprep.mubr.f32.mxu0 0.0
        %1172 = vmatmul.mubr.f32.gmra.mrb[0].mxu0 %v1039
        %v1173 = vpop.f32.mrb[0].mxu0
        %v1174 = vadd.f32 0.0, %v1173
        %v1175 = vpop.f32.mrb[0].mxu0
        %1176 = vmatprep.mubr.f32.mxu0 0.0
        %1177 = vmatmul.mubr.f32.gmra.mrb[0].mxu0 %v1040
        %v1178 = vpop.f32.mrb[0].mxu0
        %v1179 = vadd.f32 0.0, %v1178
        %v1180 = vpop.f32.mrb[0].mxu0
        %1181 = vmatprep.mubr.f32.mxu0 0.0
        %1182 = vmatmul.mubr.f32.gmra.mrb[0].mxu0 %v1041
        %v1183 = vpop.f32.mrb[0].mxu0
        %v1184 = vadd.f32 0.0, %v1183
        %v1185 = vpop.f32.mrb[0].mxu0
        %1186 = vmatprep.mubr.f32.mxu0 0.0
        %1187 = vmatmul.mubr.f32.gmra.mrb[0].mxu0 %v1042
        %v1188 = vpop.f32.mrb[0].mxu0
        %v1189 = vadd.f32 0.0, %v1188
        %v1190 = vpop.f32.mrb[0].mxu0
        %1191 = vmatprep.mubr.f32.mxu0 0.0
        %1192 = vmatmul.mubr.f32.gmra.mrb[0].mxu0 %v1043
        %v1193 = vpop.f32.mrb[0].mxu0
        %v1194 = vadd.f32 0.0, %v1193
        %v1195 = vpop.f32.mrb[0].mxu0
        %1196 = vmatprep.mubr.f32.mxu0 0.0
        %1197 = vmatmul.mubr.f32.gmra.mrb[0].mxu0 %v1044
        %v1198 = vpop.f32.mrb[0].mxu0
        %v1199 = vadd.f32 0.0, %v1198
        %v1200 = vpop.f32.mrb[0].mxu0
        %1201 = vmatprep.mubr.f32.mxu0 0.0
        %1202 = vmatmul.mubr.f32.gmra.mrb[0].mxu0 %v1045
        %v1203 = vpop.f32.mrb[0].mxu0
        %v1204 = vadd.f32 0.0, %v1203
        %v1205 = vpop.f32.mrb[0].mxu0
        %1206 = vmatprep.mubr.f32.mxu0 0.0
        %1207 = vmatmul.mubr.f32.gmra.mrb[0].mxu0 %v1046
        %v1208 = vpop.f32.mrb[0].mxu0
        %v1209 = vadd.f32 0.0, %v1208
        %v1210 = vpop.f32.mrb[0].mxu0
        %1211 = vmatprep.mubr.f32.mxu0 0.0
        %1212 = vmatmul.mubr.f32.gmra.mrb[0].mxu0 %v1047
        %v1213 = vpop.f32.mrb[0].mxu0
        %v1214 = vadd.f32 0.0, %v1213
        %v1215 = vpop.f32.mrb[0].mxu0
        %1216 = vmatprep.mubr.f32.mxu0 0.0
        %1217 = vmatmul.mubr.f32.gmra.mrb[0].mxu0 %v1048
        %v1218 = vpop.f32.mrb[0].mxu0
        %v1219 = vadd.f32 0.0, %v1218
        %v1220 = vpop.f32.mrb[0].mxu0
        %1221 = vmatprep.mubr.f32.mxu0 0.0
        %1222 = vmatmul.mubr.f32.gmra.mrb[0].mxu0 %v1049
        %v1223 = vpop.f32.mrb[0].mxu0
        %v1224 = vadd.f32 0.0, %v1223
        %v1225 = vpop.f32.mrb[0].mxu0
        %1226 = vmatprep.mubr.f32.mxu0 0.0
        %1227 = vmatmul.mubr.f32.gmra.mrb[0].mxu0 %v1050
        %v1228 = vpop.f32.mrb[0].mxu0
        %v1229 = vadd.f32 0.0, %v1228
        %v1230 = vpop.f32.mrb[0].mxu0
        %1231 = vmatprep.mubr.f32.mxu0 0.0
        %1232 = vmatmul.mubr.f32.gmra.mrb[0].mxu0 %v1051
        %v1233 = vpop.f32.mrb[0].mxu0
        %v1234 = vadd.f32 0.0, %v1233
        %v1235 = vpop.f32.mrb[0].mxu0
        %1236 = vmatprep.mubr.f32.mxu0 0.0
        %1237 = vmatmul.mubr.f32.gmra.mrb[0].mxu0 %v1052
        %v1238 = vpop.f32.mrb[0].mxu0
        %v1239 = vadd.f32 0.0, %v1238
        %v1240 = vpop.f32.mrb[0].mxu0
        %1241 = vmatprep.mubr.f32.mxu0 0.0
        %1242 = vmatmul.mubr.f32.gmra.mrb[0].mxu0 %v1053
        %v1243 = vpop.f32.mrb[0].mxu0
        %v1244 = vadd.f32 0.0, %v1243
        %v1245 = vpop.f32.mrb[0].mxu0
        %1246 = vmatprep.mubr.f32.mxu0 0.0
        %1247 = vmatmul.mubr.f32.gmra.mrb[0].mxu0 %v1054
        %v1248 = vpop.f32.mrb[0].mxu0
        %v1249 = vadd.f32 0.0, %v1248
        %v1250 = vpop.f32.mrb[0].mxu0
        %1251 = vmatprep.mubr.f32.mxu0 0.0
        %1252 = vmatmul.mubr.f32.gmra.mrb[0].mxu0 %v1055
        %v1253 = vpop.f32.mrb[0].mxu0
        %v1254 = vadd.f32 0.0, %v1253
        %v1255 = vpop.f32.mrb[0].mxu0
        %1256 = vmatprep.mubr.f32.mxu0 0.0
        %1257 = vmatmul.mubr.f32.gmra.mrb[0].mxu0 %v1056
        %v1258 = vpop.f32.mrb[0].mxu0
        %v1259 = vadd.f32 0.0, %v1258
        %v1260 = vpop.f32.mrb[0].mxu0
        %1261 = vmatprep.mubr.f32.mxu0 0.0
        %1262 = vmatmul.mubr.f32.gmra.mrb[0].mxu0 %v1057
        %v1263 = vpop.f32.mrb[0].mxu0
        %v1264 = vadd.f32 0.0, %v1263
        %v1265 = vpop.f32.mrb[0].mxu0
        %1266 = vmatprep.mubr.f32.mxu0 0.0
        %1267 = vmatmul.mubr.f32.gmra.mrb[0].mxu0 %v1058
        %v1268 = vpop.f32.mrb[0].mxu0
        %v1269 = vadd.f32 0.0, %v1268
        %v1270 = vpop.f32.mrb[0].mxu0
        %1271 = vmatprep.mubr.f32.mxu0 0.0
        %1272 = vmatmul.mubr.f32.gmra.mrb[0].mxu0 %v1059
        %v1273 = vpop.f32.mrb[0].mxu0
        %v1274 = vadd.f32 0.0, %v1273
        %v1275 = vpop.f32.mrb[0].mxu0
        %1276 = vmatprep.mubr.f32.mxu0 0.0
        %1277 = vmatmul.mubr.f32.gmra.mrb[0].mxu0 %v1060
        %v1278 = vpop.f32.mrb[0].mxu0
        %v1279 = vadd.f32 0.0, %v1278
        %v1280 = vpop.f32.mrb[0].mxu0
        %1281 = vmatprep.mubr.f32.mxu0 0.0
        %1282 = vmatmul.mubr.f32.gmra.mrb[0].mxu0 %v1061
        %v1283 = vpop.f32.mrb[0].mxu0
        %v1284 = vadd.f32 0.0, %v1283
        %v1285 = vpop.f32.mrb[0].mxu0
        %1286 = vmatprep.mubr.f32.mxu0 0.0
        %1287 = vmatmul.mubr.f32.gmra.mrb[0].mxu0 %v1062
        %v1288 = vpop.f32.mrb[0].mxu0
        %v1289 = vadd.f32 0.0, %v1288
        %v1290 = vpop.f32.mrb[0].mxu0
        %1291 = vmatprep.mubr.f32.mxu0 0.0
        %1292 = vmatmul.mubr.f32.gmra.mrb[0].mxu0 %v1063
        %v1293 = vpop.f32.mrb[0].mxu0
        %v1294 = vadd.f32 0.0, %v1293
        %v1295 = vpop.f32.mrb[0].mxu0
        %1296 = vmatprep.mubr.f32.mxu0 0.0
        %1297 = vmatmul.mubr.f32.gmra.mrb[0].mxu0 %v1064
        %v1298 = vpop.f32.mrb[0].mxu0
        %v1299 = vadd.f32 0.0, %v1298
        %v1300 = vpop.f32.mrb[0].mxu0
        %1301 = vmatprep.mubr.f32.mxu0 0.0
        %1302 = vmatmul.mubr.f32.gmra.mrb[0].mxu0 %v1065
        %v1303 = vpop.f32.mrb[0].mxu0
        %v1304 = vadd.f32 0.0, %v1303
        %v1305 = vpop.f32.mrb[0].mxu0
        %1306 = vdwg.mxu0
        %v1307 = vcombine.low %v1149, %v1169
        %v1308 = vcombine.high %v1149, %v1169
        %v1310 = vunpack.c.l.s4 1983009808
        %v1311 = vunpack.c.0.s8 %v1310
        %v1312 = vlaneseq
        %v1313 = vshrl.u32 %v1312, 7
        %v1314 = vsub.s32 %v1311, %v1313
        %v1315 = vrot.slane %v1307, %v1314
        %v1317 = vunpack.c.l.s4 1983009808
        %v1318 = vunpack.c.0.s8 %v1317
        %v1319 = vlaneseq
        %v1320 = vshrl.u32 %v1319, 7
        %v1321 = vsub.s32 %v1318, %v1320
        %v1322 = vrot.slane %v1308, %v1321
        %v1323 = vcombine.low %v1159, %v1179
        %v1324 = vcombine.high %v1159, %v1179
        %v1326 = vunpack.c.l.s4 1983009808
        %v1327 = vunpack.c.0.s8 %v1326
        %v1328 = vlaneseq
        %v1329 = vshrl.u32 %v1328, 7
        %v1330 = vsub.s32 %v1327, %v1329
        %v1331 = vrot.slane %v1323, %v1330
        %v1333 = vunpack.c.l.s4 1983009808
        %v1334 = vunpack.c.0.s8 %v1333
        %v1335 = vlaneseq
        %v1336 = vshrl.u32 %v1335, 7
        %v1337 = vsub.s32 %v1334, %v1336
        %v1338 = vrot.slane %v1324, %v1337
        %v1339 = vcombine.low %v1189, %v1209
        %v1340 = vcombine.high %v1189, %v1209
        %v1342 = vunpack.c.l.s4 1983009808
        %v1343 = vunpack.c.0.s8 %v1342
        %v1344 = vlaneseq
        %v1345 = vshrl.u32 %v1344, 7
        %v1346 = vsub.s32 %v1343, %v1345
        %v1347 = vrot.slane %v1339, %v1346
        %v1349 = vunpack.c.l.s4 1983009808
        %v1350 = vunpack.c.0.s8 %v1349
        %v1351 = vlaneseq
        %v1352 = vshrl.u32 %v1351, 7
        %v1353 = vsub.s32 %v1350, %v1352
        %v1354 = vrot.slane %v1340, %v1353
        %v1355 = vcombine.low %v1199, %v1219
        %v1356 = vcombine.high %v1199, %v1219
        %v1358 = vunpack.c.l.s4 1983009808
        %v1359 = vunpack.c.0.s8 %v1358
        %v1360 = vlaneseq
        %v1361 = vshrl.u32 %v1360, 7
        %v1362 = vsub.s32 %v1359, %v1361
        %v1363 = vrot.slane %v1355, %v1362
        %v1365 = vunpack.c.l.s4 1983009808
        %v1366 = vunpack.c.0.s8 %v1365
        %v1367 = vlaneseq
        %v1368 = vshrl.u32 %v1367, 7
        %v1369 = vsub.s32 %v1366, %v1368
        %v1370 = vrot.slane %v1356, %v1369
        %v1371 = vcombine.low %v1315, %v1331
        %v1372 = vcombine.high %v1315, %v1331
        %v1374 = vunpack.c.l.s4 1934713408
        %v1375 = vunpack.c.0.s8 %v1374
        %v1376 = vlaneseq
        %v1377 = vshrl.u32 %v1376, 7
        %v1378 = vsub.s32 %v1375, %v1377
        %v1379 = vrot.slane %v1371, %v1378
        %v1381 = vunpack.c.l.s4 1934713408
        %v1382 = vunpack.c.0.s8 %v1381
        %v1383 = vlaneseq
        %v1384 = vshrl.u32 %v1383, 7
        %v1385 = vsub.s32 %v1382, %v1384
        %v1386 = vrot.slane %v1372, %v1385
        %v1387 = vcombine.low %v1322, %v1338
        %v1388 = vcombine.high %v1322, %v1338
        %v1390 = vunpack.c.l.s4 1934713408
        %v1391 = vunpack.c.0.s8 %v1390
        %v1392 = vlaneseq
        %v1393 = vshrl.u32 %v1392, 7
        %v1394 = vsub.s32 %v1391, %v1393
        %v1395 = vrot.slane %v1387, %v1394
        %v1397 = vunpack.c.l.s4 1934713408
        %v1398 = vunpack.c.0.s8 %v1397
        %v1399 = vlaneseq
        %v1400 = vshrl.u32 %v1399, 7
        %v1401 = vsub.s32 %v1398, %v1400
        %v1402 = vrot.slane %v1388, %v1401
        %v1403 = vcombine.low %v1347, %v1363
        %v1404 = vcombine.high %v1347, %v1363
        %v1406 = vunpack.c.l.s4 1934713408
        %v1407 = vunpack.c.0.s8 %v1406
        %v1408 = vlaneseq
        %v1409 = vshrl.u32 %v1408, 7
        %v1410 = vsub.s32 %v1407, %v1409
        %v1411 = vrot.slane %v1403, %v1410
        %v1413 = vunpack.c.l.s4 1934713408
        %v1414 = vunpack.c.0.s8 %v1413
        %v1415 = vlaneseq
        %v1416 = vshrl.u32 %v1415, 7
        %v1417 = vsub.s32 %v1414, %v1416
        %v1418 = vrot.slane %v1404, %v1417
        %v1419 = vcombine.low %v1354, %v1370
        %v1420 = vcombine.high %v1354, %v1370
        %v1422 = vunpack.c.l.s4 1934713408
        %v1423 = vunpack.c.0.s8 %v1422
        %v1424 = vlaneseq
        %v1425 = vshrl.u32 %v1424, 7
        %v1426 = vsub.s32 %v1423, %v1425
        %v1427 = vrot.slane %v1419, %v1426
        %v1429 = vunpack.c.l.s4 1934713408
        %v1430 = vunpack.c.0.s8 %v1429
        %v1431 = vlaneseq
        %v1432 = vshrl.u32 %v1431, 7
        %v1433 = vsub.s32 %v1430, %v1432
        %v1434 = vrot.slane %v1420, %v1433
        %v1435 = vcombine.low %v1379, %v1411
        %v1436 = vcombine.high %v1379, %v1411
        %v1437 = vcombine.low %v1386, %v1418
        %v1438 = vcombine.high %v1386, %v1418
        %v1439 = vcombine.low %v1395, %v1427
        %v1440 = vcombine.high %v1395, %v1427
        %v1441 = vcombine.low %v1402, %v1434
        %v1442 = vcombine.high %v1402, %v1434
        %v1443 = vcombine.low %v1229, %v1249
        %v1444 = vcombine.high %v1229, %v1249
        %v1446 = vunpack.c.l.s4 1983009808
        %v1447 = vunpack.c.0.s8 %v1446
        %v1448 = vlaneseq
        %v1449 = vshrl.u32 %v1448, 7
        %v1450 = vsub.s32 %v1447, %v1449
        %v1451 = vrot.slane %v1443, %v1450
        %v1453 = vunpack.c.l.s4 1983009808
        %v1454 = vunpack.c.0.s8 %v1453
        %v1455 = vlaneseq
        %v1456 = vshrl.u32 %v1455, 7
        %v1457 = vsub.s32 %v1454, %v1456
        %v1458 = vrot.slane %v1444, %v1457
        %v1459 = vcombine.low %v1239, %v1259
        %v1460 = vcombine.high %v1239, %v1259
        %v1462 = vunpack.c.l.s4 1983009808
        %v1463 = vunpack.c.0.s8 %v1462
        %v1464 = vlaneseq
        %v1465 = vshrl.u32 %v1464, 7
        %v1466 = vsub.s32 %v1463, %v1465
        %v1467 = vrot.slane %v1459, %v1466
        %v1469 = vunpack.c.l.s4 1983009808
        %v1470 = vunpack.c.0.s8 %v1469
        %v1471 = vlaneseq
        %v1472 = vshrl.u32 %v1471, 7
        %v1473 = vsub.s32 %v1470, %v1472
        %v1474 = vrot.slane %v1460, %v1473
        %v1475 = vcombine.low %v1269, %v1289
        %v1476 = vcombine.high %v1269, %v1289
        %v1478 = vunpack.c.l.s4 1983009808
        %v1479 = vunpack.c.0.s8 %v1478
        %v1480 = vlaneseq
        %v1481 = vshrl.u32 %v1480, 7
        %v1482 = vsub.s32 %v1479, %v1481
        %v1483 = vrot.slane %v1475, %v1482
        %v1485 = vunpack.c.l.s4 1983009808
        %v1486 = vunpack.c.0.s8 %v1485
        %v1487 = vlaneseq
        %v1488 = vshrl.u32 %v1487, 7
        %v1489 = vsub.s32 %v1486, %v1488
        %v1490 = vrot.slane %v1476, %v1489
        %v1491 = vcombine.low %v1279, %v1299
        %v1492 = vcombine.high %v1279, %v1299
        %v1494 = vunpack.c.l.s4 1983009808
        %v1495 = vunpack.c.0.s8 %v1494
        %v1496 = vlaneseq
        %v1497 = vshrl.u32 %v1496, 7
        %v1498 = vsub.s32 %v1495, %v1497
        %v1499 = vrot.slane %v1491, %v1498
        %v1501 = vunpack.c.l.s4 1983009808
        %v1502 = vunpack.c.0.s8 %v1501
        %v1503 = vlaneseq
        %v1504 = vshrl.u32 %v1503, 7
        %v1505 = vsub.s32 %v1502, %v1504
        %v1506 = vrot.slane %v1492, %v1505
        %v1507 = vcombine.low %v1451, %v1467
        %v1508 = vcombine.high %v1451, %v1467
        %v1510 = vunpack.c.l.s4 1934713408
        %v1511 = vunpack.c.0.s8 %v1510
        %v1512 = vlaneseq
        %v1513 = vshrl.u32 %v1512, 7
        %v1514 = vsub.s32 %v1511, %v1513
        %v1515 = vrot.slane %v1507, %v1514
        %v1517 = vunpack.c.l.s4 1934713408
        %v1518 = vunpack.c.0.s8 %v1517
        %v1519 = vlaneseq
        %v1520 = vshrl.u32 %v1519, 7
        %v1521 = vsub.s32 %v1518, %v1520
        %v1522 = vrot.slane %v1508, %v1521
        %v1523 = vcombine.low %v1458, %v1474
        %v1524 = vcombine.high %v1458, %v1474
        %v1526 = vunpack.c.l.s4 1934713408
        %v1527 = vunpack.c.0.s8 %v1526
        %v1528 = vlaneseq
        %v1529 = vshrl.u32 %v1528, 7
        %v1530 = vsub.s32 %v1527, %v1529
        %v1531 = vrot.slane %v1523, %v1530
        %v1533 = vunpack.c.l.s4 1934713408
        %v1534 = vunpack.c.0.s8 %v1533
        %v1535 = vlaneseq
        %v1536 = vshrl.u32 %v1535, 7
        %v1537 = vsub.s32 %v1534, %v1536
        %v1538 = vrot.slane %v1524, %v1537
        %v1539 = vcombine.low %v1483, %v1499
        %v1540 = vcombine.high %v1483, %v1499
        %v1542 = vunpack.c.l.s4 1934713408
        %v1543 = vunpack.c.0.s8 %v1542
        %v1544 = vlaneseq
        %v1545 = vshrl.u32 %v1544, 7
        %v1546 = vsub.s32 %v1543, %v1545
        %v1547 = vrot.slane %v1539, %v1546
        %v1549 = vunpack.c.l.s4 1934713408
        %v1550 = vunpack.c.0.s8 %v1549
        %v1551 = vlaneseq
        %v1552 = vshrl.u32 %v1551, 7
        %v1553 = vsub.s32 %v1550, %v1552
        %v1554 = vrot.slane %v1540, %v1553
        %v1555 = vcombine.low %v1490, %v1506
        %v1556 = vcombine.high %v1490, %v1506
        %v1558 = vunpack.c.l.s4 1934713408
        %v1559 = vunpack.c.0.s8 %v1558
        %v1560 = vlaneseq
        %v1561 = vshrl.u32 %v1560, 7
        %v1562 = vsub.s32 %v1559, %v1561
        %v1563 = vrot.slane %v1555, %v1562
        %v1565 = vunpack.c.l.s4 1934713408
        %v1566 = vunpack.c.0.s8 %v1565
        %v1567 = vlaneseq
        %v1568 = vshrl.u32 %v1567, 7
        %v1569 = vsub.s32 %v1566, %v1568
        %v1570 = vrot.slane %v1556, %v1569
        %v1571 = vcombine.low %v1515, %v1547
        %v1572 = vcombine.high %v1515, %v1547
        %v1573 = vcombine.low %v1522, %v1554
        %v1574 = vcombine.high %v1522, %v1554
        %v1575 = vcombine.low %v1531, %v1563
        %v1576 = vcombine.high %v1531, %v1563
        %v1577 = vcombine.low %v1538, %v1570
        %v1578 = vcombine.high %v1538, %v1570
        %v1579 = vcombine.low %v1154, %v1174
        %v1580 = vcombine.high %v1154, %v1174
        %v1582 = vunpack.c.l.s4 1983009808
        %v1583 = vunpack.c.0.s8 %v1582
        %v1584 = vlaneseq
        %v1585 = vshrl.u32 %v1584, 7
        %v1586 = vsub.s32 %v1583, %v1585
        %v1587 = vrot.slane %v1579, %v1586
        %v1589 = vunpack.c.l.s4 1983009808
        %v1590 = vunpack.c.0.s8 %v1589
        %v1591 = vlaneseq
        %v1592 = vshrl.u32 %v1591, 7
        %v1593 = vsub.s32 %v1590, %v1592
        %v1594 = vrot.slane %v1580, %v1593
        %v1595 = vcombine.low %v1164, %v1184
        %v1596 = vcombine.high %v1164, %v1184
        %v1598 = vunpack.c.l.s4 1983009808
        %v1599 = vunpack.c.0.s8 %v1598
        %v1600 = vlaneseq
        %v1601 = vshrl.u32 %v1600, 7
        %v1602 = vsub.s32 %v1599, %v1601
        %v1603 = vrot.slane %v1595, %v1602
        %v1605 = vunpack.c.l.s4 1983009808
        %v1606 = vunpack.c.0.s8 %v1605
        %v1607 = vlaneseq
        %v1608 = vshrl.u32 %v1607, 7
        %v1609 = vsub.s32 %v1606, %v1608
        %v1610 = vrot.slane %v1596, %v1609
        %v1611 = vcombine.low %v1194, %v1214
        %v1612 = vcombine.high %v1194, %v1214
        %v1614 = vunpack.c.l.s4 1983009808
        %v1615 = vunpack.c.0.s8 %v1614
        %v1616 = vlaneseq
        %v1617 = vshrl.u32 %v1616, 7
        %v1618 = vsub.s32 %v1615, %v1617
        %v1619 = vrot.slane %v1611, %v1618
        %v1621 = vunpack.c.l.s4 1983009808
        %v1622 = vunpack.c.0.s8 %v1621
        %v1623 = vlaneseq
        %v1624 = vshrl.u32 %v1623, 7
        %v1625 = vsub.s32 %v1622, %v1624
        %v1626 = vrot.slane %v1612, %v1625
        %v1627 = vcombine.low %v1204, %v1224
        %v1628 = vcombine.high %v1204, %v1224
        %v1630 = vunpack.c.l.s4 1983009808
        %v1631 = vunpack.c.0.s8 %v1630
        %v1632 = vlaneseq
        %v1633 = vshrl.u32 %v1632, 7
        %v1634 = vsub.s32 %v1631, %v1633
        %v1635 = vrot.slane %v1627, %v1634
        %v1637 = vunpack.c.l.s4 1983009808
        %v1638 = vunpack.c.0.s8 %v1637
        %v1639 = vlaneseq
        %v1640 = vshrl.u32 %v1639, 7
        %v1641 = vsub.s32 %v1638, %v1640
        %v1642 = vrot.slane %v1628, %v1641
        %v1643 = vcombine.low %v1587, %v1603
        %v1644 = vcombine.high %v1587, %v1603
        %v1646 = vunpack.c.l.s4 1934713408
        %v1647 = vunpack.c.0.s8 %v1646
        %v1648 = vlaneseq
        %v1649 = vshrl.u32 %v1648, 7
        %v1650 = vsub.s32 %v1647, %v1649
        %v1651 = vrot.slane %v1643, %v1650
        %v1653 = vunpack.c.l.s4 1934713408
        %v1654 = vunpack.c.0.s8 %v1653
        %v1655 = vlaneseq
        %v1656 = vshrl.u32 %v1655, 7
        %v1657 = vsub.s32 %v1654, %v1656
        %v1658 = vrot.slane %v1644, %v1657
        %v1659 = vcombine.low %v1594, %v1610
        %v1660 = vcombine.high %v1594, %v1610
        %v1662 = vunpack.c.l.s4 1934713408
        %v1663 = vunpack.c.0.s8 %v1662
        %v1664 = vlaneseq
        %v1665 = vshrl.u32 %v1664, 7
        %v1666 = vsub.s32 %v1663, %v1665
        %v1667 = vrot.slane %v1659, %v1666
        %v1669 = vunpack.c.l.s4 1934713408
        %v1670 = vunpack.c.0.s8 %v1669
        %v1671 = vlaneseq
        %v1672 = vshrl.u32 %v1671, 7
        %v1673 = vsub.s32 %v1670, %v1672
        %v1674 = vrot.slane %v1660, %v1673
        %v1675 = vcombine.low %v1619, %v1635
        %v1676 = vcombine.high %v1619, %v1635
        %v1678 = vunpack.c.l.s4 1934713408
        %v1679 = vunpack.c.0.s8 %v1678
        %v1680 = vlaneseq
        %v1681 = vshrl.u32 %v1680, 7
        %v1682 = vsub.s32 %v1679, %v1681
        %v1683 = vrot.slane %v1675, %v1682
        %v1685 = vunpack.c.l.s4 1934713408
        %v1686 = vunpack.c.0.s8 %v1685
        %v1687 = vlaneseq
        %v1688 = vshrl.u32 %v1687, 7
        %v1689 = vsub.s32 %v1686, %v1688
        %v1690 = vrot.slane %v1676, %v1689
        %v1691 = vcombine.low %v1626, %v1642
        %v1692 = vcombine.high %v1626, %v1642
        %v1694 = vunpack.c.l.s4 1934713408
        %v1695 = vunpack.c.0.s8 %v1694
        %v1696 = vlaneseq
        %v1697 = vshrl.u32 %v1696, 7
        %v1698 = vsub.s32 %v1695, %v1697
        %v1699 = vrot.slane %v1691, %v1698
        %v1701 = vunpack.c.l.s4 1934713408
        %v1702 = vunpack.c.0.s8 %v1701
        %v1703 = vlaneseq
        %v1704 = vshrl.u32 %v1703, 7
        %v1705 = vsub.s32 %v1702, %v1704
        %v1706 = vrot.slane %v1692, %v1705
        %v1707 = vcombine.low %v1651, %v1683
        %v1708 = vcombine.high %v1651, %v1683
        %v1709 = vcombine.low %v1658, %v1690
        %v1710 = vcombine.high %v1658, %v1690
        %v1711 = vcombine.low %v1667, %v1699
        %v1712 = vcombine.high %v1667, %v1699
        %v1713 = vcombine.low %v1674, %v1706
        %v1714 = vcombine.high %v1674, %v1706
        %v1715 = vcombine.low %v1234, %v1254
        %v1716 = vcombine.high %v1234, %v1254
        %v1718 = vunpack.c.l.s4 1983009808
        %v1719 = vunpack.c.0.s8 %v1718
        %v1720 = vlaneseq
        %v1721 = vshrl.u32 %v1720, 7
        %v1722 = vsub.s32 %v1719, %v1721
        %v1723 = vrot.slane %v1715, %v1722
        %v1725 = vunpack.c.l.s4 1983009808
        %v1726 = vunpack.c.0.s8 %v1725
        %v1727 = vlaneseq
        %v1728 = vshrl.u32 %v1727, 7
        %v1729 = vsub.s32 %v1726, %v1728
        %v1730 = vrot.slane %v1716, %v1729
        %v1731 = vcombine.low %v1244, %v1264
        %v1732 = vcombine.high %v1244, %v1264
        %v1734 = vunpack.c.l.s4 1983009808
        %v1735 = vunpack.c.0.s8 %v1734
        %v1736 = vlaneseq
        %v1737 = vshrl.u32 %v1736, 7
        %v1738 = vsub.s32 %v1735, %v1737
        %v1739 = vrot.slane %v1731, %v1738
        %v1741 = vunpack.c.l.s4 1983009808
        %v1742 = vunpack.c.0.s8 %v1741
        %v1743 = vlaneseq
        %v1744 = vshrl.u32 %v1743, 7
        %v1745 = vsub.s32 %v1742, %v1744
        %v1746 = vrot.slane %v1732, %v1745
        %v1747 = vcombine.low %v1274, %v1294
        %v1748 = vcombine.high %v1274, %v1294
        %v1750 = vunpack.c.l.s4 1983009808
        %v1751 = vunpack.c.0.s8 %v1750
        %v1752 = vlaneseq
        %v1753 = vshrl.u32 %v1752, 7
        %v1754 = vsub.s32 %v1751, %v1753
        %v1755 = vrot.slane %v1747, %v1754
        %v1757 = vunpack.c.l.s4 1983009808
        %v1758 = vunpack.c.0.s8 %v1757
        %v1759 = vlaneseq
        %v1760 = vshrl.u32 %v1759, 7
        %v1761 = vsub.s32 %v1758, %v1760
        %v1762 = vrot.slane %v1748, %v1761
        %v1763 = vcombine.low %v1284, %v1304
        %v1764 = vcombine.high %v1284, %v1304
        %v1766 = vunpack.c.l.s4 1983009808
        %v1767 = vunpack.c.0.s8 %v1766
        %v1768 = vlaneseq
        %v1769 = vshrl.u32 %v1768, 7
        %v1770 = vsub.s32 %v1767, %v1769
        %v1771 = vrot.slane %v1763, %v1770
        %v1773 = vunpack.c.l.s4 1983009808
        %v1774 = vunpack.c.0.s8 %v1773
        %v1775 = vlaneseq
        %v1776 = vshrl.u32 %v1775, 7
        %v1777 = vsub.s32 %v1774, %v1776
        %v1778 = vrot.slane %v1764, %v1777
        %v1779 = vcombine.low %v1723, %v1739
        %v1780 = vcombine.high %v1723, %v1739
        %v1782 = vunpack.c.l.s4 1934713408
        %v1783 = vunpack.c.0.s8 %v1782
        %v1784 = vlaneseq
        %v1785 = vshrl.u32 %v1784, 7
        %v1786 = vsub.s32 %v1783, %v1785
        %v1787 = vrot.slane %v1779, %v1786
        %v1789 = vunpack.c.l.s4 1934713408
        %v1790 = vunpack.c.0.s8 %v1789
        %v1791 = vlaneseq
        %v1792 = vshrl.u32 %v1791, 7
        %v1793 = vsub.s32 %v1790, %v1792
        %v1794 = vrot.slane %v1780, %v1793
        %v1795 = vcombine.low %v1730, %v1746
        %v1796 = vcombine.high %v1730, %v1746
        %v1798 = vunpack.c.l.s4 1934713408
        %v1799 = vunpack.c.0.s8 %v1798
        %v1800 = vlaneseq
        %v1801 = vshrl.u32 %v1800, 7
        %v1802 = vsub.s32 %v1799, %v1801
        %v1803 = vrot.slane %v1795, %v1802
        %v1805 = vunpack.c.l.s4 1934713408
        %v1806 = vunpack.c.0.s8 %v1805
        %v1807 = vlaneseq
        %v1808 = vshrl.u32 %v1807, 7
        %v1809 = vsub.s32 %v1806, %v1808
        %v1810 = vrot.slane %v1796, %v1809
        %v1811 = vcombine.low %v1755, %v1771
        %v1812 = vcombine.high %v1755, %v1771
        %v1814 = vunpack.c.l.s4 1934713408
        %v1815 = vunpack.c.0.s8 %v1814
        %v1816 = vlaneseq
        %v1817 = vshrl.u32 %v1816, 7
        %v1818 = vsub.s32 %v1815, %v1817
        %v1819 = vrot.slane %v1811, %v1818
        %v1821 = vunpack.c.l.s4 1934713408
        %v1822 = vunpack.c.0.s8 %v1821
        %v1823 = vlaneseq
        %v1824 = vshrl.u32 %v1823, 7
        %v1825 = vsub.s32 %v1822, %v1824
        %v1826 = vrot.slane %v1812, %v1825
        %v1827 = vcombine.low %v1762, %v1778
        %v1828 = vcombine.high %v1762, %v1778
        %v1830 = vunpack.c.l.s4 1934713408
        %v1831 = vunpack.c.0.s8 %v1830
        %v1832 = vlaneseq
        %v1833 = vshrl.u32 %v1832, 7
        %v1834 = vsub.s32 %v1831, %v1833
        %v1835 = vrot.slane %v1827, %v1834
        %v1837 = vunpack.c.l.s4 1934713408
        %v1838 = vunpack.c.0.s8 %v1837
        %v1839 = vlaneseq
        %v1840 = vshrl.u32 %v1839, 7
        %v1841 = vsub.s32 %v1838, %v1840
        %v1842 = vrot.slane %v1828, %v1841
        %v1843 = vcombine.low %v1787, %v1819
        %v1844 = vcombine.high %v1787, %v1819
        %v1845 = vcombine.low %v1794, %v1826
        %v1846 = vcombine.high %v1794, %v1826
        %v1847 = vcombine.low %v1803, %v1835
        %v1848 = vcombine.high %v1803, %v1835
        %v1849 = vcombine.low %v1810, %v1842
        %v1850 = vcombine.high %v1810, %v1842
        %v1851 = vadd.f32 %v876, %v1435
        %v1852 = vadd.f32 %v881, %v1571
        %v1853 = vadd.f32 %v886, %v1436
        %v1854 = vadd.f32 %v891, %v1572
        %v1855 = vadd.f32 %v896, %v1437
        %v1856 = vadd.f32 %v901, %v1573
        %v1857 = vadd.f32 %v906, %v1438
        %v1858 = vadd.f32 %v911, %v1574
        %v1859 = vadd.f32 %v916, %v1439
        %v1860 = vadd.f32 %v921, %v1575
        %v1861 = vadd.f32 %v926, %v1440
        %v1862 = vadd.f32 %v931, %v1576
        %v1863 = vadd.f32 %v936, %v1441
        %v1864 = vadd.f32 %v941, %v1577
        %v1865 = vadd.f32 %v946, %v1442
        %v1866 = vadd.f32 %v951, %v1578
        %v1867 = vadd.f32 %v956, %v1707
        %v1868 = vadd.f32 %v961, %v1843
        %v1869 = vadd.f32 %v966, %v1708
        %v1870 = vadd.f32 %v971, %v1844
        %v1871 = vadd.f32 %v976, %v1709
        %v1872 = vadd.f32 %v981, %v1845
        %v1873 = vadd.f32 %v986, %v1710
        %v1874 = vadd.f32 %v991, %v1846
        %v1875 = vadd.f32 %v996, %v1711
        %v1876 = vadd.f32 %v1001, %v1847
        %v1877 = vadd.f32 %v1006, %v1712
        %v1878 = vadd.f32 %v1011, %v1848
        %v1879 = vadd.f32 %v1016, %v1713
        %v1880 = vadd.f32 %v1021, %v1849
        %v1881 = vadd.f32 %v1026, %v1714
        %v1882 = vadd.f32 %v1031, %v1850
        %v1883 = vld [vmem:[%s747] sm:$0xff]
        %v1884 = vld [vmem:[%s747 + $0x8] sm:$0xff]
        %v1887 = vcombine.high %v1883, %v1883
        %v1889 = vunpack.c.l.s4 1966171168
        %v1890 = vunpack.c.0.s8 %v1889
        %v1891 = vlaneseq
        %v1892 = vshrl.u32 %v1891, 7
        %v1893 = vsub.s32 %v1890, %v1892
        %v1894 = vrot.slane %v1883, %v1893
        %v1896 = vunpack.c.l.s4 1966171168
        %v1897 = vunpack.c.0.s8 %v1896
        %v1898 = vlaneseq
        %v1899 = vshrl.u32 %v1898, 7
        %v1900 = vsub.s32 %v1897, %v1899
        %v1901 = vrot.slane %v1887, %v1900
        %v1902 = vcombine.high %v1894, %v1894
        %v1903 = vcombine.high %v1901, %v1901
        %v1905 = vunpack.c.l.s4 1966171168
        %v1906 = vunpack.c.0.s8 %v1905
        %v1907 = vlaneseq
        %v1908 = vshrl.u32 %v1907, 7
        %v1909 = vsub.s32 %v1906, %v1908
        %v1910 = vrot.slane %v1894, %v1909
        %v1912 = vunpack.c.l.s4 1966171168
        %v1913 = vunpack.c.0.s8 %v1912
        %v1914 = vlaneseq
        %v1915 = vshrl.u32 %v1914, 7
        %v1916 = vsub.s32 %v1913, %v1915
        %v1917 = vrot.slane %v1901, %v1916
        %v1919 = vunpack.c.l.s4 1966171168
        %v1920 = vunpack.c.0.s8 %v1919
        %v1921 = vlaneseq
        %v1922 = vshrl.u32 %v1921, 7
        %v1923 = vsub.s32 %v1920, %v1922
        %v1924 = vrot.slane %v1902, %v1923
        %v1926 = vunpack.c.l.s4 1966171168
        %v1927 = vunpack.c.0.s8 %v1926
        %v1928 = vlaneseq
        %v1929 = vshrl.u32 %v1928, 7
        %v1930 = vsub.s32 %v1927, %v1929
        %v1931 = vrot.slane %v1903, %v1930
        %v1932 = vcombine.high %v1910, %v1910
        %v1933 = vcombine.high %v1917, %v1917
        %v1934 = vcombine.high %v1924, %v1924
        %v1935 = vcombine.high %v1931, %v1931
        %v1936 = vcombine.high %v1884, %v1884
        %v1938 = vunpack.c.l.s4 1966171168
        %v1939 = vunpack.c.0.s8 %v1938
        %v1940 = vlaneseq
        %v1941 = vshrl.u32 %v1940, 7
        %v1942 = vsub.s32 %v1939, %v1941
        %v1943 = vrot.slane %v1884, %v1942
        %v1945 = vunpack.c.l.s4 1966171168
        %v1946 = vunpack.c.0.s8 %v1945
        %v1947 = vlaneseq
        %v1948 = vshrl.u32 %v1947, 7
        %v1949 = vsub.s32 %v1946, %v1948
        %v1950 = vrot.slane %v1936, %v1949
        %v1951 = vcombine.high %v1943, %v1943
        %v1952 = vcombine.high %v1950, %v1950
        %v1954 = vunpack.c.l.s4 1966171168
        %v1955 = vunpack.c.0.s8 %v1954
        %v1956 = vlaneseq
        %v1957 = vshrl.u32 %v1956, 7
        %v1958 = vsub.s32 %v1955, %v1957
        %v1959 = vrot.slane %v1943, %v1958
        %v1961 = vunpack.c.l.s4 1966171168
        %v1962 = vunpack.c.0.s8 %v1961
        %v1963 = vlaneseq
        %v1964 = vshrl.u32 %v1963, 7
        %v1965 = vsub.s32 %v1962, %v1964
        %v1966 = vrot.slane %v1950, %v1965
        %v1968 = vunpack.c.l.s4 1966171168
        %v1969 = vunpack.c.0.s8 %v1968
        %v1970 = vlaneseq
        %v1971 = vshrl.u32 %v1970, 7
        %v1972 = vsub.s32 %v1969, %v1971
        %v1973 = vrot.slane %v1951, %v1972
        %v1975 = vunpack.c.l.s4 1966171168
        %v1976 = vunpack.c.0.s8 %v1975
        %v1977 = vlaneseq
        %v1978 = vshrl.u32 %v1977, 7
        %v1979 = vsub.s32 %v1976, %v1978
        %v1980 = vrot.slane %v1952, %v1979
        %v1981 = vcombine.high %v1959, %v1959
        %v1982 = vcombine.high %v1966, %v1966
        %v1983 = vcombine.high %v1973, %v1973
        %v1984 = vcombine.high %v1980, %v1980
        %v1985 = vlaneseq
        %v1986 = vshrl.u32 %v1985, 7
        %v1987 = vsub.s32 0, %v1986
        %v1988 = vrot.slane %v1910, %v1987
        %v1989 = vlaneseq
        %v1990 = vshrl.u32 %v1989, 7
        %v1991 = vsub.s32 0, %v1990
        %v1992 = vrot.slane %v1924, %v1991
        %v1993 = vlaneseq
        %v1994 = vshrl.u32 %v1993, 7
        %v1995 = vsub.s32 0, %v1994
        %v1996 = vrot.slane %v1932, %v1995
        %v1997 = vlaneseq
        %v1998 = vshrl.u32 %v1997, 7
        %v1999 = vsub.s32 0, %v1998
        %v2000 = vrot.slane %v1934, %v1999
        %v2001 = vlaneseq
        %v2002 = vshrl.u32 %v2001, 7
        %v2003 = vsub.s32 0, %v2002
        %v2004 = vrot.slane %v1917, %v2003
        %v2005 = vlaneseq
        %v2006 = vshrl.u32 %v2005, 7
        %v2007 = vsub.s32 0, %v2006
        %v2008 = vrot.slane %v1931, %v2007
        %v2009 = vlaneseq
        %v2010 = vshrl.u32 %v2009, 7
        %v2011 = vsub.s32 0, %v2010
        %v2012 = vrot.slane %v1933, %v2011
        %v2013 = vlaneseq
        %v2014 = vshrl.u32 %v2013, 7
        %v2015 = vsub.s32 0, %v2014
        %v2016 = vrot.slane %v1935, %v2015
        %v2017 = vlaneseq
        %v2018 = vshrl.u32 %v2017, 7
        %v2019 = vsub.s32 0, %v2018
        %v2020 = vrot.slane %v1959, %v2019
        %v2021 = vlaneseq
        %v2022 = vshrl.u32 %v2021, 7
        %v2023 = vsub.s32 0, %v2022
        %v2024 = vrot.slane %v1973, %v2023
        %v2025 = vlaneseq
        %v2026 = vshrl.u32 %v2025, 7
        %v2027 = vsub.s32 0, %v2026
        %v2028 = vrot.slane %v1981, %v2027
        %v2029 = vlaneseq
        %v2030 = vshrl.u32 %v2029, 7
        %v2031 = vsub.s32 0, %v2030
        %v2032 = vrot.slane %v1983, %v2031
        %v2033 = vlaneseq
        %v2034 = vshrl.u32 %v2033, 7
        %v2035 = vsub.s32 0, %v2034
        %v2036 = vrot.slane %v1966, %v2035
        %v2037 = vlaneseq
        %v2038 = vshrl.u32 %v2037, 7
        %v2039 = vsub.s32 0, %v2038
        %v2040 = vrot.slane %v1980, %v2039
        %v2041 = vlaneseq
        %v2042 = vshrl.u32 %v2041, 7
        %v2043 = vsub.s32 0, %v2042
        %v2044 = vrot.slane %v1982, %v2043
        %v2045 = vlaneseq
        %v2046 = vshrl.u32 %v2045, 7
        %v2047 = vsub.s32 0, %v2046
        %v2048 = vrot.slane %v1984, %v2047
        %v2065 = vadd.f32 %v1851, %v1988
        %v2066 = vadd.f32 %v1852, %v1988
        %v2067 = vadd.f32 %v1853, %v1992
        %v2068 = vadd.f32 %v1854, %v1992
        %v2069 = vadd.f32 %v1855, %v1996
        %v2070 = vadd.f32 %v1856, %v1996
        %v2071 = vadd.f32 %v1857, %v2000
        %v2072 = vadd.f32 %v1858, %v2000
        %v2073 = vadd.f32 %v1859, %v2004
        %v2074 = vadd.f32 %v1860, %v2004
        %v2075 = vadd.f32 %v1861, %v2008
        %v2076 = vadd.f32 %v1862, %v2008
        %v2077 = vadd.f32 %v1863, %v2012
        %v2078 = vadd.f32 %v1864, %v2012
        %v2079 = vadd.f32 %v1865, %v2016
        %v2080 = vadd.f32 %v1866, %v2016
        %v2081 = vadd.f32 %v1867, %v2020
        %v2082 = vadd.f32 %v1868, %v2020
        %v2083 = vadd.f32 %v1869, %v2024
        %v2084 = vadd.f32 %v1870, %v2024
        %v2085 = vadd.f32 %v1871, %v2028
        %v2086 = vadd.f32 %v1872, %v2028
        %v2087 = vadd.f32 %v1873, %v2032
        %v2088 = vadd.f32 %v1874, %v2032
        %v2089 = vadd.f32 %v1875, %v2036
        %v2090 = vadd.f32 %v1876, %v2036
        %v2091 = vadd.f32 %v1877, %v2040
        %v2092 = vadd.f32 %v1878, %v2040
        %v2093 = vadd.f32 %v1879, %v2044
        %v2094 = vadd.f32 %v1880, %v2044
        %v2095 = vadd.f32 %v1881, %v2048
        %v2096 = vadd.f32 %v1882, %v2048
        %v2097 = vld [vmem:[%s757] sm:$0xff]
        %v2098 = vld [vmem:[%s757 + $0x8] sm:$0xff]
        %v2099 = vadd.f32 %v2065, %v2097
        %v2100 = vadd.f32 %v2066, %v2098
        %v2101 = vadd.f32 %v2067, %v2097
        %v2102 = vadd.f32 %v2068, %v2098
        %v2103 = vadd.f32 %v2069, %v2097
        %v2104 = vadd.f32 %v2070, %v2098
        %v2105 = vadd.f32 %v2071, %v2097
        %v2106 = vadd.f32 %v2072, %v2098
        %v2107 = vadd.f32 %v2073, %v2097
        %v2108 = vadd.f32 %v2074, %v2098
        %v2109 = vadd.f32 %v2075, %v2097
        %v2110 = vadd.f32 %v2076, %v2098
        %v2111 = vadd.f32 %v2077, %v2097
        %v2112 = vadd.f32 %v2078, %v2098
        %v2113 = vadd.f32 %v2079, %v2097
        %v2114 = vadd.f32 %v2080, %v2098
        %v2115 = vadd.f32 %v2081, %v2097
        %v2116 = vadd.f32 %v2082, %v2098
        %v2117 = vadd.f32 %v2083, %v2097
        %v2118 = vadd.f32 %v2084, %v2098
        %v2119 = vadd.f32 %v2085, %v2097
        %v2120 = vadd.f32 %v2086, %v2098
        %v2121 = vadd.f32 %v2087, %v2097
        %v2122 = vadd.f32 %v2088, %v2098
        %v2123 = vadd.f32 %v2089, %v2097
        %v2124 = vadd.f32 %v2090, %v2098
        %v2125 = vadd.f32 %v2091, %v2097
        %v2126 = vadd.f32 %v2092, %v2098
        %v2127 = vadd.f32 %v2093, %v2097
        %v2128 = vadd.f32 %v2094, %v2098
        %v2129 = vadd.f32 %v2095, %v2097
        %v2130 = vadd.f32 %v2096, %v2098
        %v2131 = vmul.f32 %v2099, %v2099
        %v2132 = vmul.f32 %v2100, %v2100
        %v2133 = vmul.f32 %v2101, %v2101
        %v2134 = vmul.f32 %v2102, %v2102
        %v2135 = vmul.f32 %v2103, %v2103
        %v2136 = vmul.f32 %v2104, %v2104
        %v2137 = vmul.f32 %v2105, %v2105
        %v2138 = vmul.f32 %v2106, %v2106
        %v2139 = vmul.f32 %v2107, %v2107
        %v2140 = vmul.f32 %v2108, %v2108
        %v2141 = vmul.f32 %v2109, %v2109
        %v2142 = vmul.f32 %v2110, %v2110
        %v2143 = vmul.f32 %v2111, %v2111
        %v2144 = vmul.f32 %v2112, %v2112
        %v2145 = vmul.f32 %v2113, %v2113
        %v2146 = vmul.f32 %v2114, %v2114
        %v2147 = vmul.f32 %v2115, %v2115
        %v2148 = vmul.f32 %v2116, %v2116
        %v2149 = vmul.f32 %v2117, %v2117
        %v2150 = vmul.f32 %v2118, %v2118
        %v2151 = vmul.f32 %v2119, %v2119
        %v2152 = vmul.f32 %v2120, %v2120
        %v2153 = vmul.f32 %v2121, %v2121
        %v2154 = vmul.f32 %v2122, %v2122
        %v2155 = vmul.f32 %v2123, %v2123
        %v2156 = vmul.f32 %v2124, %v2124
        %v2157 = vmul.f32 %v2125, %v2125
        %v2158 = vmul.f32 %v2126, %v2126
        %v2159 = vmul.f32 %v2127, %v2127
        %v2160 = vmul.f32 %v2128, %v2128
        %v2161 = vmul.f32 %v2129, %v2129
        %v2162 = vmul.f32 %v2130, %v2130
        %v2163 = vmul.f32 %v2099, %v2131
        %v2164 = vmul.f32 %v2100, %v2132
        %v2165 = vmul.f32 %v2101, %v2133
        %v2166 = vmul.f32 %v2102, %v2134
        %v2167 = vmul.f32 %v2103, %v2135
        %v2168 = vmul.f32 %v2104, %v2136
        %v2169 = vmul.f32 %v2105, %v2137
        %v2170 = vmul.f32 %v2106, %v2138
        %v2171 = vmul.f32 %v2107, %v2139
        %v2172 = vmul.f32 %v2108, %v2140
        %v2173 = vmul.f32 %v2109, %v2141
        %v2174 = vmul.f32 %v2110, %v2142
        %v2175 = vmul.f32 %v2111, %v2143
        %v2176 = vmul.f32 %v2112, %v2144
        %v2177 = vmul.f32 %v2113, %v2145
        %v2178 = vmul.f32 %v2114, %v2146
        %v2179 = vmul.f32 %v2115, %v2147
        %v2180 = vmul.f32 %v2116, %v2148
        %v2181 = vmul.f32 %v2117, %v2149
        %v2182 = vmul.f32 %v2118, %v2150
        %v2183 = vmul.f32 %v2119, %v2151
        %v2184 = vmul.f32 %v2120, %v2152
        %v2185 = vmul.f32 %v2121, %v2153
        %v2186 = vmul.f32 %v2122, %v2154
        %v2187 = vmul.f32 %v2123, %v2155
        %v2188 = vmul.f32 %v2124, %v2156
        %v2189 = vmul.f32 %v2125, %v2157
        %v2190 = vmul.f32 %v2126, %v2158
        %v2191 = vmul.f32 %v2127, %v2159
        %v2192 = vmul.f32 %v2128, %v2160
        %v2193 = vmul.f32 %v2129, %v2161
        %v2194 = vmul.f32 %v2130, %v2162
        %v2195 = vmul.f32 %v2163, 0.044715
        %v2196 = vmul.f32 %v2164, 0.044715
        %v2197 = vmul.f32 %v2165, 0.044715
        %v2198 = vmul.f32 %v2166, 0.044715
        %v2199 = vmul.f32 %v2167, 0.044715
        %v2200 = vmul.f32 %v2168, 0.044715
        %v2201 = vmul.f32 %v2169, 0.044715
        %v2202 = vmul.f32 %v2170, 0.044715
        %v2203 = vmul.f32 %v2171, 0.044715
        %v2204 = vmul.f32 %v2172, 0.044715
        %v2205 = vmul.f32 %v2173, 0.044715
        %v2206 = vmul.f32 %v2174, 0.044715
        %v2207 = vmul.f32 %v2175, 0.044715
        %v2208 = vmul.f32 %v2176, 0.044715
        %v2209 = vmul.f32 %v2177, 0.044715
        %v2210 = vmul.f32 %v2178, 0.044715
        %v2211 = vmul.f32 %v2179, 0.044715
        %v2212 = vmul.f32 %v2180, 0.044715
        %v2213 = vmul.f32 %v2181, 0.044715
        %v2214 = vmul.f32 %v2182, 0.044715
        %v2215 = vmul.f32 %v2183, 0.044715
        %v2216 = vmul.f32 %v2184, 0.044715
        %v2217 = vmul.f32 %v2185, 0.044715
        %v2218 = vmul.f32 %v2186, 0.044715
        %v2219 = vmul.f32 %v2187, 0.044715
        %v2220 = vmul.f32 %v2188, 0.044715
        %v2221 = vmul.f32 %v2189, 0.044715
        %v2222 = vmul.f32 %v2190, 0.044715
        %v2223 = vmul.f32 %v2191, 0.044715
        %v2224 = vmul.f32 %v2192, 0.044715
        %v2225 = vmul.f32 %v2193, 0.044715
        %v2226 = vmul.f32 %v2194, 0.044715
        %v2227 = vadd.f32 %v2099, %v2195
        %v2228 = vadd.f32 %v2100, %v2196
        %v2229 = vadd.f32 %v2101, %v2197
        %v2230 = vadd.f32 %v2102, %v2198
        %v2231 = vadd.f32 %v2103, %v2199
        %v2232 = vadd.f32 %v2104, %v2200
        %v2233 = vadd.f32 %v2105, %v2201
        %v2234 = vadd.f32 %v2106, %v2202
        %v2235 = vadd.f32 %v2107, %v2203
        %v2236 = vadd.f32 %v2108, %v2204
        %v2237 = vadd.f32 %v2109, %v2205
        %v2238 = vadd.f32 %v2110, %v2206
        %v2239 = vadd.f32 %v2111, %v2207
        %v2240 = vadd.f32 %v2112, %v2208
        %v2241 = vadd.f32 %v2113, %v2209
        %v2242 = vadd.f32 %v2114, %v2210
        %v2243 = vadd.f32 %v2115, %v2211
        %v2244 = vadd.f32 %v2116, %v2212
        %v2245 = vadd.f32 %v2117, %v2213
        %v2246 = vadd.f32 %v2118, %v2214
        %v2247 = vadd.f32 %v2119, %v2215
        %v2248 = vadd.f32 %v2120, %v2216
        %v2249 = vadd.f32 %v2121, %v2217
        %v2250 = vadd.f32 %v2122, %v2218
        %v2251 = vadd.f32 %v2123, %v2219
        %v2252 = vadd.f32 %v2124, %v2220
        %v2253 = vadd.f32 %v2125, %v2221
        %v2254 = vadd.f32 %v2126, %v2222
        %v2255 = vadd.f32 %v2127, %v2223
        %v2256 = vadd.f32 %v2128, %v2224
        %v2257 = vadd.f32 %v2129, %v2225
        %v2258 = vadd.f32 %v2130, %v2226
        %v2259 = vmul.f32 %v2227, 0.7978846
        %v2260 = vmul.f32 %v2228, 0.7978846
        %v2261 = vmul.f32 %v2229, 0.7978846
        %v2262 = vmul.f32 %v2230, 0.7978846
        %v2263 = vmul.f32 %v2231, 0.7978846
        %v2264 = vmul.f32 %v2232, 0.7978846
        %v2265 = vmul.f32 %v2233, 0.7978846
        %v2266 = vmul.f32 %v2234, 0.7978846
        %v2267 = vmul.f32 %v2235, 0.7978846
        %v2268 = vmul.f32 %v2236, 0.7978846
        %v2269 = vmul.f32 %v2237, 0.7978846
        %v2270 = vmul.f32 %v2238, 0.7978846
        %v2271 = vmul.f32 %v2239, 0.7978846
        %v2272 = vmul.f32 %v2240, 0.7978846
        %v2273 = vmul.f32 %v2241, 0.7978846
        %v2274 = vmul.f32 %v2242, 0.7978846
        %v2275 = vmul.f32 %v2243, 0.7978846
        %v2276 = vmul.f32 %v2244, 0.7978846
        %v2277 = vmul.f32 %v2245, 0.7978846
        %v2278 = vmul.f32 %v2246, 0.7978846
        %v2279 = vmul.f32 %v2247, 0.7978846
        %v2280 = vmul.f32 %v2248, 0.7978846
        %v2281 = vmul.f32 %v2249, 0.7978846
        %v2282 = vmul.f32 %v2250, 0.7978846
        %v2283 = vmul.f32 %v2251, 0.7978846
        %v2284 = vmul.f32 %v2252, 0.7978846
        %v2285 = vmul.f32 %v2253, 0.7978846
        %v2286 = vmul.f32 %v2254, 0.7978846
        %v2287 = vmul.f32 %v2255, 0.7978846
        %v2288 = vmul.f32 %v2256, 0.7978846
        %v2289 = vmul.f32 %v2257, 0.7978846
        %v2290 = vmul.f32 %v2258, 0.7978846
        %v2291 = vtanh.pop %v2259
        %v2292 = vtanh.pop %v2260
        %v2293 = vtanh.pop %v2261
        %v2294 = vtanh.pop %v2262
        %v2295 = vtanh.pop %v2263
        %v2296 = vtanh.pop %v2264
        %v2297 = vtanh.pop %v2265
        %v2298 = vtanh.pop %v2266
        %v2299 = vtanh.pop %v2267
        %v2300 = vtanh.pop %v2268
        %v2301 = vtanh.pop %v2269
        %v2302 = vtanh.pop %v2270
        %v2303 = vtanh.pop %v2271
        %v2304 = vtanh.pop %v2272
        %v2305 = vtanh.pop %v2273
        %v2306 = vtanh.pop %v2274
        %v2307 = vtanh.pop %v2275
        %v2308 = vtanh.pop %v2276
        %v2309 = vtanh.pop %v2277
        %v2310 = vtanh.pop %v2278
        %v2311 = vtanh.pop %v2279
        %v2312 = vtanh.pop %v2280
        %v2313 = vtanh.pop %v2281
        %v2314 = vtanh.pop %v2282
        %v2315 = vtanh.pop %v2283
        %v2316 = vtanh.pop %v2284
        %v2317 = vtanh.pop %v2285
        %v2318 = vtanh.pop %v2286
        %v2319 = vtanh.pop %v2287
        %v2320 = vtanh.pop %v2288
        %v2321 = vtanh.pop %v2289
        %v2322 = vtanh.pop %v2290
        %v2323 = vadd.f32 %v2291, 1.0
        %v2324 = vadd.f32 %v2292, 1.0
        %v2325 = vadd.f32 %v2293, 1.0
        %v2326 = vadd.f32 %v2294, 1.0
        %v2327 = vadd.f32 %v2295, 1.0
        %v2328 = vadd.f32 %v2296, 1.0
        %v2329 = vadd.f32 %v2297, 1.0
        %v2330 = vadd.f32 %v2298, 1.0
        %v2331 = vadd.f32 %v2299, 1.0
        %v2332 = vadd.f32 %v2300, 1.0
        %v2333 = vadd.f32 %v2301, 1.0
        %v2334 = vadd.f32 %v2302, 1.0
        %v2335 = vadd.f32 %v2303, 1.0
        %v2336 = vadd.f32 %v2304, 1.0
        %v2337 = vadd.f32 %v2305, 1.0
        %v2338 = vadd.f32 %v2306, 1.0
        %v2339 = vadd.f32 %v2307, 1.0
        %v2340 = vadd.f32 %v2308, 1.0
        %v2341 = vadd.f32 %v2309, 1.0
        %v2342 = vadd.f32 %v2310, 1.0
        %v2343 = vadd.f32 %v2311, 1.0
        %v2344 = vadd.f32 %v2312, 1.0
        %v2345 = vadd.f32 %v2313, 1.0
        %v2346 = vadd.f32 %v2314, 1.0
        %v2347 = vadd.f32 %v2315, 1.0
        %v2348 = vadd.f32 %v2316, 1.0
        %v2349 = vadd.f32 %v2317, 1.0
        %v2350 = vadd.f32 %v2318, 1.0
        %v2351 = vadd.f32 %v2319, 1.0
        %v2352 = vadd.f32 %v2320, 1.0
        %v2353 = vadd.f32 %v2321, 1.0
        %v2354 = vadd.f32 %v2322, 1.0
        %v2355 = vmul.f32 %v2323, 0.5
        %v2356 = vmul.f32 %v2324, 0.5
        %v2357 = vmul.f32 %v2325, 0.5
        %v2358 = vmul.f32 %v2326, 0.5
        %v2359 = vmul.f32 %v2327, 0.5
        %v2360 = vmul.f32 %v2328, 0.5
        %v2361 = vmul.f32 %v2329, 0.5
        %v2362 = vmul.f32 %v2330, 0.5
        %v2363 = vmul.f32 %v2331, 0.5
        %v2364 = vmul.f32 %v2332, 0.5
        %v2365 = vmul.f32 %v2333, 0.5
        %v2366 = vmul.f32 %v2334, 0.5
        %v2367 = vmul.f32 %v2335, 0.5
        %v2368 = vmul.f32 %v2336, 0.5
        %v2369 = vmul.f32 %v2337, 0.5
        %v2370 = vmul.f32 %v2338, 0.5
        %v2371 = vmul.f32 %v2339, 0.5
        %v2372 = vmul.f32 %v2340, 0.5
        %v2373 = vmul.f32 %v2341, 0.5
        %v2374 = vmul.f32 %v2342, 0.5
        %v2375 = vmul.f32 %v2343, 0.5
        %v2376 = vmul.f32 %v2344, 0.5
        %v2377 = vmul.f32 %v2345, 0.5
        %v2378 = vmul.f32 %v2346, 0.5
        %v2379 = vmul.f32 %v2347, 0.5
        %v2380 = vmul.f32 %v2348, 0.5
        %v2381 = vmul.f32 %v2349, 0.5
        %v2382 = vmul.f32 %v2350, 0.5
        %v2383 = vmul.f32 %v2351, 0.5
        %v2384 = vmul.f32 %v2352, 0.5
        %v2385 = vmul.f32 %v2353, 0.5
        %v2386 = vmul.f32 %v2354, 0.5
        %v2387 = vmul.f32 %v2099, %v2355
        %v2388 = vmul.f32 %v2100, %v2356
        %v2389 = vmul.f32 %v2101, %v2357
        %v2390 = vmul.f32 %v2102, %v2358
        %v2391 = vmul.f32 %v2103, %v2359
        %v2392 = vmul.f32 %v2104, %v2360
        %v2393 = vmul.f32 %v2105, %v2361
        %v2394 = vmul.f32 %v2106, %v2362
        %v2395 = vmul.f32 %v2107, %v2363
        %v2396 = vmul.f32 %v2108, %v2364
        %v2397 = vmul.f32 %v2109, %v2365
        %v2398 = vmul.f32 %v2110, %v2366
        %v2399 = vmul.f32 %v2111, %v2367
        %v2400 = vmul.f32 %v2112, %v2368
        %v2401 = vmul.f32 %v2113, %v2369
        %v2402 = vmul.f32 %v2114, %v2370
        %v2403 = vmul.f32 %v2115, %v2371
        %v2404 = vmul.f32 %v2116, %v2372
        %v2405 = vmul.f32 %v2117, %v2373
        %v2406 = vmul.f32 %v2118, %v2374
        %v2407 = vmul.f32 %v2119, %v2375
        %v2408 = vmul.f32 %v2120, %v2376
        %v2409 = vmul.f32 %v2121, %v2377
        %v2410 = vmul.f32 %v2122, %v2378
        %v2411 = vmul.f32 %v2123, %v2379
        %v2412 = vmul.f32 %v2124, %v2380
        %v2413 = vmul.f32 %v2125, %v2381
        %v2414 = vmul.f32 %v2126, %v2382
        %v2415 = vmul.f32 %v2127, %v2383
        %v2416 = vmul.f32 %v2128, %v2384
        %v2417 = vmul.f32 %v2129, %v2385
        %v2418 = vmul.f32 %v2130, %v2386
        %v2419 = vld [vmem:[%s6] sm:$0xff]
        %v2420 = vld [vmem:[%s6 + $0x8] sm:$0xff]
        %v2421 = vld [vmem:[%s6 + $0x10] sm:$0xff]
        %v2422 = vld [vmem:[%s6 + $0x18] sm:$0xff]
        %v2423 = vld [vmem:[%s6 + $0x20] sm:$0xff]
        %v2424 = vld [vmem:[%s6 + $0x28] sm:$0xff]
        %v2425 = vld [vmem:[%s6 + $0x30] sm:$0xff]
        %v2426 = vld [vmem:[%s6 + $0x38] sm:$0xff]
        %v2427 = vld [vmem:[%s6 + $0x40] sm:$0xff]
        %v2428 = vld [vmem:[%s6 + $0x48] sm:$0xff]
        %v2429 = vld [vmem:[%s6 + $0x50] sm:$0xff]
        %v2430 = vld [vmem:[%s6 + $0x58] sm:$0xff]
        %v2431 = vld [vmem:[%s6 + $0x60] sm:$0xff]
        %v2432 = vld [vmem:[%s6 + $0x68] sm:$0xff]
        %v2433 = vld [vmem:[%s6 + $0x70] sm:$0xff]
        %v2434 = vld [vmem:[%s6 + $0x78] sm:$0xff]
        %v2435 = vld [vmem:[%s7] sm:$0x1]
        %v2437 = vlaneseq
        %v2438 = vshrl.u32 %v2437, 7
        %v2439 = vsub.s32 0, %v2438
        %v2440 = vrot.slane %v2435, %v2439
        %2442 = vmatprep.subr.mxu0 0.0
        %2443 = vmatpush1.msra.mxu0 %v2419
        %2444 = vmatprep.subr.mxu0 0.0
        %2445 = vmatpush1.msra.mxu0 %v2420
        %2446 = vmatprep.subr.mxu0 0.0
        %2447 = vmatpush1.msra.mxu0 %v2421
        %2448 = vmatprep.subr.mxu0 0.0
        %2449 = vmatpush1.msra.mxu0 %v2422
        %2450 = vmatprep.subr.mxu0 0.0
        %2451 = vmatpush1.msra.mxu0 %v2423
        %2452 = vmatprep.subr.mxu0 0.0
        %2453 = vmatpush1.msra.mxu0 %v2424
        %2454 = vmatprep.subr.mxu0 0.0
        %2455 = vmatpush1.msra.mxu0 %v2425
        %2456 = vmatprep.subr.mxu0 0.0
        %2457 = vmatpush1.msra.mxu0 %v2426
        %2458 = vmatprep.subr.mxu0 0.0
        %2459 = vmatpush1.msra.mxu0 %v2427
        %2460 = vmatprep.subr.mxu0 0.0
        %2461 = vmatpush1.msra.mxu0 %v2428
        %2462 = vmatprep.subr.mxu0 0.0
        %2463 = vmatpush1.msra.mxu0 %v2429
        %2464 = vmatprep.subr.mxu0 0.0
        %2465 = vmatpush1.msra.mxu0 %v2430
        %2466 = vmatprep.subr.mxu0 0.0
        %2467 = vmatpush1.msra.mxu0 %v2431
        %2468 = vmatprep.subr.mxu0 0.0
        %2469 = vmatpush1.msra.mxu0 %v2432
        %2470 = vmatprep.subr.mxu0 0.0
        %2471 = vmatpush1.msra.mxu0 %v2433
        %2472 = vmatprep.subr.mxu0 0.0
        %2473 = vmatpush1.msra.mxu0 %v2434
        %2474 = vmatprep.subr.mxu0 0.0
        %2475 = vmatpush1.msra.mxu0 0.0
        %2476 = vmatprep.subr.mxu0 0.0
        %2477 = vmatpush1.msra.mxu0 0.0
        %2478 = vmatprep.subr.mxu0 0.0
        %2479 = vmatpush1.msra.mxu0 0.0
        %2480 = vmatprep.subr.mxu0 0.0
        %2481 = vmatpush1.msra.mxu0 0.0
        %2482 = vmatprep.subr.mxu0 0.0
        %2483 = vmatpush1.msra.mxu0 0.0
        %2484 = vmatprep.subr.mxu0 0.0
        %2485 = vmatpush1.msra.mxu0 0.0
        %2486 = vmatprep.subr.mxu0 0.0
        %2487 = vmatpush1.msra.mxu0 0.0
        %2488 = vmatprep.subr.mxu0 0.0
        %2489 = vmatpush1.msra.mxu0 0.0
        %2490 = vmatprep.subr.mxu0 0.0
        %2491 = vmatpush1.msra.mxu0 0.0
        %2492 = vmatprep.subr.mxu0 0.0
        %2493 = vmatpush1.msra.mxu0 0.0
        %2494 = vmatprep.subr.mxu0 0.0
        %2495 = vmatpush1.msra.mxu0 0.0
        %2496 = vmatprep.subr.mxu0 0.0
        %2497 = vmatpush1.msra.mxu0 0.0
        %2498 = vmatprep.subr.mxu0 0.0
        %2499 = vmatpush1.msra.mxu0 0.0
        %2500 = vmatprep.subr.mxu0 0.0
        %2501 = vmatpush1.msra.mxu0 0.0
        %2502 = vmatprep.subr.mxu0 0.0
        %2503 = vmatpush1.msra.mxu0 0.0
        %2504 = vmatprep.subr.mxu0 0.0
        %2505 = vmatpush1.msra.mxu0 0.0
        %2506 = vmatprep.mubr.f32.mxu0 0.0
        %2507 = vmatmul.mubr.f32.gmra.mrb[0].mxu0 %v2387
        %v2508 = vpop.f32.mrb[0].mxu0
        %v2509 = vadd.f32 %v2440, %v2508
        %v2510 = vpop.f32.mrb[0].mxu0
        %2511 = vmatprep.mubr.f32.mxu0 0.0
        %2512 = vmatmul.mubr.f32.gmra.mrb[0].mxu0 %v2388
        %v2513 = vpop.f32.mrb[0].mxu0
        %v2514 = vadd.f32 %v2440, %v2513
        %v2515 = vpop.f32.mrb[0].mxu0
        %2516 = vmatprep.mubr.f32.mxu0 0.0
        %2517 = vmatmul.mubr.f32.gmra.mrb[0].mxu0 %v2389
        %v2518 = vpop.f32.mrb[0].mxu0
        %v2519 = vadd.f32 %v2440, %v2518
        %v2520 = vpop.f32.mrb[0].mxu0
        %2521 = vmatprep.mubr.f32.mxu0 0.0
        %2522 = vmatmul.mubr.f32.gmra.mrb[0].mxu0 %v2390
        %v2523 = vpop.f32.mrb[0].mxu0
        %v2524 = vadd.f32 %v2440, %v2523
        %v2525 = vpop.f32.mrb[0].mxu0
        %2526 = vmatprep.mubr.f32.mxu0 0.0
        %2527 = vmatmul.mubr.f32.gmra.mrb[0].mxu0 %v2391
        %v2528 = vpop.f32.mrb[0].mxu0
        %v2529 = vadd.f32 %v2440, %v2528
        %v2530 = vpop.f32.mrb[0].mxu0
        %2531 = vmatprep.mubr.f32.mxu0 0.0
        %2532 = vmatmul.mubr.f32.gmra.mrb[0].mxu0 %v2392
        %v2533 = vpop.f32.mrb[0].mxu0
        %v2534 = vadd.f32 %v2440, %v2533
        %v2535 = vpop.f32.mrb[0].mxu0
        %2536 = vmatprep.mubr.f32.mxu0 0.0
        %2537 = vmatmul.mubr.f32.gmra.mrb[0].mxu0 %v2393
        %v2538 = vpop.f32.mrb[0].mxu0
        %v2539 = vadd.f32 %v2440, %v2538
        %v2540 = vpop.f32.mrb[0].mxu0
        %2541 = vmatprep.mubr.f32.mxu0 0.0
        %2542 = vmatmul.mubr.f32.gmra.mrb[0].mxu0 %v2394
        %v2543 = vpop.f32.mrb[0].mxu0
        %v2544 = vadd.f32 %v2440, %v2543
        %v2545 = vpop.f32.mrb[0].mxu0
        %2546 = vmatprep.mubr.f32.mxu0 0.0
        %2547 = vmatmul.mubr.f32.gmra.mrb[0].mxu0 %v2395
        %v2548 = vpop.f32.mrb[0].mxu0
        %v2549 = vadd.f32 %v2440, %v2548
        %v2550 = vpop.f32.mrb[0].mxu0
        %2551 = vmatprep.mubr.f32.mxu0 0.0
        %2552 = vmatmul.mubr.f32.gmra.mrb[0].mxu0 %v2396
        %v2553 = vpop.f32.mrb[0].mxu0
        %v2554 = vadd.f32 %v2440, %v2553
        %v2555 = vpop.f32.mrb[0].mxu0
        %2556 = vmatprep.mubr.f32.mxu0 0.0
        %2557 = vmatmul.mubr.f32.gmra.mrb[0].mxu0 %v2397
        %v2558 = vpop.f32.mrb[0].mxu0
        %v2559 = vadd.f32 %v2440, %v2558
        %v2560 = vpop.f32.mrb[0].mxu0
        %2561 = vmatprep.mubr.f32.mxu0 0.0
        %2562 = vmatmul.mubr.f32.gmra.mrb[0].mxu0 %v2398
        %v2563 = vpop.f32.mrb[0].mxu0
        %v2564 = vadd.f32 %v2440, %v2563
        %v2565 = vpop.f32.mrb[0].mxu0
        %2566 = vmatprep.mubr.f32.mxu0 0.0
        %2567 = vmatmul.mubr.f32.gmra.mrb[0].mxu0 %v2399
        %v2568 = vpop.f32.mrb[0].mxu0
        %v2569 = vadd.f32 %v2440, %v2568
        %v2570 = vpop.f32.mrb[0].mxu0
        %2571 = vmatprep.mubr.f32.mxu0 0.0
        %2572 = vmatmul.mubr.f32.gmra.mrb[0].mxu0 %v2400
        %v2573 = vpop.f32.mrb[0].mxu0
        %v2574 = vadd.f32 %v2440, %v2573
        %v2575 = vpop.f32.mrb[0].mxu0
        %2576 = vmatprep.mubr.f32.mxu0 0.0
        %2577 = vmatmul.mubr.f32.gmra.mrb[0].mxu0 %v2401
        %v2578 = vpop.f32.mrb[0].mxu0
        %v2579 = vadd.f32 %v2440, %v2578
        %v2580 = vpop.f32.mrb[0].mxu0
        %2581 = vmatprep.mubr.f32.mxu0 0.0
        %2582 = vmatmul.mubr.f32.gmra.mrb[0].mxu0 %v2402
        %v2583 = vpop.f32.mrb[0].mxu0
        %v2584 = vadd.f32 %v2440, %v2583
        %v2585 = vpop.f32.mrb[0].mxu0
        %2586 = vmatprep.mubr.f32.mxu0 0.0
        %2587 = vmatmul.mubr.f32.gmra.mrb[0].mxu0 %v2403
        %v2588 = vpop.f32.mrb[0].mxu0
        %v2589 = vadd.f32 %v2440, %v2588
        %v2590 = vpop.f32.mrb[0].mxu0
        %2591 = vmatprep.mubr.f32.mxu0 0.0
        %2592 = vmatmul.mubr.f32.gmra.mrb[0].mxu0 %v2404
        %v2593 = vpop.f32.mrb[0].mxu0
        %v2594 = vadd.f32 %v2440, %v2593
        %v2595 = vpop.f32.mrb[0].mxu0
        %2596 = vmatprep.mubr.f32.mxu0 0.0
        %2597 = vmatmul.mubr.f32.gmra.mrb[0].mxu0 %v2405
        %v2598 = vpop.f32.mrb[0].mxu0
        %v2599 = vadd.f32 %v2440, %v2598
        %v2600 = vpop.f32.mrb[0].mxu0
        %2601 = vmatprep.mubr.f32.mxu0 0.0
        %2602 = vmatmul.mubr.f32.gmra.mrb[0].mxu0 %v2406
        %v2603 = vpop.f32.mrb[0].mxu0
        %v2604 = vadd.f32 %v2440, %v2603
        %v2605 = vpop.f32.mrb[0].mxu0
        %2606 = vmatprep.mubr.f32.mxu0 0.0
        %2607 = vmatmul.mubr.f32.gmra.mrb[0].mxu0 %v2407
        %v2608 = vpop.f32.mrb[0].mxu0
        %v2609 = vadd.f32 %v2440, %v2608
        %v2610 = vpop.f32.mrb[0].mxu0
        %2611 = vmatprep.mubr.f32.mxu0 0.0
        %2612 = vmatmul.mubr.f32.gmra.mrb[0].mxu0 %v2408
        %v2613 = vpop.f32.mrb[0].mxu0
        %v2614 = vadd.f32 %v2440, %v2613
        %v2615 = vpop.f32.mrb[0].mxu0
        %2616 = vmatprep.mubr.f32.mxu0 0.0
        %2617 = vmatmul.mubr.f32.gmra.mrb[0].mxu0 %v2409
        %v2618 = vpop.f32.mrb[0].mxu0
        %v2619 = vadd.f32 %v2440, %v2618
        %v2620 = vpop.f32.mrb[0].mxu0
        %2621 = vmatprep.mubr.f32.mxu0 0.0
        %2622 = vmatmul.mubr.f32.gmra.mrb[0].mxu0 %v2410
        %v2623 = vpop.f32.mrb[0].mxu0
        %v2624 = vadd.f32 %v2440, %v2623
        %v2625 = vpop.f32.mrb[0].mxu0
        %2626 = vmatprep.mubr.f32.mxu0 0.0
        %2627 = vmatmul.mubr.f32.gmra.mrb[0].mxu0 %v2411
        %v2628 = vpop.f32.mrb[0].mxu0
        %v2629 = vadd.f32 %v2440, %v2628
        %v2630 = vpop.f32.mrb[0].mxu0
        %2631 = vmatprep.mubr.f32.mxu0 0.0
        %2632 = vmatmul.mubr.f32.gmra.mrb[0].mxu0 %v2412
        %v2633 = vpop.f32.mrb[0].mxu0
        %v2634 = vadd.f32 %v2440, %v2633
        %v2635 = vpop.f32.mrb[0].mxu0
        %2636 = vmatprep.mubr.f32.mxu0 0.0
        %2637 = vmatmul.mubr.f32.gmra.mrb[0].mxu0 %v2413
        %v2638 = vpop.f32.mrb[0].mxu0
        %v2639 = vadd.f32 %v2440, %v2638
        %v2640 = vpop.f32.mrb[0].mxu0
        %2641 = vmatprep.mubr.f32.mxu0 0.0
        %2642 = vmatmul.mubr.f32.gmra.mrb[0].mxu0 %v2414
        %v2643 = vpop.f32.mrb[0].mxu0
        %v2644 = vadd.f32 %v2440, %v2643
        %v2645 = vpop.f32.mrb[0].mxu0
        %2646 = vmatprep.mubr.f32.mxu0 0.0
        %2647 = vmatmul.mubr.f32.gmra.mrb[0].mxu0 %v2415
        %v2648 = vpop.f32.mrb[0].mxu0
        %v2649 = vadd.f32 %v2440, %v2648
        %v2650 = vpop.f32.mrb[0].mxu0
        %2651 = vmatprep.mubr.f32.mxu0 0.0
        %2652 = vmatmul.mubr.f32.gmra.mrb[0].mxu0 %v2416
        %v2653 = vpop.f32.mrb[0].mxu0
        %v2654 = vadd.f32 %v2440, %v2653
        %v2655 = vpop.f32.mrb[0].mxu0
        %2656 = vmatprep.mubr.f32.mxu0 0.0
        %2657 = vmatmul.mubr.f32.gmra.mrb[0].mxu0 %v2417
        %v2658 = vpop.f32.mrb[0].mxu0
        %v2659 = vadd.f32 %v2440, %v2658
        %v2660 = vpop.f32.mrb[0].mxu0
        %2661 = vmatprep.mubr.f32.mxu0 0.0
        %2662 = vmatmul.mubr.f32.gmra.mrb[0].mxu0 %v2418
        %v2663 = vpop.f32.mrb[0].mxu0
        %v2664 = vadd.f32 %v2440, %v2663
        %v2665 = vpop.f32.mrb[0].mxu0
        %2666 = vdwg.mxu0
        %2667 = vst [vmem:[%s734] sm:$0xff] %v2509
        %2668 = vst [vmem:[%s734 + $0x8] sm:$0xff] %v2514
        %2669 = vst [vmem:[%s734 + $0x10] sm:$0xff] %v2519
        %2670 = vst [vmem:[%s734 + $0x18] sm:$0xff] %v2524
        %2671 = vst [vmem:[%s734 + $0x20] sm:$0xff] %v2529
        %2672 = vst [vmem:[%s734 + $0x28] sm:$0xff] %v2534
        %2673 = vst [vmem:[%s734 + $0x30] sm:$0xff] %v2539
        %2674 = vst [vmem:[%s734 + $0x38] sm:$0xff] %v2544
        %2675 = vst [vmem:[%s734 + $0x40] sm:$0xff] %v2549
        %2676 = vst [vmem:[%s734 + $0x48] sm:$0xff] %v2554
        %2677 = vst [vmem:[%s734 + $0x50] sm:$0xff] %v2559
        %2678 = vst [vmem:[%s734 + $0x58] sm:$0xff] %v2564
        %2679 = vst [vmem:[%s734 + $0x60] sm:$0xff] %v2569
        %2680 = vst [vmem:[%s734 + $0x68] sm:$0xff] %v2574
        %2681 = vst [vmem:[%s734 + $0x70] sm:$0xff] %v2579
        %2682 = vst [vmem:[%s734 + $0x78] sm:$0xff] %v2584
        %2683 = vst [vmem:[%s734 + $0x80] sm:$0xff] %v2589
        %2684 = vst [vmem:[%s734 + $0x88] sm:$0xff] %v2594
        %2685 = vst [vmem:[%s734 + $0x90] sm:$0xff] %v2599
        %2686 = vst [vmem:[%s734 + $0x98] sm:$0xff] %v2604
        %2687 = vst [vmem:[%s734 + $0xa0] sm:$0xff] %v2609
        %2688 = vst [vmem:[%s734 + $0xa8] sm:$0xff] %v2614
        %2689 = vst [vmem:[%s734 + $0xb0] sm:$0xff] %v2619
        %2690 = vst [vmem:[%s734 + $0xb8] sm:$0xff] %v2624
        %2691 = vst [vmem:[%s734 + $0xc0] sm:$0xff] %v2629
        %2692 = vst [vmem:[%s734 + $0xc8] sm:$0xff] %v2634
        %2693 = vst [vmem:[%s734 + $0xd0] sm:$0xff] %v2639
        %2694 = vst [vmem:[%s734 + $0xd8] sm:$0xff] %v2644
        %2695 = vst [vmem:[%s734 + $0xe0] sm:$0xff] %v2649
        %2696 = vst [vmem:[%s734 + $0xe8] sm:$0xff] %v2654
        %2697 = vst [vmem:[%s734 + $0xf0] sm:$0xff] %v2659
        %2698 = vst [vmem:[%s734 + $0xf8] sm:$0xff] %v2664
        %s2699 = sand.u32 %s253, 1
        %s2700 = scalar_lea.sflag [#allocation5], %s2699
        %s2701 = sand.u32 %s253, 1
        %s2702 = smul.addr %s2701, 256
        %s2703 = scalar_lea.vmem [#allocation4], %s2702
        // Predicated region
        $region129: #{edge_mlp.1} parent=119 // pred_check
          %p2704 = pneg %p263
        $region130: #{edge_mlp.1} parent=119 // pred_check_branch
          %2706 = sbr.rel (%p2704) target = $region132
        $region131: #{edge_mlp.1} parent=119 // pred_region
          #allocation7 [shape = 'u32[6]{0}', space=smem, size = 0x18, scoped, tag = 'DMA stride descriptor']
          %s2707 = smul.u32 16, %s28
          %s2708 = smul.u32 2, %s29
          %s2710 = ssub.s32 4096, 4096
          %2711 = vsyncadd %s2700, %s2710
          %s2712 = smul.addr %s2707, 4
          %s2713 = sadd.s32 %s2708, %s2712
          %s2714 = smul.addr %s27, 128
          %s2715 = sadd.s32 %s2713, %s2714
          %s2716 = smul.addr %s2715, 128
          %s2717 = scalar_lea.hbm %s8, %s2716
          %s2719 = sshll.u32 1, 14
          %s2720 = sxor.u32 4294967295, %s2719
          %s2723 = sshll.u32 7, 18
          %s2724 = sxor.u32 4294967295, %s2723
          %s2725 = sand.u32 0, %s2724
          %s2727 = sor.u32 %s2725, 0
          %s2729 = sshll.u32 3, 24
          %s2730 = sxor.u32 4294967295, %s2729
          %s2731 = sand.u32 %s2727, %s2730
          %s2733 = sor.u32 %s2731, 0
          %s2734 = sshll.u32 %s2703, 4
          %s2735 = int_to_ptr.vmem [resolvable:$true] %s2734
          %2741 = sst [smem:[#allocation7]] 256
          %s2742 = scalar_lea.smem [#allocation7], 1
          %2743 = sst [smem:[%s2742]] 512
          %s2744 = scalar_lea.smem [#allocation7], 2
          %2745 = sst [smem:[%s2744]] 2
          %s2746 = scalar_lea.smem [#allocation7], 3
          %2747 = sst [smem:[%s2746]] 128
          %s2748 = scalar_lea.smem [#allocation7], 4
          %2749 = sst [smem:[%s2748]] 128
          %s2750 = scalar_lea.smem [#allocation7], 5
          %2751 = sst [smem:[%s2750]] 8
          %2753 = dma.general %s2735, 4096, %s2717, %s2700, [#allocation6], [#allocation7], %s2733, 0
        $region132: #{edge_mlp.1} parent=119 // pred_fallthru
          _
      $region120: #{edge_mlp.1} parent=5 // pred_fallthru
        _
      %p2754 = scmp.le.s32.totalorder 2, %s17
      // Predicated region
      $region133: #{edge_mlp.1} parent=5 // pred_check
        %p2755 = pneg %p2754
      $region134: #{edge_mlp.1} parent=5 // pred_check_branch
        %2757 = sbr.rel (%p2755) target = $region136
      $region135: #{edge_mlp.1} parent=5 // pred_region
        %s2758 = ssub.s32 %s17, 2
        // Predicated region
        $region137: #{edge_mlp.1} parent=135 // pred_check
          %p2759 = pneg %p269
        $region138: #{edge_mlp.1} parent=135 // pred_check_branch
          %2761 = sbr.rel (%p2759) target = $region140
        $region139: #{edge_mlp.1} parent=135 // pred_region
          %s2762 = sand.u32 %s254, 1
          %s2763 = scalar_lea.sflag [#allocation5], %s2762
          %s2764 = sand.u32 %s254, 1
          %s2765 = smul.addr %s2764, 256
          %s2766 = scalar_lea.vmem [#allocation4], %s2765
          %2767 = dma.done %s2763, 4096
        $region140: #{edge_mlp.1} parent=135 // pred_fallthru
          _
      $region136: #{edge_mlp.1} parent=5 // pred_fallthru
        _
    $region6: #{edge_mlp.1} parent=1 // loop_footer
      %s21 = sadd.s32 1, %s17
    $region7: #{edge_mlp.1} parent=1 // loop_footer_branch
      %16 = sbr.rel target = $region3
    $region8: #{edge_mlp.1} parent=1 // loop_exit
      _
    %2768 = vsyncpa [#allocation5], 1
    %s2769 = scalar_lea.sflag [#allocation5], 1
    %2770 = vsyncpa %s2769, 1

</llo_original>
